<compile_context>
chip_gen: v6e
topology: v6e:2x2x1
jax: 0.10.0
libtpu: 0.0.40
codegen_flags: <defaults>
</compile_context>

<pallas_src>
import functools

import numpy as np

import jax
import jax.numpy as jnp
from jax.experimental import pallas as pl
from jax.experimental.pallas import tpu as pltpu


# --------------------------------------------------------------------------- #
# Shared math helper (used both inside the kernels and in the JAX reference)
# --------------------------------------------------------------------------- #
def _layernorm(x, gamma, beta, eps=1e-5):
    mu = jnp.mean(x, axis=-1, keepdims=True)
    xc = x - mu
    var = jnp.mean(xc * xc, axis=-1, keepdims=True)
    return xc * jax.lax.rsqrt(var + eps) * gamma + beta


# --------------------------------------------------------------------------- #
# Pallas kernels
# --------------------------------------------------------------------------- #
def swin_attn_kernel(x_ref, g1_ref, b1_ref, wqkv_ref, bqkv_ref, relb_ref,
                     keyq_ref, keyk_ref, wproj_ref, bproj_ref, o_ref, *,
                     num_heads, matmul_dtype):
    """norm1 + packed block-diagonal windowed MHA (+rel-pos bias, +shift mask) + proj.

    Block layout: x_ref is (1, Rg, C) where Rg = windows_per_step * N token rows
    (a group of whole windows, window-major).  Attention between different windows
    (or different shift groups) is disabled by a -1e9 gate, so one lane-dense
    (Rg, Rg) attention matrix per head covers all windows of the group at once.
    """
    _, Rg, C = x_ref.shape
    hd = C // num_heads

    x = x_ref[0].astype(jnp.float32)                                   # (Rg, C)

    # norm1 (per-token; commutes with the roll / window partition done outside)
    xn = _layernorm(x, g1_ref[...], b1_ref[...])

    # QKV projection over the whole group (q scale pre-folded into the weights)
    qkv = jnp.dot(xn.astype(matmul_dtype), wqkv_ref[...].astype(matmul_dtype),
                  preferred_element_type=jnp.float32) + bqkv_ref[...]  # (Rg, 3C)

    # Block-diagonal attention gate: token r may attend to token c iff their
    # composite (window, shift-group) keys match.  -1e9 -> exact 0 after softmax
    # (replaces both the implicit per-window structure and the -100 shift mask).
    gate = jnp.where(keyq_ref[...] == keyk_ref[...],
                     jnp.float32(0.0), jnp.float32(-1e9))              # (Rg, Rg)

    # Per-head attention; output projection is accumulated per head so no
    # lane-dim head concat is ever formed.
    y = jnp.zeros((Rg, C), jnp.float32)
    for h in range(num_heads):
        q_h = qkv[:, 0 * C + h * hd: 0 * C + (h + 1) * hd].astype(matmul_dtype)
        k_h = qkv[:, 1 * C + h * hd: 1 * C + (h + 1) * hd].astype(matmul_dtype)
        v_h = qkv[:, 2 * C + h * hd: 2 * C + (h + 1) * hd].astype(matmul_dtype)

        # scores: (Rg, hd) x (Rg, hd) contracted over hd -> (Rg, Rg)
        s = jax.lax.dot_general(q_h, k_h, (((1,), (1,)), ((), ())),
                                preferred_element_type=jnp.float32)
        s = s + relb_ref[h] + gate

        # numerically-stabilized softmax over Rg (lane-dense) columns;
        # the divide goes to the EUP via the approximate reciprocal.
        s = s - jnp.max(s, axis=-1, keepdims=True)
        p = jnp.exp(s)
        p = p * pl.reciprocal(jnp.sum(p, axis=-1, keepdims=True), approx=True)

        o_h = jnp.dot(p.astype(matmul_dtype), v_h,
                      preferred_element_type=jnp.float32)              # (Rg, hd)

        # per-head slice of the output projection (sum of K=hd contractions == K=C)
        y = y + jnp.dot(o_h.astype(matmul_dtype),
                        wproj_ref[h * hd:(h + 1) * hd, :].astype(matmul_dtype),
                        preferred_element_type=jnp.float32)

    y = y + bproj_ref[...]
    o_ref[0] = y.astype(o_ref.dtype)


def swin_mlp_kernel(xs_ref, xa_ref, g2_ref, b2_ref, w1_ref, c1_ref,
                    w2_ref, c2_ref, o_ref, *, matmul_dtype):
    """residual#1 + norm2 + fc1 + GELU + fc2 + residual#2 on a (TM, C) row tile."""
    x = xs_ref[...].astype(jnp.float32) + xa_ref[...].astype(jnp.float32)

    xn = _layernorm(x, g2_ref[...], b2_ref[...])
    h = jnp.dot(xn.astype(matmul_dtype), w1_ref[...].astype(matmul_dtype),
                preferred_element_type=jnp.float32) + c1_ref[...]
    # TODO(synk): PyTorch nn.GELU uses the exact erf form; the tanh approximation
    # (also used in the reference below) differs by < ~1e-3.
    h = jax.nn.gelu(h, approximate=True)
    y = jnp.dot(h.astype(matmul_dtype), w2_ref[...].astype(matmul_dtype),
                preferred_element_type=jnp.float32) + c2_ref[...]
    o_ref[...] = (x + y).astype(o_ref.dtype)


# --------------------------------------------------------------------------- #
# Wrapper: full SwinTransformerBlock forward
# --------------------------------------------------------------------------- #
def swin_block_forward(x, params, *, input_resolution, window_size, shift_size,
                       num_heads, matmul_dtype=jnp.bfloat16,
                       windows_per_step=8, row_tile=256):
    H, W = input_resolution
    B, L, C = x.shape
    ws = window_size
    N = ws * ws
    nW = (H // ws) * (W // ws)
    R = nW * N
    assert L == H * W and R == L and C % num_heads == 0

    # Windows per attention grid step (128-row groups by default: maps 1:1 onto
    # the v5e 128x128 MXU and gives >= 2 steps per v7x TensorCore for the demo).
    WG = windows_per_step if nW % windows_per_step == 0 else nW
    Rg = WG * N
    n_chunks = nW // WG

    f32 = jnp.dtype(matmul_dtype) == jnp.dtype(jnp.float32)
    inter_dtype = jnp.float32 if f32 else jnp.bfloat16   # inter-kernel HBM dtype

    # ---- layout plumbing (plain JAX): cyclic shift + window partition ----
    # TODO(synk): at real Swin resolutions, fold the roll + window partition /
    # reverse into the kernels' index plumbing (PrefetchScalarGridSpec row-offset
    # table) to avoid materializing two extra (B, L, C) copies in HBM.
    xi = x.reshape(B, H, W, C)
    if shift_size > 0:
        xi = jnp.roll(xi, shift=(-shift_size, -shift_size), axis=(1, 2))
    xw = xi.reshape(B, H // ws, ws, W // ws, ws, C)
    xw = xw.transpose(0, 1, 3, 2, 4, 5).reshape(B, R, C).astype(inter_dtype)

    # Per-group tile of the relative-position bias: relb[h, r, c] =
    # rel_bias[h, r % N, c % N].  Small ((nH, Rg, Rg)); constant index_map below
    # keeps it VMEM-resident across all grid steps.
    relb = jnp.tile(params['rel_bias'], (1, WG, WG))

    attn_kernel = functools.partial(
        swin_attn_kernel, num_heads=num_heads, matmul_dtype=matmul_dtype)

    attn_out = pl.pallas_call(
        attn_kernel,
        out_shape=jax.ShapeDtypeStruct((B, R, C), inter_dtype),
        grid=(B, n_chunks),
        in_specs=[
            pl.BlockSpec((1, Rg, C), lambda b, w: (b, w, 0)),            # x window group
            pl.BlockSpec((1, C), lambda b, w: (0, 0)),                   # norm1 gamma
            pl.BlockSpec((1, C), lambda b, w: (0, 0)),                   # norm1 beta
            pl.BlockSpec((C, 3 * C), lambda b, w: (0, 0)),               # W_qkv (q scaled)
            pl.BlockSpec((1, 3 * C), lambda b, w: (0, 0)),               # b_qkv
            pl.BlockSpec((num_heads, Rg, Rg), lambda b, w: (0, 0, 0)),   # rel-pos bias tile
            pl.BlockSpec((Rg, 1), lambda b, w: (w, 0)),                  # token keys (col)
            pl.BlockSpec((1, Rg), lambda b, w: (0, w)),                  # token keys (row)
            pl.BlockSpec((C, C), lambda b, w: (0, 0)),                   # W_proj
            pl.BlockSpec((1, C), lambda b, w: (0, 0)),                   # b_proj
        ],
        out_specs=pl.BlockSpec((1, Rg, C), lambda b, w: (b, w, 0)),
        compiler_params=pltpu.CompilerParams(
            dimension_semantics=("parallel", "parallel"),
            vmem_limit_bytes=32 * 1024 * 1024),
    )(xw, params['g1'], params['b1'], params['wqkv'], params['bqkv'], relb,
      params['keys_col'], params['keys_row'], params['wproj'], params['bproj'])

    # ---- window reverse + reverse cyclic shift (plain JAX, bf16 intermediate) ----
    aw = attn_out.reshape(B, H // ws, W // ws, ws, ws, C)
    aw = aw.transpose(0, 1, 3, 2, 4, 5).reshape(B, H, W, C)
    if shift_size > 0:
        aw = jnp.roll(aw, shift=(shift_size, shift_size), axis=(1, 2))

    shortcut = x.reshape(B * L, C)                   # f32 residual path
    attn_branch = aw.reshape(B * L, C)               # bf16 in the bf16 path

    rows = B * L
    # Keep >= 2 grid steps (v7x megacore) for the demo; grow to 512-2048 rows at
    # real batch*L to amortize the ~0.35us/step overhead.
    TM = row_tile if rows % row_tile == 0 else rows
    Ch = params['w1'].shape[1]

    mlp_kernel = functools.partial(swin_mlp_kernel, matmul_dtype=matmul_dtype)
    out = pl.pallas_call(
        mlp_kernel,
        out_shape=jax.ShapeDtypeStruct((rows, C), x.dtype),
        grid=(rows // TM,),
        in_specs=[
            pl.BlockSpec((TM, C), lambda i: (i, 0)),      # shortcut rows (f32)
            pl.BlockSpec((TM, C), lambda i: (i, 0)),      # attention branch rows
            pl.BlockSpec((1, C), lambda i: (0, 0)),       # norm2 gamma
            pl.BlockSpec((1, C), lambda i: (0, 0)),       # norm2 beta
            pl.BlockSpec((C, Ch), lambda i: (0, 0)),      # mlp fc1 W
            pl.BlockSpec((1, Ch), lambda i: (0, 0)),      # mlp fc1 b
            pl.BlockSpec((Ch, C), lambda i: (0, 0)),      # mlp fc2 W
            pl.BlockSpec((1, C), lambda i: (0, 0)),       # mlp fc2 b
        ],
        out_specs=pl.BlockSpec((TM, C), lambda i: (i, 0)),
        compiler_params=pltpu.CompilerParams(
            dimension_semantics=("parallel",),
            vmem_limit_bytes=32 * 1024 * 1024),
    )(shortcut, attn_branch, params['g2'], params['b2'],
      params['w1'], params['c1'], params['w2'], params['c2'])

    return out.reshape(B, L, C)


# --------------------------------------------------------------------------- #
# Static parameter / index / key setup (done once, outside the kernels)
# --------------------------------------------------------------------------- #
def make_relative_position_index(window_size):
    Wh, Ww = window_size
    coords = jnp.stack(jnp.meshgrid(jnp.arange(Wh), jnp.arange(Ww), indexing='ij'))
    cf = coords.reshape(2, -1)                                   # (2, N)
    rel = (cf[:, :, None] - cf[:, None, :]).transpose(1, 2, 0)   # (N, N, 2)
    rel = rel.at[:, :, 0].add(Wh - 1)
    rel = rel.at[:, :, 1].add(Ww - 1)
    rel = rel.at[:, :, 0].multiply(2 * Ww - 1)
    return rel.sum(-1)                                           # (N, N)


def make_window_group_keys(H, W, window_size, shift_size):
    """Composite (window, shift-group) key per token in window-major order.

    Two tokens may attend to each other iff their keys are equal; this encodes
    both the per-window structure of W-MSA and the SW-MSA shift mask.
    """
    ws = window_size
    N = ws * ws
    nW = (H // ws) * (W // ws)
    img = np.zeros((H, W), np.int64)
    if shift_size > 0:
        cnt = 0
        for hs in (slice(0, -ws), slice(-ws, -shift_size), slice(-shift_size, None)):
            for wsl in (slice(0, -ws), slice(-ws, -shift_size), slice(-shift_size, None)):
                img[hs, wsl] = cnt
                cnt += 1
    groups = img.reshape(H // ws, ws, W // ws, ws).transpose(0, 2, 1, 3).reshape(nW, N)
    keys = np.arange(nW, dtype=np.int64)[:, None] * 16 + groups   # group ids < 9 < 16
    return keys.reshape(-1).astype(np.int32)                      # (nW * N,)


def make_shift_mask(H, W, window_size, shift_size):
    """(nW, N, N) additive mask (reference only): 0 within a group, -100 across."""
    ws = window_size
    N = ws * ws
    nW = (H // ws) * (W // ws)
    if shift_size == 0:
        return jnp.zeros((nW, N, N), jnp.float32)
    img = np.zeros((1, H, W, 1), np.float32)
    cnt = 0
    for hs in (slice(0, -ws), slice(-ws, -shift_size), slice(-shift_size, None)):
        for wsl in (slice(0, -ws), slice(-ws, -shift_size), slice(-shift_size, None)):
            img[:, hs, wsl, :] = cnt
            cnt += 1
    mw = img.reshape(1, H // ws, ws, W // ws, ws, 1)
    mw = mw.transpose(0, 1, 3, 2, 4, 5).reshape(-1, N)           # (nW, N)
    am = mw[:, None, :] - mw[:, :, None]
    am = np.where(am != 0, -100.0, 0.0).astype(np.float32)
    return jnp.asarray(am)


def prepare_params(raw, *, input_resolution, window_size, shift_size, num_heads,
                   matmul_dtype=jnp.bfloat16):
    """One-time parameter transforms: fold the q scale into W_qkv/b_qkv, gather the
    small (nH, N, N) relative-position bias, build per-token attention keys, and
    store matmul weights in the MXU input dtype."""
    H, W = input_resolution
    ws = window_size
    N = ws * ws
    C = raw['wqkv'].shape[0]
    scale = (C // num_heads) ** (-0.5)

    wqkv = raw['wqkv'].at[:, :C].multiply(scale)
    bqkv = raw['bqkv'].at[:, :C].multiply(scale)

    rel_index = make_relative_position_index((ws, ws))
    rel_bias = raw['bias_table'][rel_index.reshape(-1)]
    rel_bias = rel_bias.reshape(N, N, num_heads).transpose(2, 0, 1)      # (nH, N, N)

    keys = make_window_group_keys(H, W, ws, shift_size)                  # (nW*N,)
    keys_col = jnp.asarray(keys.reshape(-1, 1))                          # (nW*N, 1)
    keys_row = jnp.asarray(keys.reshape(1, -1))                          # (1, nW*N)

    return dict(
        g1=raw['g1'], b1=raw['b1'],
        wqkv=wqkv.astype(matmul_dtype), bqkv=bqkv,
        rel_bias=rel_bias.astype(jnp.float32),
        keys_col=keys_col, keys_row=keys_row,
        wproj=raw['wproj'].astype(matmul_dtype), bproj=raw['bproj'],
        g2=raw['g2'], b2=raw['b2'],
        w1=raw['w1'].astype(matmul_dtype), c1=raw['c1'],
        w2=raw['w2'].astype(matmul_dtype), c2=raw['c2'],
    )


# --------------------------------------------------------------------------- #
# Pure-JAX f32 reference (direct transcription of the PyTorch forward)
# --------------------------------------------------------------------------- #
def swin_block_reference(x, raw, *, input_resolution, window_size, shift_size,
                         num_heads):
    H, W = input_resolution
    B, L, C = x.shape
    ws = window_size
    N = ws * ws
    nW = (H // ws) * (W // ws)
    hd = C // num_heads
    scale = hd ** (-0.5)

    shortcut = x
    xn = _layernorm(x, raw['g1'], raw['b1'])
    xi = xn.reshape(B, H, W, C)
    if shift_size > 0:
        xi = jnp.roll(xi, shift=(-shift_size, -shift_size), axis=(1, 2))
    xw = xi.reshape(B, H // ws, ws, W // ws, ws, C)
    xw = xw.transpose(0, 1, 3, 2, 4, 5).reshape(B * nW, N, C)

    qkv = xw @ raw['wqkv'] + raw['bqkv']
    qkv = qkv.reshape(B * nW, N, 3, num_heads, hd).transpose(2, 0, 3, 1, 4)
    q, k, v = qkv[0] * scale, qkv[1], qkv[2]

    rel_index = make_relative_position_index((ws, ws))
    rel_bias = raw['bias_table'][rel_index.reshape(-1)]
    rel_bias = rel_bias.reshape(N, N, num_heads).transpose(2, 0, 1)

    attn = jnp.einsum('bhnd,bhmd->bhnm', q, k) + rel_bias[None]
    if shift_size > 0:
        mask = make_shift_mask(H, W, ws, shift_size)
        attn = attn.reshape(B, nW, num_heads, N, N) + mask[None, :, None]
        attn = attn.reshape(B * nW, num_heads, N, N)
    attn = jax.nn.softmax(attn, axis=-1)
    o = jnp.einsum('bhnm,bhmd->bhnd', attn, v)
    o = o.transpose(0, 2, 1, 3).reshape(B * nW, N, C)
    o = o @ raw['wproj'] + raw['bproj']

    ow = o.reshape(B, H // ws, W // ws, ws, ws, C)
    ow = ow.transpose(0, 1, 3, 2, 4, 5).reshape(B, H, W, C)
    if shift_size > 0:
        ow = jnp.roll(ow, shift=(shift_size, shift_size), axis=(1, 2))
    x1 = shortcut + ow.reshape(B, L, C)

    xn2 = _layernorm(x1, raw['g2'], raw['b2'])
    h = jax.nn.gelu(xn2 @ raw['w1'] + raw['c1'], approximate=True)
    return x1 + h @ raw['w2'] + raw['c2']


# --------------------------------------------------------------------------- #
# Main
# --------------------------------------------------------------------------- #
if __name__ == "__main__":
    # Small but TPU-lane-friendly Swin block config (C = 128 -> lane-dense I/O).
    dim = 128
    input_resolution = (16, 16)
    window_size = 4
    shift_size = 2              # exercise the shifted-window (masked) attention path
    num_heads = 4
    mlp_ratio = 4.0
    batch = 2

    H, W = input_resolution
    L = H * W
    hidden = int(dim * mlp_ratio)
    table_len = (2 * window_size - 1) ** 2

    key = jax.random.PRNGKey(0)
    ks = jax.random.split(key, 15)
    x = jax.random.normal(ks[0], (batch, L, dim), dtype=jnp.float32)

    raw = dict(
        g1=1.0 + 0.1 * jax.random.normal(ks[1], (1, dim), jnp.float32),
        b1=0.1 * jax.random.normal(ks[2], (1, dim), jnp.float32),
        wqkv=0.05 * jax.random.normal(ks[3], (dim, 3 * dim), jnp.float32),
        bqkv=0.05 * jax.random.normal(ks[4], (1, 3 * dim), jnp.float32),
        bias_table=0.02 * jax.random.truncated_normal(
            ks[5], -2.0, 2.0, (table_len, num_heads), jnp.float32),
        wproj=0.05 * jax.random.normal(ks[6], (dim, dim), jnp.float32),
        bproj=0.05 * jax.random.normal(ks[7], (1, dim), jnp.float32),
        g2=1.0 + 0.1 * jax.random.normal(ks[8], (1, dim), jnp.float32),
        b2=0.1 * jax.random.normal(ks[9], (1, dim), jnp.float32),
        w1=0.05 * jax.random.normal(ks[10], (dim, hidden), jnp.float32),
        c1=0.05 * jax.random.normal(ks[11], (1, hidden), jnp.float32),
        w2=0.05 * jax.random.normal(ks[12], (hidden, dim), jnp.float32),
        c2=0.05 * jax.random.normal(ks[13], (1, dim), jnp.float32),
    )

    cfg = dict(input_resolution=input_resolution, window_size=window_size,
               shift_size=shift_size, num_heads=num_heads)

    ref = swin_block_reference(x, raw, **cfg)

    # f32 matmul-input path (tight check; softmax uses the approx reciprocal).
    params_f32 = prepare_params(raw, matmul_dtype=jnp.float32, **cfg)
    out_f32 = jax.block_until_ready(
        swin_block_forward(x, params_f32, matmul_dtype=jnp.float32, **cfg))
    assert out_f32.shape == (batch, L, dim)
    assert jnp.allclose(out_f32, ref, atol=1e-2, rtol=1e-2), (
        "f32 kernel mismatch, max abs err = "
        f"{float(jnp.max(jnp.abs(out_f32 - ref))):.3e}")

    # bf16 matmul-input path (MXU-friendly on v5e/v6e/v7x), f32 accumulation,
    # bf16 inter-kernel intermediate.
    params_bf16 = prepare_params(raw, matmul_dtype=jnp.bfloat16, **cfg)
    out_bf16 = jax.block_until_ready(
        swin_block_forward(x, params_bf16, matmul_dtype=jnp.bfloat16, **cfg))
    assert out_bf16.shape == (batch, L, dim)
    assert jnp.allclose(out_bf16, ref, atol=5e-2, rtol=5e-2), (
        "bf16 kernel mismatch, max abs err = "
        f"{float(jnp.max(jnp.abs(out_bf16 - ref))):.3e}")

    print("KERNEL_OK")
</pallas_src>

<mosaic_0001>
module attributes {stable_mosaic.version = 11 : i64} {
  func.func @swin_attn_kernel(%arg0: i32, %arg1: i32, %arg2: memref<1x128x128xf32, #tpu.memory_space<vmem>>, %arg3: memref<1x128xf32, #tpu.memory_space<vmem>>, %arg4: memref<1x128xf32, #tpu.memory_space<vmem>>, %arg5: memref<128x384xf32, #tpu.memory_space<vmem>>, %arg6: memref<1x384xf32, #tpu.memory_space<vmem>>, %arg7: memref<4x128x128xf32, #tpu.memory_space<vmem>>, %arg8: memref<128x1xi32, #tpu.memory_space<vmem>>, %arg9: memref<1x128xi32, #tpu.memory_space<vmem>>, %arg10: memref<128x128xf32, #tpu.memory_space<vmem>>, %arg11: memref<1x128xf32, #tpu.memory_space<vmem>>, %arg12: memref<1x128x128xf32, #tpu.memory_space<vmem>>) attributes {dimension_semantics = [#tpu.dimension_semantics<parallel>, #tpu.dimension_semantics<parallel>], iteration_bounds = array<i64: 2, 2>, scalar_prefetch = 0 : i64, scratch_operands = 0 : i64, tpu.core_type = #tpu.core_type<tc>, window_params = [{transform_indices = @transform_0, window_bounds = array<i64: 1, 128, 128>}, {pipeline_mode = #tpu.pipeline_mode<synchronous>, transform_indices = @transform_1, window_bounds = array<i64: 1, 128>}, {pipeline_mode = #tpu.pipeline_mode<synchronous>, transform_indices = @transform_2, window_bounds = array<i64: 1, 128>}, {pipeline_mode = #tpu.pipeline_mode<synchronous>, transform_indices = @transform_3, window_bounds = array<i64: 128, 384>}, {pipeline_mode = #tpu.pipeline_mode<synchronous>, transform_indices = @transform_4, window_bounds = array<i64: 1, 384>}, {pipeline_mode = #tpu.pipeline_mode<synchronous>, transform_indices = @transform_5, window_bounds = array<i64: 4, 128, 128>}, {transform_indices = @transform_6, window_bounds = array<i64: 128, 1>}, {transform_indices = @transform_7, window_bounds = array<i64: 1, 128>}, {pipeline_mode = #tpu.pipeline_mode<synchronous>, transform_indices = @transform_8, window_bounds = array<i64: 128, 128>}, {pipeline_mode = #tpu.pipeline_mode<synchronous>, transform_indices = @transform_9, window_bounds = array<i64: 1, 128>}, {transform_indices = @transform_10, window_bounds = array<i64: 1, 128, 128>}]} {
    %c0 = arith.constant 0 : index
    %c0_0 = arith.constant 0 : index
    %c0_1 = arith.constant 0 : index
    %0 = vector.load %arg2[%c0, %c0_0, %c0_1] : memref<1x128x128xf32, #tpu.memory_space<vmem>>, vector<1x128x128xf32>
    %1 = vector.shape_cast %0 : vector<1x128x128xf32> to vector<128x128xf32>
    %c0_2 = arith.constant 0 : index
    %c0_3 = arith.constant 0 : index
    %2 = vector.load %arg3[%c0_2, %c0_3] : memref<1x128xf32, #tpu.memory_space<vmem>>, vector<1x128xf32>
    %c0_4 = arith.constant 0 : index
    %c0_5 = arith.constant 0 : index
    %3 = vector.load %arg4[%c0_4, %c0_5] : memref<1x128xf32, #tpu.memory_space<vmem>>, vector<1x128xf32>
    %cst = arith.constant dense<0.000000e+00> : vector<128xf32>
    %4 = vector.multi_reduction <add>, %1, %cst [1] : vector<128x128xf32> to vector<128xf32>
    %5 = vector.shape_cast %4 : vector<128xf32> to vector<128x1xf32>
    %cst_6 = arith.constant 1.280000e+02 : f32
    %6 = vector.broadcast %cst_6 : f32 to vector<128x1xf32>
    %7 = arith.divf %5, %6 : vector<128x1xf32>
    %8 = vector.broadcast %7 : vector<128x1xf32> to vector<128x128xf32>
    %9 = arith.subf %1, %8 : vector<128x128xf32>
    %10 = arith.mulf %9, %9 : vector<128x128xf32>
    %cst_7 = arith.constant dense<0.000000e+00> : vector<128xf32>
    %11 = vector.multi_reduction <add>, %10, %cst_7 [1] : vector<128x128xf32> to vector<128xf32>
    %12 = vector.shape_cast %11 : vector<128xf32> to vector<128x1xf32>
    %cst_8 = arith.constant 1.280000e+02 : f32
    %13 = vector.broadcast %cst_8 : f32 to vector<128x1xf32>
    %14 = arith.divf %12, %13 : vector<128x1xf32>
    %cst_9 = arith.constant 9.99999974E-6 : f32
    %15 = vector.broadcast %cst_9 : f32 to vector<128x1xf32>
    %16 = arith.addf %14, %15 : vector<128x1xf32>
    %17 = math.rsqrt %16 : vector<128x1xf32>
    %18 = vector.broadcast %17 : vector<128x1xf32> to vector<128x128xf32>
    %19 = arith.mulf %9, %18 : vector<128x128xf32>
    %20 = vector.broadcast %2 : vector<1x128xf32> to vector<128x128xf32>
    %21 = arith.mulf %19, %20 : vector<128x128xf32>
    %22 = vector.broadcast %3 : vector<1x128xf32> to vector<128x128xf32>
    %23 = arith.addf %21, %22 : vector<128x128xf32>
    %c0_10 = arith.constant 0 : index
    %c0_11 = arith.constant 0 : index
    %24 = vector.load %arg5[%c0_10, %c0_11] : memref<128x384xf32, #tpu.memory_space<vmem>>, vector<128x384xf32>
    %cst_12 = arith.constant dense<0.000000e+00> : vector<128x384xf32>
    %25 = tpu.matmul %23, %24, %cst_12 {dimension_numbers = #tpu.dot_dimension_numbers<[1], [0], [0], [1], [0, 0, 1, 1], [], []>} : vector<128x128xf32>, vector<128x384xf32>, vector<128x384xf32> -> vector<128x384xf32>
    %c0_13 = arith.constant 0 : index
    %c0_14 = arith.constant 0 : index
    %26 = vector.load %arg6[%c0_13, %c0_14] : memref<1x384xf32, #tpu.memory_space<vmem>>, vector<1x384xf32>
    %27 = vector.broadcast %26 : vector<1x384xf32> to vector<128x384xf32>
    %28 = arith.addf %25, %27 : vector<128x384xf32>
    %c0_15 = arith.constant 0 : index
    %c0_16 = arith.constant 0 : index
    %29 = vector.load %arg8[%c0_15, %c0_16] : memref<128x1xi32, #tpu.memory_space<vmem>>, vector<128x1xi32>
    %c0_17 = arith.constant 0 : index
    %c0_18 = arith.constant 0 : index
    %30 = vector.load %arg9[%c0_17, %c0_18] : memref<1x128xi32, #tpu.memory_space<vmem>>, vector<1x128xi32>
    %31 = vector.broadcast %29 : vector<128x1xi32> to vector<128x128xi32>
    %32 = vector.broadcast %30 : vector<1x128xi32> to vector<128x128xi32>
    %33 = arith.cmpi eq, %31, %32 : vector<128x128xi32>
    %cst_19 = arith.constant 0.000000e+00 : f32
    %cst_20 = arith.constant -1.000000e+09 : f32
    %34 = vector.broadcast %cst_19 : f32 to vector<128x128xf32>
    %35 = vector.broadcast %cst_20 : f32 to vector<128x128xf32>
    %36 = arith.select %33, %34, %35 : vector<128x128xi1>, vector<128x128xf32>
    %cst_21 = arith.constant 0.000000e+00 : f32
    %37 = vector.broadcast %cst_21 : f32 to vector<128x128xf32>
    %38 = vector.extract_strided_slice %28 {offsets = [0, 0], sizes = [128, 32], strides = [1, 1]} : vector<128x384xf32> to vector<128x32xf32>
    %39 = vector.extract_strided_slice %28 {offsets = [0, 128], sizes = [128, 32], strides = [1, 1]} : vector<128x384xf32> to vector<128x32xf32>
    %40 = vector.extract_strided_slice %28 {offsets = [0, 256], sizes = [128, 32], strides = [1, 1]} : vector<128x384xf32> to vector<128x32xf32>
    %cst_22 = arith.constant dense<0.000000e+00> : vector<128x128xf32>
    %41 = tpu.matmul %38, %39, %cst_22 {dimension_numbers = #tpu.dot_dimension_numbers<[1], [1], [0], [0], [0, 0, 1, 0], [], []>} : vector<128x32xf32>, vector<128x32xf32>, vector<128x128xf32> -> vector<128x128xf32>
    %c0_23 = arith.constant 0 : index
    %c0_24 = arith.constant 0 : index
    %c0_25 = arith.constant 0 : index
    %42 = vector.load %arg7[%c0_23, %c0_24, %c0_25] : memref<4x128x128xf32, #tpu.memory_space<vmem>>, vector<1x128x128xf32>
    %43 = vector.shape_cast %42 : vector<1x128x128xf32> to vector<128x128xf32>
    %44 = arith.addf %41, %43 : vector<128x128xf32>
    %45 = arith.addf %44, %36 : vector<128x128xf32>
    %cst_26 = arith.constant dense<0xFF800000> : vector<128xf32>
    %46 = vector.multi_reduction <maximumf>, %45, %cst_26 [1] : vector<128x128xf32> to vector<128xf32>
    %47 = vector.shape_cast %46 : vector<128xf32> to vector<128x1xf32>
    %48 = vector.broadcast %47 : vector<128x1xf32> to vector<128x128xf32>
    %49 = arith.subf %45, %48 : vector<128x128xf32>
    %50 = math.exp %49 : vector<128x128xf32>
    %cst_27 = arith.constant dense<0.000000e+00> : vector<128xf32>
    %51 = vector.multi_reduction <add>, %50, %cst_27 [1] : vector<128x128xf32> to vector<128xf32>
    %52 = vector.shape_cast %51 : vector<128xf32> to vector<128x1xf32>
    %53 = tpu.reciprocal %52 {approx = true} : vector<128x1xf32> -> vector<128x1xf32>
    %54 = vector.broadcast %53 : vector<128x1xf32> to vector<128x128xf32>
    %55 = arith.mulf %50, %54 : vector<128x128xf32>
    %cst_28 = arith.constant dense<0.000000e+00> : vector<128x32xf32>
    %56 = tpu.matmul %55, %40, %cst_28 {dimension_numbers = #tpu.dot_dimension_numbers<[1], [0], [0], [1], [0, 0, 1, 1], [], []>} : vector<128x128xf32>, vector<128x32xf32>, vector<128x32xf32> -> vector<128x32xf32>
    %c0_29 = arith.constant 0 : index
    %c0_30 = arith.constant 0 : index
    %57 = vector.load %arg10[%c0_29, %c0_30] : memref<128x128xf32, #tpu.memory_space<vmem>>, vector<32x128xf32>
    %cst_31 = arith.constant dense<0.000000e+00> : vector<128x128xf32>
    %58 = tpu.matmul %56, %57, %cst_31 {dimension_numbers = #tpu.dot_dimension_numbers<[1], [0], [0], [1], [0, 0, 1, 1], [], []>} : vector<128x32xf32>, vector<32x128xf32>, vector<128x128xf32> -> vector<128x128xf32>
    %59 = arith.addf %37, %58 : vector<128x128xf32>
    %60 = vector.extract_strided_slice %28 {offsets = [0, 32], sizes = [128, 32], strides = [1, 1]} : vector<128x384xf32> to vector<128x32xf32>
    %61 = vector.extract_strided_slice %28 {offsets = [0, 160], sizes = [128, 32], strides = [1, 1]} : vector<128x384xf32> to vector<128x32xf32>
    %62 = vector.extract_strided_slice %28 {offsets = [0, 288], sizes = [128, 32], strides = [1, 1]} : vector<128x384xf32> to vector<128x32xf32>
    %cst_32 = arith.constant dense<0.000000e+00> : vector<128x128xf32>
    %63 = tpu.matmul %60, %61, %cst_32 {dimension_numbers = #tpu.dot_dimension_numbers<[1], [1], [0], [0], [0, 0, 1, 0], [], []>} : vector<128x32xf32>, vector<128x32xf32>, vector<128x128xf32> -> vector<128x128xf32>
    %c1 = arith.constant 1 : index
    %c0_33 = arith.constant 0 : index
    %c0_34 = arith.constant 0 : index
    %64 = vector.load %arg7[%c1, %c0_33, %c0_34] : memref<4x128x128xf32, #tpu.memory_space<vmem>>, vector<1x128x128xf32>
    %65 = vector.shape_cast %64 : vector<1x128x128xf32> to vector<128x128xf32>
    %66 = arith.addf %63, %65 : vector<128x128xf32>
    %67 = arith.addf %66, %36 : vector<128x128xf32>
    %cst_35 = arith.constant dense<0xFF800000> : vector<128xf32>
    %68 = vector.multi_reduction <maximumf>, %67, %cst_35 [1] : vector<128x128xf32> to vector<128xf32>
    %69 = vector.shape_cast %68 : vector<128xf32> to vector<128x1xf32>
    %70 = vector.broadcast %69 : vector<128x1xf32> to vector<128x128xf32>
    %71 = arith.subf %67, %70 : vector<128x128xf32>
    %72 = math.exp %71 : vector<128x128xf32>
    %cst_36 = arith.constant dense<0.000000e+00> : vector<128xf32>
    %73 = vector.multi_reduction <add>, %72, %cst_36 [1] : vector<128x128xf32> to vector<128xf32>
    %74 = vector.shape_cast %73 : vector<128xf32> to vector<128x1xf32>
    %75 = tpu.reciprocal %74 {approx = true} : vector<128x1xf32> -> vector<128x1xf32>
    %76 = vector.broadcast %75 : vector<128x1xf32> to vector<128x128xf32>
    %77 = arith.mulf %72, %76 : vector<128x128xf32>
    %cst_37 = arith.constant dense<0.000000e+00> : vector<128x32xf32>
    %78 = tpu.matmul %77, %62, %cst_37 {dimension_numbers = #tpu.dot_dimension_numbers<[1], [0], [0], [1], [0, 0, 1, 1], [], []>} : vector<128x128xf32>, vector<128x32xf32>, vector<128x32xf32> -> vector<128x32xf32>
    %c32 = arith.constant 32 : index
    %c0_38 = arith.constant 0 : index
    %79 = vector.load %arg10[%c32, %c0_38] : memref<128x128xf32, #tpu.memory_space<vmem>>, vector<32x128xf32>
    %cst_39 = arith.constant dense<0.000000e+00> : vector<128x128xf32>
    %80 = tpu.matmul %78, %79, %cst_39 {dimension_numbers = #tpu.dot_dimension_numbers<[1], [0], [0], [1], [0, 0, 1, 1], [], []>} : vector<128x32xf32>, vector<32x128xf32>, vector<128x128xf32> -> vector<128x128xf32>
    %81 = arith.addf %59, %80 : vector<128x128xf32>
    %82 = vector.extract_strided_slice %28 {offsets = [0, 64], sizes = [128, 32], strides = [1, 1]} : vector<128x384xf32> to vector<128x32xf32>
    %83 = vector.extract_strided_slice %28 {offsets = [0, 192], sizes = [128, 32], strides = [1, 1]} : vector<128x384xf32> to vector<128x32xf32>
    %84 = vector.extract_strided_slice %28 {offsets = [0, 320], sizes = [128, 32], strides = [1, 1]} : vector<128x384xf32> to vector<128x32xf32>
    %cst_40 = arith.constant dense<0.000000e+00> : vector<128x128xf32>
    %85 = tpu.matmul %82, %83, %cst_40 {dimension_numbers = #tpu.dot_dimension_numbers<[1], [1], [0], [0], [0, 0, 1, 0], [], []>} : vector<128x32xf32>, vector<128x32xf32>, vector<128x128xf32> -> vector<128x128xf32>
    %c2 = arith.constant 2 : index
    %c0_41 = arith.constant 0 : index
    %c0_42 = arith.constant 0 : index
    %86 = vector.load %arg7[%c2, %c0_41, %c0_42] : memref<4x128x128xf32, #tpu.memory_space<vmem>>, vector<1x128x128xf32>
    %87 = vector.shape_cast %86 : vector<1x128x128xf32> to vector<128x128xf32>
    %88 = arith.addf %85, %87 : vector<128x128xf32>
    %89 = arith.addf %88, %36 : vector<128x128xf32>
    %cst_43 = arith.constant dense<0xFF800000> : vector<128xf32>
    %90 = vector.multi_reduction <maximumf>, %89, %cst_43 [1] : vector<128x128xf32> to vector<128xf32>
    %91 = vector.shape_cast %90 : vector<128xf32> to vector<128x1xf32>
    %92 = vector.broadcast %91 : vector<128x1xf32> to vector<128x128xf32>
    %93 = arith.subf %89, %92 : vector<128x128xf32>
    %94 = math.exp %93 : vector<128x128xf32>
    %cst_44 = arith.constant dense<0.000000e+00> : vector<128xf32>
    %95 = vector.multi_reduction <add>, %94, %cst_44 [1] : vector<128x128xf32> to vector<128xf32>
    %96 = vector.shape_cast %95 : vector<128xf32> to vector<128x1xf32>
    %97 = tpu.reciprocal %96 {approx = true} : vector<128x1xf32> -> vector<128x1xf32>
    %98 = vector.broadcast %97 : vector<128x1xf32> to vector<128x128xf32>
    %99 = arith.mulf %94, %98 : vector<128x128xf32>
    %cst_45 = arith.constant dense<0.000000e+00> : vector<128x32xf32>
    %100 = tpu.matmul %99, %84, %cst_45 {dimension_numbers = #tpu.dot_dimension_numbers<[1], [0], [0], [1], [0, 0, 1, 1], [], []>} : vector<128x128xf32>, vector<128x32xf32>, vector<128x32xf32> -> vector<128x32xf32>
    %c64 = arith.constant 64 : index
    %c0_46 = arith.constant 0 : index
    %101 = vector.load %arg10[%c64, %c0_46] : memref<128x128xf32, #tpu.memory_space<vmem>>, vector<32x128xf32>
    %cst_47 = arith.constant dense<0.000000e+00> : vector<128x128xf32>
    %102 = tpu.matmul %100, %101, %cst_47 {dimension_numbers = #tpu.dot_dimension_numbers<[1], [0], [0], [1], [0, 0, 1, 1], [], []>} : vector<128x32xf32>, vector<32x128xf32>, vector<128x128xf32> -> vector<128x128xf32>
    %103 = arith.addf %81, %102 : vector<128x128xf32>
    %104 = vector.extract_strided_slice %28 {offsets = [0, 96], sizes = [128, 32], strides = [1, 1]} : vector<128x384xf32> to vector<128x32xf32>
    %105 = vector.extract_strided_slice %28 {offsets = [0, 224], sizes = [128, 32], strides = [1, 1]} : vector<128x384xf32> to vector<128x32xf32>
    %106 = vector.extract_strided_slice %28 {offsets = [0, 352], sizes = [128, 32], strides = [1, 1]} : vector<128x384xf32> to vector<128x32xf32>
    %cst_48 = arith.constant dense<0.000000e+00> : vector<128x128xf32>
    %107 = tpu.matmul %104, %105, %cst_48 {dimension_numbers = #tpu.dot_dimension_numbers<[1], [1], [0], [0], [0, 0, 1, 0], [], []>} : vector<128x32xf32>, vector<128x32xf32>, vector<128x128xf32> -> vector<128x128xf32>
    %c3 = arith.constant 3 : index
    %c0_49 = arith.constant 0 : index
    %c0_50 = arith.constant 0 : index
    %108 = vector.load %arg7[%c3, %c0_49, %c0_50] : memref<4x128x128xf32, #tpu.memory_space<vmem>>, vector<1x128x128xf32>
    %109 = vector.shape_cast %108 : vector<1x128x128xf32> to vector<128x128xf32>
    %110 = arith.addf %107, %109 : vector<128x128xf32>
    %111 = arith.addf %110, %36 : vector<128x128xf32>
    %cst_51 = arith.constant dense<0xFF800000> : vector<128xf32>
    %112 = vector.multi_reduction <maximumf>, %111, %cst_51 [1] : vector<128x128xf32> to vector<128xf32>
    %113 = vector.shape_cast %112 : vector<128xf32> to vector<128x1xf32>
    %114 = vector.broadcast %113 : vector<128x1xf32> to vector<128x128xf32>
    %115 = arith.subf %111, %114 : vector<128x128xf32>
    %116 = math.exp %115 : vector<128x128xf32>
    %cst_52 = arith.constant dense<0.000000e+00> : vector<128xf32>
    %117 = vector.multi_reduction <add>, %116, %cst_52 [1] : vector<128x128xf32> to vector<128xf32>
    %118 = vector.shape_cast %117 : vector<128xf32> to vector<128x1xf32>
    %119 = tpu.reciprocal %118 {approx = true} : vector<128x1xf32> -> vector<128x1xf32>
    %120 = vector.broadcast %119 : vector<128x1xf32> to vector<128x128xf32>
    %121 = arith.mulf %116, %120 : vector<128x128xf32>
    %cst_53 = arith.constant dense<0.000000e+00> : vector<128x32xf32>
    %122 = tpu.matmul %121, %106, %cst_53 {dimension_numbers = #tpu.dot_dimension_numbers<[1], [0], [0], [1], [0, 0, 1, 1], [], []>} : vector<128x128xf32>, vector<128x32xf32>, vector<128x32xf32> -> vector<128x32xf32>
    %c96 = arith.constant 96 : index
    %c0_54 = arith.constant 0 : index
    %123 = vector.load %arg10[%c96, %c0_54] : memref<128x128xf32, #tpu.memory_space<vmem>>, vector<32x128xf32>
    %cst_55 = arith.constant dense<0.000000e+00> : vector<128x128xf32>
    %124 = tpu.matmul %122, %123, %cst_55 {dimension_numbers = #tpu.dot_dimension_numbers<[1], [0], [0], [1], [0, 0, 1, 1], [], []>} : vector<128x32xf32>, vector<32x128xf32>, vector<128x128xf32> -> vector<128x128xf32>
    %125 = arith.addf %103, %124 : vector<128x128xf32>
    %c0_56 = arith.constant 0 : index
    %c0_57 = arith.constant 0 : index
    %126 = vector.load %arg11[%c0_56, %c0_57] : memref<1x128xf32, #tpu.memory_space<vmem>>, vector<1x128xf32>
    %127 = vector.broadcast %126 : vector<1x128xf32> to vector<128x128xf32>
    %128 = arith.addf %125, %127 : vector<128x128xf32>
    %c0_58 = arith.constant 0 : index
    %c0_59 = arith.constant 0 : index
    %c0_60 = arith.constant 0 : index
    %129 = vector.load %arg12[%c0_58, %c0_59, %c0_60] : memref<1x128x128xf32, #tpu.memory_space<vmem>>, vector<1x128x128xf32>
    %130 = vector.shape_cast %129 : vector<1x128x128xf32> to vector<128x128xf32>
    %131 = vector.shape_cast %128 : vector<128x128xf32> to vector<1x128x128xf32>
    tpu.vector_store %arg12[%c0_58, %c0_59, %c0_60], %131 {strides = array<i32>} : memref<1x128x128xf32, #tpu.memory_space<vmem>>, vector<1x128x128xf32>,
    return
  }
  func.func @transform_0(%arg0: i32, %arg1: i32) -> (i32, i32, i32) {
    %c0_i32 = arith.constant 0 : i32
    %c0_i32_0 = arith.constant 0 : i32
    return %arg0, %arg1, %c0_i32 : i32, i32, i32
  }
  func.func @transform_1(%arg0: i32, %arg1: i32) -> (i32, i32) {
    %c0_i32 = arith.constant 0 : i32
    %c0_i32_0 = arith.constant 0 : i32
    %c0_i32_1 = arith.constant 0 : i32
    return %c0_i32, %c0_i32_0 : i32, i32
  }
  func.func @transform_2(%arg0: i32, %arg1: i32) -> (i32, i32) {
    %c0_i32 = arith.constant 0 : i32
    %c0_i32_0 = arith.constant 0 : i32
    %c0_i32_1 = arith.constant 0 : i32
    return %c0_i32, %c0_i32_0 : i32, i32
  }
  func.func @transform_3(%arg0: i32, %arg1: i32) -> (i32, i32) {
    %c0_i32 = arith.constant 0 : i32
    %c0_i32_0 = arith.constant 0 : i32
    %c0_i32_1 = arith.constant 0 : i32
    return %c0_i32, %c0_i32_0 : i32, i32
  }
  func.func @transform_4(%arg0: i32, %arg1: i32) -> (i32, i32) {
    %c0_i32 = arith.constant 0 : i32
    %c0_i32_0 = arith.constant 0 : i32
    %c0_i32_1 = arith.constant 0 : i32
    return %c0_i32, %c0_i32_0 : i32, i32
  }
  func.func @transform_5(%arg0: i32, %arg1: i32) -> (i32, i32, i32) {
    %c0_i32 = arith.constant 0 : i32
    %c0_i32_0 = arith.constant 0 : i32
    %c0_i32_1 = arith.constant 0 : i32
    %c0_i32_2 = arith.constant 0 : i32
    return %c0_i32, %c0_i32_0, %c0_i32_1 : i32, i32, i32
  }
  func.func @transform_6(%arg0: i32, %arg1: i32) -> (i32, i32) {
    %c0_i32 = arith.constant 0 : i32
    %c0_i32_0 = arith.constant 0 : i32
    return %arg1, %c0_i32 : i32, i32
  }
  func.func @transform_7(%arg0: i32, %arg1: i32) -> (i32, i32) {
    %c0_i32 = arith.constant 0 : i32
    %c0_i32_0 = arith.constant 0 : i32
    return %c0_i32, %arg1 : i32, i32
  }
  func.func @transform_8(%arg0: i32, %arg1: i32) -> (i32, i32) {
    %c0_i32 = arith.constant 0 : i32
    %c0_i32_0 = arith.constant 0 : i32
    %c0_i32_1 = arith.constant 0 : i32
    return %c0_i32, %c0_i32_0 : i32, i32
  }
  func.func @transform_9(%arg0: i32, %arg1: i32) -> (i32, i32) {
    %c0_i32 = arith.constant 0 : i32
    %c0_i32_0 = arith.constant 0 : i32
    %c0_i32_1 = arith.constant 0 : i32
    return %c0_i32, %c0_i32_0 : i32, i32
  }
  func.func @transform_10(%arg0: i32, %arg1: i32) -> (i32, i32, i32) {
    %c0_i32 = arith.constant 0 : i32
    %c0_i32_0 = arith.constant 0 : i32
    return %arg0, %arg1, %c0_i32 : i32, i32, i32
  }
}

</mosaic_0001>

<llo_original>
// kernel: tpu_custom_call.1
$region0: #{tpu_custom_call.1}
  #allocation0 [shape = 'u32[]', space=smem, size = 0x4, offset = 0x4, fixed_abs, tag = 'smem constant byte address 0x4 - core index']
  #allocation1 [shape = 'u32[144,128]{1,0:T(1,128)}', space=vmem, size = 0x12000, scoped, tag = 'internal scratch']
  %s0 = inlined_call_operand.hbm [shape: f32[2,256,128], index: 0, kind: input, shape index: {}]
  %s1 = inlined_call_operand.vmem [shape: f32[1,128], index: 1, kind: input, shape index: {}]
  %s2 = inlined_call_operand.vmem [shape: f32[1,128], index: 2, kind: input, shape index: {}]
  %s3 = inlined_call_operand.hbm [shape: f32[128,384], index: 3, kind: input, shape index: {}]
  %s4 = inlined_call_operand.vmem [shape: f32[1,384], index: 4, kind: input, shape index: {}]
  %s5 = inlined_call_operand.hbm [shape: f32[4,128,128], index: 5, kind: input, shape index: {}]
  %s6 = inlined_call_operand.vmem [shape: s32[256,1], index: 6, kind: input, shape index: {}]
  %s7 = inlined_call_operand.vmem [shape: s32[1,256], index: 7, kind: input, shape index: {}]
  %s8 = inlined_call_operand.vmem [shape: f32[128,128], index: 8, kind: input, shape index: {}]
  %s9 = inlined_call_operand.vmem [shape: f32[1,128], index: 9, kind: input, shape index: {}]
  %s10 = inlined_call_operand.hbm [shape: f32[2,256,128], index: 10, kind: output, shape index: {}]
  %s11 = sld [smem:[#allocation0]]
  $region85: #{tpu_custom_call.1} parent=0
    _
  %s13 = ssub.s32 1, %s11
  %s14 = scalar_select 0, %s13, %s11
  $region1: #{tpu_custom_call.1} parent=0
    #allocation2 [shape = 'u8[131072]{0}', space=vmem, size = 0x20000, scoped, tag = 'input window, operand 0']
    #allocation3 [shape = 's32[2]{0}', space=sflag, size = 0x8, scoped, tag = 'scoped memory for tpu_custom_call.1']
    #allocation4 [shape = 's32[2]{0}', space=sflag, size = 0x8, scoped, tag = 'scoped memory for tpu_custom_call.1']
    #allocation5 [shape = 'u8[196608]{0}', space=vmem, size = 0x30000, scoped, tag = 'input window, operand 3, single buffered']
    #allocation6 [shape = 's32[1]{0}', space=sflag, size = 0x4, scoped, tag = 'scoped memory for tpu_custom_call.1']
    #allocation7 [shape = 'u8[262144]{0}', space=vmem, size = 0x40000, scoped, tag = 'input window, operand 5, single buffered']
    #allocation8 [shape = 'u8[131072]{0}', space=vmem, size = 0x20000, scoped, tag = 'output window, operand 0']
    %15 = vsyncpa [#allocation3], 0
    %s16 = scalar_lea.sflag [#allocation3], 1
    %17 = vsyncpa %s16, 0
    %18 = vsyncpa [#allocation6], 0
    %19 = vsyncpa [#allocation4], 0
    %s20 = scalar_lea.sflag [#allocation4], 1
    %21 = vsyncpa %s20, 0
    loop: start=0, step=1, limit=6
    $region2: #{tpu_custom_call.1} parent=1 // loop_pre_header
      _
    $region3: #{tpu_custom_call.1} parent=1 // loop_header
      %s23 = sphi 0, %s27
      %p24 = scmp.ge.s32.totalorder %s23, 6
      %s30 = sphi 0, %s42
      %s31 = sphi 0, %s38
      %s32 = sphi 0, %s30
      %s33 = sphi 0, %s31
      %s34 = sphi 0, %s32
      %s35 = sphi 0, %s33
      %s47 = sphi 0, %s49
      %s50 = sphi 0, %s47
      %s51 = sphi 0, %s50
      %s67 = sphi 0, %s51
      %s71 = sphi 0, %s71
      %s73 = sphi 0, %s71
      %s74 = sphi 0, %s73
      %s88 = sphi 0, %s74
      %s92 = sphi 0, %s92
      %s94 = sphi 0, %s92
      %s95 = sphi 0, %s94
      %s109 = sphi 0, %s95
      %s113 = sphi 0, %s113
      %s115 = sphi 0, %s113
      %s116 = sphi 0, %s115
      %s130 = sphi 0, %s116
      %s134 = sphi 0, %s134
      %s136 = sphi 0, %s134
      %s137 = sphi 0, %s136
      %s151 = sphi 0, %s137
      %s155 = sphi 0, %s155
      %s157 = sphi 0, %s155
      %s158 = sphi 0, %s157
      %s172 = sphi 0, %s158
      %s178 = sphi 0, %s180
      %s181 = sphi 0, %s178
      %s182 = sphi 0, %s181
      %s198 = sphi 0, %s182
      %s204 = sphi 0, %s206
      %s207 = sphi 0, %s204
      %s208 = sphi 0, %s207
      %s224 = sphi 0, %s208
      %s228 = sphi 0, %s228
      %s230 = sphi 0, %s228
      %s231 = sphi 0, %s230
      %s245 = sphi 0, %s231
      %s249 = sphi 0, %s249
      %s251 = sphi 0, %s249
      %s252 = sphi 0, %s251
      %s266 = sphi 0, %s252
      %s274 = sphi 0, %s276
      %s277 = sphi 0, %s274
      %s278 = sphi 0, %s277
      %s294 = sphi 0, %s278
    $region4: #{tpu_custom_call.1} parent=1 // loop_header_branch
      %26 = sbr.rel (%p24) target = $region8
    $region5: #{tpu_custom_call.1} parent=1 // loop_body
      %s28 = ssub.s32 %s23, 1
      %s29 = ssub.s32 %s23, 2
      %s36 = sadd.s32 1, %s31
      %p37 = scmp.ge.s32.totalorder %s36, 2
      %s38 = scalar_select %p37, 0, %s36
      %s39 = sadd.s32 1, %s30
      %s40 = scalar_select %p37, %s39, %s30
      %p41 = scmp.ge.s32.totalorder %s40, 2
      %s42 = scalar_select %p41, 0, %s40
      %s43 = ssub.s32 %s30, %s42
      %s44 = ssub.s32 %s31, %s38
      %s45 = sor.u32 %s43, %s44
      %p46 = scmp.eq.s32.totalorder %s45, 0
      %s48 = sadd.s32 %s47, 1
      %s49 = scalar_select %p46, %s47, %s48
      %p52 = pneg %p46
      %p53 = scmp.eq.s32.totalorder %s23, 3
      %p54 = por %p52, %p53
      %p55 = scmp.ne.s32.totalorder %s47, %s50
      %p56 = scmp.eq.s32.totalorder %s23, 0
      %p57 = por %p55, %p56
      %p58 = scmp.ne.s32.totalorder %s47, %s50
      %p59 = scmp.eq.s32.totalorder %s28, 3
      %p60 = por %p58, %p59
      %p61 = scmp.ne.s32.totalorder %s50, %s51
      %p62 = scmp.eq.s32.totalorder %s28, 0
      %p63 = por %p61, %p62
      %p64 = scmp.ne.s32.totalorder %s50, %s51
      %p65 = scmp.eq.s32.totalorder %s29, 3
      %p66 = por %p64, %p65
      %p68 = scmp.ne.s32.totalorder %s51, %s67
      %p69 = scmp.eq.s32.totalorder %s29, 0
      %p70 = por %p68, %p69
      %s72 = sadd.s32 %s71, 1
      %p75 = scmp.eq.s32.totalorder %s23, 3
      %p76 = scmp.ne.s32.totalorder %s71, %s73
      %p77 = scmp.eq.s32.totalorder %s23, 0
      %p78 = por %p76, %p77
      %p79 = scmp.ne.s32.totalorder %s71, %s73
      %p80 = scmp.eq.s32.totalorder %s28, 3
      %p81 = por %p79, %p80
      %p82 = scmp.ne.s32.totalorder %s73, %s74
      %p83 = scmp.eq.s32.totalorder %s28, 0
      %p84 = por %p82, %p83
      %p85 = scmp.ne.s32.totalorder %s73, %s74
      %p86 = scmp.eq.s32.totalorder %s29, 3
      %p87 = por %p85, %p86
      %p89 = scmp.ne.s32.totalorder %s74, %s88
      %p90 = scmp.eq.s32.totalorder %s29, 0
      %p91 = por %p89, %p90
      %s93 = sadd.s32 %s92, 1
      %p96 = scmp.eq.s32.totalorder %s23, 3
      %p97 = scmp.ne.s32.totalorder %s92, %s94
      %p98 = scmp.eq.s32.totalorder %s23, 0
      %p99 = por %p97, %p98
      %p100 = scmp.ne.s32.totalorder %s92, %s94
      %p101 = scmp.eq.s32.totalorder %s28, 3
      %p102 = por %p100, %p101
      %p103 = scmp.ne.s32.totalorder %s94, %s95
      %p104 = scmp.eq.s32.totalorder %s28, 0
      %p105 = por %p103, %p104
      %p106 = scmp.ne.s32.totalorder %s94, %s95
      %p107 = scmp.eq.s32.totalorder %s29, 3
      %p108 = por %p106, %p107
      %p110 = scmp.ne.s32.totalorder %s95, %s109
      %p111 = scmp.eq.s32.totalorder %s29, 0
      %p112 = por %p110, %p111
      %s114 = sadd.s32 %s113, 1
      %p117 = scmp.eq.s32.totalorder %s23, 3
      %p118 = scmp.ne.s32.totalorder %s113, %s115
      %p119 = scmp.eq.s32.totalorder %s23, 0
      %p120 = por %p118, %p119
      %p121 = scmp.ne.s32.totalorder %s113, %s115
      %p122 = scmp.eq.s32.totalorder %s28, 3
      %p123 = por %p121, %p122
      %p124 = scmp.ne.s32.totalorder %s115, %s116
      %p125 = scmp.eq.s32.totalorder %s28, 0
      %p126 = por %p124, %p125
      %p127 = scmp.ne.s32.totalorder %s115, %s116
      %p128 = scmp.eq.s32.totalorder %s29, 3
      %p129 = por %p127, %p128
      %p131 = scmp.ne.s32.totalorder %s116, %s130
      %p132 = scmp.eq.s32.totalorder %s29, 0
      %p133 = por %p131, %p132
      %s135 = sadd.s32 %s134, 1
      %p138 = scmp.eq.s32.totalorder %s23, 3
      %p139 = scmp.ne.s32.totalorder %s134, %s136
      %p140 = scmp.eq.s32.totalorder %s23, 0
      %p141 = por %p139, %p140
      %p142 = scmp.ne.s32.totalorder %s134, %s136
      %p143 = scmp.eq.s32.totalorder %s28, 3
      %p144 = por %p142, %p143
      %p145 = scmp.ne.s32.totalorder %s136, %s137
      %p146 = scmp.eq.s32.totalorder %s28, 0
      %p147 = por %p145, %p146
      %p148 = scmp.ne.s32.totalorder %s136, %s137
      %p149 = scmp.eq.s32.totalorder %s29, 3
      %p150 = por %p148, %p149
      %p152 = scmp.ne.s32.totalorder %s137, %s151
      %p153 = scmp.eq.s32.totalorder %s29, 0
      %p154 = por %p152, %p153
      %s156 = sadd.s32 %s155, 1
      %p159 = scmp.eq.s32.totalorder %s23, 3
      %p160 = scmp.ne.s32.totalorder %s155, %s157
      %p161 = scmp.eq.s32.totalorder %s23, 0
      %p162 = por %p160, %p161
      %p163 = scmp.ne.s32.totalorder %s155, %s157
      %p164 = scmp.eq.s32.totalorder %s28, 3
      %p165 = por %p163, %p164
      %p166 = scmp.ne.s32.totalorder %s157, %s158
      %p167 = scmp.eq.s32.totalorder %s28, 0
      %p168 = por %p166, %p167
      %p169 = scmp.ne.s32.totalorder %s157, %s158
      %p170 = scmp.eq.s32.totalorder %s29, 3
      %p171 = por %p169, %p170
      %p173 = scmp.ne.s32.totalorder %s158, %s172
      %p174 = scmp.eq.s32.totalorder %s29, 0
      %p175 = por %p173, %p174
      %s176 = ssub.s32 %s31, %s38
      %p177 = scmp.eq.s32.totalorder %s176, 0
      %s179 = sadd.s32 %s178, 1
      %s180 = scalar_select %p177, %s178, %s179
      %p183 = pneg %p177
      %p184 = scmp.eq.s32.totalorder %s23, 3
      %p185 = por %p183, %p184
      %p186 = scmp.ne.s32.totalorder %s178, %s181
      %p187 = scmp.eq.s32.totalorder %s23, 0
      %p188 = por %p186, %p187
      %p189 = scmp.ne.s32.totalorder %s178, %s181
      %p190 = scmp.eq.s32.totalorder %s28, 3
      %p191 = por %p189, %p190
      %p192 = scmp.ne.s32.totalorder %s181, %s182
      %p193 = scmp.eq.s32.totalorder %s28, 0
      %p194 = por %p192, %p193
      %p195 = scmp.ne.s32.totalorder %s181, %s182
      %p196 = scmp.eq.s32.totalorder %s29, 3
      %p197 = por %p195, %p196
      %p199 = scmp.ne.s32.totalorder %s182, %s198
      %p200 = scmp.eq.s32.totalorder %s29, 0
      %p201 = por %p199, %p200
      %s202 = ssub.s32 %s31, %s38
      %p203 = scmp.eq.s32.totalorder %s202, 0
      %s205 = sadd.s32 %s204, 1
      %s206 = scalar_select %p203, %s204, %s205
      %p209 = pneg %p203
      %p210 = scmp.eq.s32.totalorder %s23, 3
      %p211 = por %p209, %p210
      %p212 = scmp.ne.s32.totalorder %s204, %s207
      %p213 = scmp.eq.s32.totalorder %s23, 0
      %p214 = por %p212, %p213
      %p215 = scmp.ne.s32.totalorder %s204, %s207
      %p216 = scmp.eq.s32.totalorder %s28, 3
      %p217 = por %p215, %p216
      %p218 = scmp.ne.s32.totalorder %s207, %s208
      %p219 = scmp.eq.s32.totalorder %s28, 0
      %p220 = por %p218, %p219
      %p221 = scmp.ne.s32.totalorder %s207, %s208
      %p222 = scmp.eq.s32.totalorder %s29, 3
      %p223 = por %p221, %p222
      %p225 = scmp.ne.s32.totalorder %s208, %s224
      %p226 = scmp.eq.s32.totalorder %s29, 0
      %p227 = por %p225, %p226
      %s229 = sadd.s32 %s228, 1
      %p232 = scmp.eq.s32.totalorder %s23, 3
      %p233 = scmp.ne.s32.totalorder %s228, %s230
      %p234 = scmp.eq.s32.totalorder %s23, 0
      %p235 = por %p233, %p234
      %p236 = scmp.ne.s32.totalorder %s228, %s230
      %p237 = scmp.eq.s32.totalorder %s28, 3
      %p238 = por %p236, %p237
      %p239 = scmp.ne.s32.totalorder %s230, %s231
      %p240 = scmp.eq.s32.totalorder %s28, 0
      %p241 = por %p239, %p240
      %p242 = scmp.ne.s32.totalorder %s230, %s231
      %p243 = scmp.eq.s32.totalorder %s29, 3
      %p244 = por %p242, %p243
      %p246 = scmp.ne.s32.totalorder %s231, %s245
      %p247 = scmp.eq.s32.totalorder %s29, 0
      %p248 = por %p246, %p247
      %s250 = sadd.s32 %s249, 1
      %p253 = scmp.eq.s32.totalorder %s23, 3
      %p254 = scmp.ne.s32.totalorder %s249, %s251
      %p255 = scmp.eq.s32.totalorder %s23, 0
      %p256 = por %p254, %p255
      %p257 = scmp.ne.s32.totalorder %s249, %s251
      %p258 = scmp.eq.s32.totalorder %s28, 3
      %p259 = por %p257, %p258
      %p260 = scmp.ne.s32.totalorder %s251, %s252
      %p261 = scmp.eq.s32.totalorder %s28, 0
      %p262 = por %p260, %p261
      %p263 = scmp.ne.s32.totalorder %s251, %s252
      %p264 = scmp.eq.s32.totalorder %s29, 3
      %p265 = por %p263, %p264
      %p267 = scmp.ne.s32.totalorder %s252, %s266
      %p268 = scmp.eq.s32.totalorder %s29, 0
      %p269 = por %p267, %p268
      %s270 = ssub.s32 %s30, %s42
      %s271 = ssub.s32 %s31, %s38
      %s272 = sor.u32 %s270, %s271
      %p273 = scmp.eq.s32.totalorder %s272, 0
      %s275 = sadd.s32 %s274, 1
      %s276 = scalar_select %p273, %s274, %s275
      %p279 = pneg %p273
      %p280 = scmp.eq.s32.totalorder %s23, 3
      %p281 = por %p279, %p280
      %p282 = scmp.ne.s32.totalorder %s274, %s277
      %p283 = scmp.eq.s32.totalorder %s23, 0
      %p284 = por %p282, %p283
      %p285 = scmp.ne.s32.totalorder %s274, %s277
      %p286 = scmp.eq.s32.totalorder %s28, 3
      %p287 = por %p285, %p286
      %p288 = scmp.ne.s32.totalorder %s277, %s278
      %p289 = scmp.eq.s32.totalorder %s28, 0
      %p290 = por %p288, %p289
      %p291 = scmp.ne.s32.totalorder %s277, %s278
      %p292 = scmp.eq.s32.totalorder %s29, 3
      %p293 = por %p291, %p292
      %p295 = scmp.ne.s32.totalorder %s278, %s294
      %p296 = scmp.eq.s32.totalorder %s29, 0
      %p297 = por %p295, %p296
      %p298 = scmp.le.s32.totalorder 1, %s23
      %p299 = scmp.lt.s32.totalorder %s23, 5
      %p300 = pnand %p298, %p299
      %p301 = pneg %p300
      // Predicated region
      $region9: #{tpu_custom_call.1} parent=5 // pred_check
        _
      $region10: #{tpu_custom_call.1} parent=5 // pred_check_branch
        %303 = sbr.rel (%p300) target = $region12
      $region11: #{tpu_custom_call.1} parent=5 // pred_region
        %s304 = ssub.s32 %s23, 1
        // Predicated region
        $region13: #{tpu_custom_call.1} parent=11 // pred_check
          %p305 = pneg %p84
        $region14: #{tpu_custom_call.1} parent=11 // pred_check_branch
          %307 = sbr.rel (%p305) target = $region16
        $region15: #{tpu_custom_call.1} parent=11 // pred_region
          _
        $region16: #{tpu_custom_call.1} parent=11 // pred_fallthru
          _
        // Predicated region
        $region17: #{tpu_custom_call.1} parent=11 // pred_check
          %p308 = pneg %p105
        $region18: #{tpu_custom_call.1} parent=11 // pred_check_branch
          %310 = sbr.rel (%p308) target = $region20
        $region19: #{tpu_custom_call.1} parent=11 // pred_region
          _
        $region20: #{tpu_custom_call.1} parent=11 // pred_fallthru
          _
        // Predicated region
        $region21: #{tpu_custom_call.1} parent=11 // pred_check
          %p311 = pneg %p126
        $region22: #{tpu_custom_call.1} parent=11 // pred_check_branch
          %313 = sbr.rel (%p311) target = $region24
        $region23: #{tpu_custom_call.1} parent=11 // pred_region
          %s315 = ssub.s32 6144, 6144
          %316 = vsyncadd [#allocation6], %s315
          %s317 = sshll.u32 [#allocation5], 4
          %s318 = int_to_ptr.vmem [resolvable:$true] %s317
          %323 = dma.hbm_to_vmem [thread:$0]  %s3, 6144, %s318, [#allocation6], 384, 384, 24
        $region24: #{tpu_custom_call.1} parent=11 // pred_fallthru
          _
        // Predicated region
        $region25: #{tpu_custom_call.1} parent=11 // pred_check
          %p324 = pneg %p147
        $region26: #{tpu_custom_call.1} parent=11 // pred_check_branch
          %326 = sbr.rel (%p324) target = $region28
        $region27: #{tpu_custom_call.1} parent=11 // pred_region
          _
        $region28: #{tpu_custom_call.1} parent=11 // pred_fallthru
          _
        // Predicated region
        $region29: #{tpu_custom_call.1} parent=11 // pred_check
          %p327 = pneg %p168
        $region30: #{tpu_custom_call.1} parent=11 // pred_check_branch
          %329 = sbr.rel (%p327) target = $region32
        $region31: #{tpu_custom_call.1} parent=11 // pred_region
          %s331 = ssub.s32 8192, 8192
          %332 = vsyncadd [#allocation6], %s331
          %s333 = sshll.u32 [#allocation7], 4
          %s334 = int_to_ptr.vmem [resolvable:$true] %s333
          %339 = dma.hbm_to_vmem [thread:$0]  %s5, 8192, %s334, [#allocation6], 128, 128, 8
        $region32: #{tpu_custom_call.1} parent=11 // pred_fallthru
          _
        // Predicated region
        $region33: #{tpu_custom_call.1} parent=11 // pred_check
          %p340 = pneg %p241
        $region34: #{tpu_custom_call.1} parent=11 // pred_check_branch
          %342 = sbr.rel (%p340) target = $region36
        $region35: #{tpu_custom_call.1} parent=11 // pred_region
          _
        $region36: #{tpu_custom_call.1} parent=11 // pred_fallthru
          _
        // Predicated region
        $region37: #{tpu_custom_call.1} parent=11 // pred_check
          %p343 = pneg %p262
        $region38: #{tpu_custom_call.1} parent=11 // pred_check_branch
          %345 = sbr.rel (%p343) target = $region40
        $region39: #{tpu_custom_call.1} parent=11 // pred_region
          _
        $region40: #{tpu_custom_call.1} parent=11 // pred_fallthru
          _
      $region12: #{tpu_custom_call.1} parent=5 // pred_fallthru
        _
      %p346 = scmp.lt.s32.totalorder %s23, 4
      // Predicated region
      $region41: #{tpu_custom_call.1} parent=5 // pred_check
        %p347 = pneg %p346
      $region42: #{tpu_custom_call.1} parent=5 // pred_check_branch
        %349 = sbr.rel (%p347) target = $region44
      $region43: #{tpu_custom_call.1} parent=5 // pred_region
        // Predicated region
        $region45: #{tpu_custom_call.1} parent=43 // pred_check
          %p350 = pneg %p57
        $region46: #{tpu_custom_call.1} parent=43 // pred_check_branch
          %352 = sbr.rel (%p350) target = $region48
        $region47: #{tpu_custom_call.1} parent=43 // pred_region
          %s353 = sand.u32 %s47, 1
          %s354 = scalar_lea.sflag [#allocation3], %s353
          %s355 = sand.u32 %s47, 1
          %s356 = smul.addr %s355, 128
          %s357 = scalar_lea.vmem [#allocation2], %s356
          %s358 = smul.u32 16, %s31
          %s360 = ssub.s32 2048, 2048
          %361 = vsyncadd %s354, %s360
          %s362 = smul.addr %s30, 32
          %s363 = sadd.s32 %s358, %s362
          %s364 = smul.addr %s363, 128
          %s365 = scalar_lea.hbm %s0, %s364
          %s366 = sshll.u32 %s357, 4
          %s367 = int_to_ptr.vmem [resolvable:$true] %s366
          %372 = dma.hbm_to_vmem [thread:$0]  %s365, 2048, %s367, %s354, 128, 128, 8
        $region48: #{tpu_custom_call.1} parent=43 // pred_fallthru
          _
        // Predicated region
        $region49: #{tpu_custom_call.1} parent=43 // pred_check
          %p373 = pneg %p188
        $region50: #{tpu_custom_call.1} parent=43 // pred_check_branch
          %375 = sbr.rel (%p373) target = $region52
        $region51: #{tpu_custom_call.1} parent=43 // pred_region
          %s376 = smul.u32 16, %s31
          %p377 = scmp.lt.s32.totalorder %s376, 31
          %s378 = scalar_select %p377, %s376, 31
          %s379 = smul.addr %s378, 8
          %s380 = scalar_lea.vmem %s6, %s379
          %s381 = smul.u32 16, %s31
        $region52: #{tpu_custom_call.1} parent=43 // pred_fallthru
          _
        // Predicated region
        $region53: #{tpu_custom_call.1} parent=43 // pred_check
          %p382 = pneg %p214
        $region54: #{tpu_custom_call.1} parent=43 // pred_check_branch
          %384 = sbr.rel (%p382) target = $region56
        $region55: #{tpu_custom_call.1} parent=43 // pred_region
          %p385 = scmp.lt.s32.totalorder %s31, 1
          %s386 = scalar_select %p385, %s31, 1
          %s387 = scalar_lea.vmem %s7, %s386
        $region56: #{tpu_custom_call.1} parent=43 // pred_fallthru
          _
      $region44: #{tpu_custom_call.1} parent=5 // pred_fallthru
        _
      %p388 = scmp.le.s32.totalorder 1, %s23
      %p389 = scmp.lt.s32.totalorder %s23, 5
      %p390 = pnand %p388, %p389
      %p391 = pneg %p390
      // Predicated region
      $region57: #{tpu_custom_call.1} parent=5 // pred_check
        _
      $region58: #{tpu_custom_call.1} parent=5 // pred_check_branch
        %393 = sbr.rel (%p390) target = $region60
      $region59: #{tpu_custom_call.1} parent=5 // pred_region
        %s394 = ssub.s32 %s23, 1
        %s395 = sand.u32 %s50, 1
        %s396 = scalar_lea.sflag [#allocation3], %s395
        %s397 = sand.u32 %s50, 1
        %s398 = smul.addr %s397, 128
        %s399 = scalar_lea.vmem [#allocation2], %s398
        // Predicated region
        $region61: #{tpu_custom_call.1} parent=59 // pred_check
          %p400 = pneg %p63
        $region62: #{tpu_custom_call.1} parent=59 // pred_check_branch
          %402 = sbr.rel (%p400) target = $region64
        $region63: #{tpu_custom_call.1} parent=59 // pred_region
          %403 = dma.done %s396, 2048
        $region64: #{tpu_custom_call.1} parent=59 // pred_fallthru
          _
        // Predicated region
        $region65: #{tpu_custom_call.1} parent=59 // pred_check
          %p404 = pneg %p126
        $region66: #{tpu_custom_call.1} parent=59 // pred_check_branch
          %406 = sbr.rel (%p404) target = $region68
        $region67: #{tpu_custom_call.1} parent=59 // pred_region
          %407 = dma.done [#allocation6], 6144
        $region68: #{tpu_custom_call.1} parent=59 // pred_fallthru
          _
        // Predicated region
        $region69: #{tpu_custom_call.1} parent=59 // pred_check
          %p408 = pneg %p168
        $region70: #{tpu_custom_call.1} parent=59 // pred_check_branch
          %410 = sbr.rel (%p408) target = $region72
        $region71: #{tpu_custom_call.1} parent=59 // pred_region
          %411 = dma.done [#allocation6], 8192
        $region72: #{tpu_custom_call.1} parent=59 // pred_fallthru
          _
        %s412 = sand.u32 %s50, 1
        %s413 = scalar_lea.sflag [#allocation3], %s412
        %s414 = sand.u32 %s50, 1
        %s415 = smul.addr %s414, 128
        %s416 = scalar_lea.vmem [#allocation2], %s415
        %p417 = pneg %p63
        %p418 = pneg %p60
        %p419 = pneg %p84
        %p420 = pneg %p81
        %p421 = pneg %p105
        %p422 = pneg %p102
        %p423 = pneg %p126
        %p424 = pneg %p123
        %p425 = pneg %p147
        %p426 = pneg %p144
        %p427 = pneg %p168
        %p428 = pneg %p165
        %s429 = smul.u32 16, %s33
        %p430 = scmp.lt.s32.totalorder %s429, 31
        %s431 = scalar_select %p430, %s429, 31
        %s432 = smul.addr %s431, 8
        %s433 = scalar_lea.vmem %s6, %s432
        %p434 = pneg %p194
        %p435 = pneg %p191
        %p436 = scmp.lt.s32.totalorder %s33, 1
        %s437 = scalar_select %p436, %s33, 1
        %s438 = scalar_lea.vmem %s7, %s437
        %p439 = pneg %p220
        %p440 = pneg %p217
        %p441 = pneg %p241
        %p442 = pneg %p238
        %p443 = pneg %p262
        %p444 = pneg %p259
        %p445 = pneg %p290
        %p446 = pneg %p287
        %s447 = sand.u32 %s277, 1
        %s448 = scalar_lea.sflag [#allocation4], %s447
        %s449 = sand.u32 %s277, 1
        %s450 = smul.addr %s449, 128
        %s451 = scalar_lea.vmem [#allocation8], %s450
        %s452 = smul.u32 16, %s33
        %s453 = smul.u32 16, %s33
        %p454 = scmp.lt.s32.totalorder %s453, 31
        %s455 = scalar_select %p454, %s453, 31
        %s456 = smul.addr %s455, 8
        %s457 = scalar_lea.vmem %s6, %s456
        %s458 = smul.u32 16, %s33
        %p459 = scmp.lt.s32.totalorder %s33, 1
        %s460 = scalar_select %p459, %s33, 1
        %s461 = scalar_lea.vmem %s7, %s460
        %s462 = smul.u32 16, %s33
        %v463 = vld [vmem:[%s399] sm:$0xff]
        %v464 = vld [vmem:[%s399 + $0x8] sm:$0xff]
        %v465 = vld [vmem:[%s399 + $0x10] sm:$0xff]
        %v466 = vld [vmem:[%s399 + $0x18] sm:$0xff]
        %v467 = vld [vmem:[%s399 + $0x20] sm:$0xff]
        %v468 = vld [vmem:[%s399 + $0x28] sm:$0xff]
        %v469 = vld [vmem:[%s399 + $0x30] sm:$0xff]
        %v470 = vld [vmem:[%s399 + $0x38] sm:$0xff]
        %v471 = vld [vmem:[%s399 + $0x40] sm:$0xff]
        %v472 = vld [vmem:[%s399 + $0x48] sm:$0xff]
        %v473 = vld [vmem:[%s399 + $0x50] sm:$0xff]
        %v474 = vld [vmem:[%s399 + $0x58] sm:$0xff]
        %v475 = vld [vmem:[%s399 + $0x60] sm:$0xff]
        %v476 = vld [vmem:[%s399 + $0x68] sm:$0xff]
        %v477 = vld [vmem:[%s399 + $0x70] sm:$0xff]
        %v478 = vld [vmem:[%s399 + $0x78] sm:$0xff]
        %v479 = vld [vmem:[%s1] sm:$0x1]
        %v480 = vld [vmem:[%s2] sm:$0x1]
        %481 = vadd.xlane.f32.xlu0 %v463
        %v482 = vpop.xlane.xlu0 %481
        %483 = vadd.xlane.f32.xlu0 %v464
        %v484 = vpop.xlane.xlu0 %483
        %485 = vadd.xlane.f32.xlu0 %v465
        %v486 = vpop.xlane.xlu0 %485
        %487 = vadd.xlane.f32.xlu0 %v466
        %v488 = vpop.xlane.xlu0 %487
        %489 = vadd.xlane.f32.xlu0 %v467
        %v490 = vpop.xlane.xlu0 %489
        %491 = vadd.xlane.f32.xlu0 %v468
        %v492 = vpop.xlane.xlu0 %491
        %493 = vadd.xlane.f32.xlu0 %v469
        %v494 = vpop.xlane.xlu0 %493
        %495 = vadd.xlane.f32.xlu0 %v470
        %v496 = vpop.xlane.xlu0 %495
        %497 = vadd.xlane.f32.xlu0 %v471
        %v498 = vpop.xlane.xlu0 %497
        %499 = vadd.xlane.f32.xlu0 %v472
        %v500 = vpop.xlane.xlu0 %499
        %501 = vadd.xlane.f32.xlu0 %v473
        %v502 = vpop.xlane.xlu0 %501
        %503 = vadd.xlane.f32.xlu0 %v474
        %v504 = vpop.xlane.xlu0 %503
        %505 = vadd.xlane.f32.xlu0 %v475
        %v506 = vpop.xlane.xlu0 %505
        %507 = vadd.xlane.f32.xlu0 %v476
        %v508 = vpop.xlane.xlu0 %507
        %509 = vadd.xlane.f32.xlu0 %v477
        %v510 = vpop.xlane.xlu0 %509
        %511 = vadd.xlane.f32.xlu0 %v478
        %v512 = vpop.xlane.xlu0 %511
        %v513 = vrcp.pop 128.0
        %v514 = vmul.f32 %v482, %v513
        %v515 = vmul.f32 %v484, %v513
        %v516 = vmul.f32 %v486, %v513
        %v517 = vmul.f32 %v488, %v513
        %v518 = vmul.f32 %v490, %v513
        %v519 = vmul.f32 %v492, %v513
        %v520 = vmul.f32 %v494, %v513
        %v521 = vmul.f32 %v496, %v513
        %v522 = vmul.f32 %v498, %v513
        %v523 = vmul.f32 %v500, %v513
        %v524 = vmul.f32 %v502, %v513
        %v525 = vmul.f32 %v504, %v513
        %v526 = vmul.f32 %v506, %v513
        %v527 = vmul.f32 %v508, %v513
        %v528 = vmul.f32 %v510, %v513
        %v529 = vmul.f32 %v512, %v513
        %v530 = vsub.f32 %v463, %v514
        %v531 = vsub.f32 %v464, %v515
        %v532 = vsub.f32 %v465, %v516
        %v533 = vsub.f32 %v466, %v517
        %v534 = vsub.f32 %v467, %v518
        %v535 = vsub.f32 %v468, %v519
        %v536 = vsub.f32 %v469, %v520
        %v537 = vsub.f32 %v470, %v521
        %v538 = vsub.f32 %v471, %v522
        %v539 = vsub.f32 %v472, %v523
        %v540 = vsub.f32 %v473, %v524
        %v541 = vsub.f32 %v474, %v525
        %v542 = vsub.f32 %v475, %v526
        %v543 = vsub.f32 %v476, %v527
        %v544 = vsub.f32 %v477, %v528
        %v545 = vsub.f32 %v478, %v529
        %v546 = vmul.f32 %v530, %v530
        %v547 = vmul.f32 %v531, %v531
        %v548 = vmul.f32 %v532, %v532
        %v549 = vmul.f32 %v533, %v533
        %v550 = vmul.f32 %v534, %v534
        %v551 = vmul.f32 %v535, %v535
        %v552 = vmul.f32 %v536, %v536
        %v553 = vmul.f32 %v537, %v537
        %v554 = vmul.f32 %v538, %v538
        %v555 = vmul.f32 %v539, %v539
        %v556 = vmul.f32 %v540, %v540
        %v557 = vmul.f32 %v541, %v541
        %v558 = vmul.f32 %v542, %v542
        %v559 = vmul.f32 %v543, %v543
        %v560 = vmul.f32 %v544, %v544
        %v561 = vmul.f32 %v545, %v545
        %562 = vadd.xlane.f32.xlu0 %v546
        %v563 = vpop.xlane.xlu0 %562
        %564 = vadd.xlane.f32.xlu0 %v547
        %v565 = vpop.xlane.xlu0 %564
        %566 = vadd.xlane.f32.xlu0 %v548
        %v567 = vpop.xlane.xlu0 %566
        %568 = vadd.xlane.f32.xlu0 %v549
        %v569 = vpop.xlane.xlu0 %568
        %570 = vadd.xlane.f32.xlu0 %v550
        %v571 = vpop.xlane.xlu0 %570
        %572 = vadd.xlane.f32.xlu0 %v551
        %v573 = vpop.xlane.xlu0 %572
        %574 = vadd.xlane.f32.xlu0 %v552
        %v575 = vpop.xlane.xlu0 %574
        %576 = vadd.xlane.f32.xlu0 %v553
        %v577 = vpop.xlane.xlu0 %576
        %578 = vadd.xlane.f32.xlu0 %v554
        %v579 = vpop.xlane.xlu0 %578
        %580 = vadd.xlane.f32.xlu0 %v555
        %v581 = vpop.xlane.xlu0 %580
        %582 = vadd.xlane.f32.xlu0 %v556
        %v583 = vpop.xlane.xlu0 %582
        %584 = vadd.xlane.f32.xlu0 %v557
        %v585 = vpop.xlane.xlu0 %584
        %586 = vadd.xlane.f32.xlu0 %v558
        %v587 = vpop.xlane.xlu0 %586
        %588 = vadd.xlane.f32.xlu0 %v559
        %v589 = vpop.xlane.xlu0 %588
        %590 = vadd.xlane.f32.xlu0 %v560
        %v591 = vpop.xlane.xlu0 %590
        %592 = vadd.xlane.f32.xlu0 %v561
        %v593 = vpop.xlane.xlu0 %592
        %v594 = vmul.f32 %v563, %v513
        %v595 = vmul.f32 %v565, %v513
        %v596 = vmul.f32 %v567, %v513
        %v597 = vmul.f32 %v569, %v513
        %v598 = vmul.f32 %v571, %v513
        %v599 = vmul.f32 %v573, %v513
        %v600 = vmul.f32 %v575, %v513
        %v601 = vmul.f32 %v577, %v513
        %v602 = vmul.f32 %v579, %v513
        %v603 = vmul.f32 %v581, %v513
        %v604 = vmul.f32 %v583, %v513
        %v605 = vmul.f32 %v585, %v513
        %v606 = vmul.f32 %v587, %v513
        %v607 = vmul.f32 %v589, %v513
        %v608 = vmul.f32 %v591, %v513
        %v609 = vmul.f32 %v593, %v513
        %v610 = vadd.f32 %v594, 1e-05
        %v611 = vadd.f32 %v595, 1e-05
        %v612 = vadd.f32 %v596, 1e-05
        %v613 = vadd.f32 %v597, 1e-05
        %v614 = vadd.f32 %v598, 1e-05
        %v615 = vadd.f32 %v599, 1e-05
        %v616 = vadd.f32 %v600, 1e-05
        %v617 = vadd.f32 %v601, 1e-05
        %v618 = vadd.f32 %v602, 1e-05
        %v619 = vadd.f32 %v603, 1e-05
        %v620 = vadd.f32 %v604, 1e-05
        %v621 = vadd.f32 %v605, 1e-05
        %v622 = vadd.f32 %v606, 1e-05
        %v623 = vadd.f32 %v607, 1e-05
        %v624 = vadd.f32 %v608, 1e-05
        %v625 = vadd.f32 %v609, 1e-05
        %v626 = vrsqrt.pop %v610
        %v627 = vrsqrt.pop %v611
        %v628 = vrsqrt.pop %v612
        %v629 = vrsqrt.pop %v613
        %v630 = vrsqrt.pop %v614
        %v631 = vrsqrt.pop %v615
        %v632 = vrsqrt.pop %v616
        %v633 = vrsqrt.pop %v617
        %v634 = vrsqrt.pop %v618
        %v635 = vrsqrt.pop %v619
        %v636 = vrsqrt.pop %v620
        %v637 = vrsqrt.pop %v621
        %v638 = vrsqrt.pop %v622
        %v639 = vrsqrt.pop %v623
        %v640 = vrsqrt.pop %v624
        %v641 = vrsqrt.pop %v625
        %v642 = vmul.f32 %v530, %v626
        %v643 = vmul.f32 %v531, %v627
        %v644 = vmul.f32 %v532, %v628
        %v645 = vmul.f32 %v533, %v629
        %v646 = vmul.f32 %v534, %v630
        %v647 = vmul.f32 %v535, %v631
        %v648 = vmul.f32 %v536, %v632
        %v649 = vmul.f32 %v537, %v633
        %v650 = vmul.f32 %v538, %v634
        %v651 = vmul.f32 %v539, %v635
        %v652 = vmul.f32 %v540, %v636
        %v653 = vmul.f32 %v541, %v637
        %v654 = vmul.f32 %v542, %v638
        %v655 = vmul.f32 %v543, %v639
        %v656 = vmul.f32 %v544, %v640
        %v657 = vmul.f32 %v545, %v641
        %v659 = vlaneseq
        %v660 = vshrl.u32 %v659, 7
        %v661 = vsub.s32 0, %v660
        %v662 = vrot.slane %v479, %v661
        %v664 = vmul.f32 %v642, %v662
        %v665 = vmul.f32 %v643, %v662
        %v666 = vmul.f32 %v644, %v662
        %v667 = vmul.f32 %v645, %v662
        %v668 = vmul.f32 %v646, %v662
        %v669 = vmul.f32 %v647, %v662
        %v670 = vmul.f32 %v648, %v662
        %v671 = vmul.f32 %v649, %v662
        %v672 = vmul.f32 %v650, %v662
        %v673 = vmul.f32 %v651, %v662
        %v674 = vmul.f32 %v652, %v662
        %v675 = vmul.f32 %v653, %v662
        %v676 = vmul.f32 %v654, %v662
        %v677 = vmul.f32 %v655, %v662
        %v678 = vmul.f32 %v656, %v662
        %v679 = vmul.f32 %v657, %v662
        %v681 = vlaneseq
        %v682 = vshrl.u32 %v681, 7
        %v683 = vsub.s32 0, %v682
        %v684 = vrot.slane %v480, %v683
        %v686 = vadd.f32 %v664, %v684
        %v687 = vadd.f32 %v665, %v684
        %v688 = vadd.f32 %v666, %v684
        %v689 = vadd.f32 %v667, %v684
        %v690 = vadd.f32 %v668, %v684
        %v691 = vadd.f32 %v669, %v684
        %v692 = vadd.f32 %v670, %v684
        %v693 = vadd.f32 %v671, %v684
        %v694 = vadd.f32 %v672, %v684
        %v695 = vadd.f32 %v673, %v684
        %v696 = vadd.f32 %v674, %v684
        %v697 = vadd.f32 %v675, %v684
        %v698 = vadd.f32 %v676, %v684
        %v699 = vadd.f32 %v677, %v684
        %v700 = vadd.f32 %v678, %v684
        %v701 = vadd.f32 %v679, %v684
        %v702 = vld [vmem:[#allocation5] sm:$0xff]
        %v703 = vld [vmem:[#allocation5 + $0x8] sm:$0xff]
        %v704 = vld [vmem:[#allocation5 + $0x10] sm:$0xff]
        %v705 = vld [vmem:[#allocation5 + $0x18] sm:$0xff]
        %v706 = vld [vmem:[#allocation5 + $0x20] sm:$0xff]
        %v707 = vld [vmem:[#allocation5 + $0x28] sm:$0xff]
        %v708 = vld [vmem:[#allocation5 + $0x30] sm:$0xff]
        %v709 = vld [vmem:[#allocation5 + $0x38] sm:$0xff]
        %v710 = vld [vmem:[#allocation5 + $0x40] sm:$0xff]
        %v711 = vld [vmem:[#allocation5 + $0x48] sm:$0xff]
        %v712 = vld [vmem:[#allocation5 + $0x50] sm:$0xff]
        %v713 = vld [vmem:[#allocation5 + $0x58] sm:$0xff]
        %v714 = vld [vmem:[#allocation5 + $0x60] sm:$0xff]
        %v715 = vld [vmem:[#allocation5 + $0x68] sm:$0xff]
        %v716 = vld [vmem:[#allocation5 + $0x70] sm:$0xff]
        %v717 = vld [vmem:[#allocation5 + $0x78] sm:$0xff]
        %v718 = vld [vmem:[#allocation5 + $0x80] sm:$0xff]
        %v719 = vld [vmem:[#allocation5 + $0x88] sm:$0xff]
        %v720 = vld [vmem:[#allocation5 + $0x90] sm:$0xff]
        %v721 = vld [vmem:[#allocation5 + $0x98] sm:$0xff]
        %v722 = vld [vmem:[#allocation5 + $0xa0] sm:$0xff]
        %v723 = vld [vmem:[#allocation5 + $0xa8] sm:$0xff]
        %v724 = vld [vmem:[#allocation5 + $0xb0] sm:$0xff]
        %v725 = vld [vmem:[#allocation5 + $0xb8] sm:$0xff]
        %v726 = vld [vmem:[#allocation5 + $0xc0] sm:$0xff]
        %v727 = vld [vmem:[#allocation5 + $0xc8] sm:$0xff]
        %v728 = vld [vmem:[#allocation5 + $0xd0] sm:$0xff]
        %v729 = vld [vmem:[#allocation5 + $0xd8] sm:$0xff]
        %v730 = vld [vmem:[#allocation5 + $0xe0] sm:$0xff]
        %v731 = vld [vmem:[#allocation5 + $0xe8] sm:$0xff]
        %v732 = vld [vmem:[#allocation5 + $0xf0] sm:$0xff]
        %v733 = vld [vmem:[#allocation5 + $0xf8] sm:$0xff]
        %v734 = vld [vmem:[#allocation5 + $0x100] sm:$0xff]
        %v735 = vld [vmem:[#allocation5 + $0x108] sm:$0xff]
        %v736 = vld [vmem:[#allocation5 + $0x110] sm:$0xff]
        %v737 = vld [vmem:[#allocation5 + $0x118] sm:$0xff]
        %v738 = vld [vmem:[#allocation5 + $0x120] sm:$0xff]
        %v739 = vld [vmem:[#allocation5 + $0x128] sm:$0xff]
        %v740 = vld [vmem:[#allocation5 + $0x130] sm:$0xff]
        %v741 = vld [vmem:[#allocation5 + $0x138] sm:$0xff]
        %v742 = vld [vmem:[#allocation5 + $0x140] sm:$0xff]
        %v743 = vld [vmem:[#allocation5 + $0x148] sm:$0xff]
        %v744 = vld [vmem:[#allocation5 + $0x150] sm:$0xff]
        %v745 = vld [vmem:[#allocation5 + $0x158] sm:$0xff]
        %v746 = vld [vmem:[#allocation5 + $0x160] sm:$0xff]
        %v747 = vld [vmem:[#allocation5 + $0x168] sm:$0xff]
        %v748 = vld [vmem:[#allocation5 + $0x170] sm:$0xff]
        %v749 = vld [vmem:[#allocation5 + $0x178] sm:$0xff]
        %v750 = vld [vmem:[%s4] sm:$0x7]
        %v752 = vlaneseq
        %v753 = vshrl.u32 %v752, 7
        %v754 = vsub.s32 0, %v753
        %v755 = vrot.slane %v750, %v754
        %v756 = vlaneseq
        %v757 = vshrl.u32 %v756, 7
        %v758 = vsub.s32 1, %v757
        %v759 = vrot.slane %v750, %v758
        %v760 = vlaneseq
        %v761 = vshrl.u32 %v760, 7
        %v762 = vsub.s32 2, %v761
        %v763 = vrot.slane %v750, %v762
        %767 = vmatprep.subr.mxu0 %v748
        %768 = vmatpush1.msra.mxu0 %v747
        %769 = vmatprep.subr.mxu0 %v745
        %770 = vmatpush1.msra.mxu0 %v744
        %771 = vmatprep.subr.mxu0 %v742
        %772 = vmatpush1.msra.mxu0 %v741
        %773 = vmatprep.subr.mxu0 %v739
        %774 = vmatpush1.msra.mxu0 %v738
        %775 = vmatprep.subr.mxu0 %v736
        %776 = vmatpush1.msra.mxu0 %v735
        %777 = vmatprep.subr.mxu0 %v733
        %778 = vmatpush1.msra.mxu0 %v732
        %779 = vmatprep.subr.mxu0 %v730
        %780 = vmatpush1.msra.mxu0 %v729
        %781 = vmatprep.subr.mxu0 %v727
        %782 = vmatpush1.msra.mxu0 %v726
        %783 = vmatprep.subr.mxu0 %v724
        %784 = vmatpush1.msra.mxu0 %v723
        %785 = vmatprep.subr.mxu0 %v721
        %786 = vmatpush1.msra.mxu0 %v720
        %787 = vmatprep.subr.mxu0 %v718
        %788 = vmatpush1.msra.mxu0 %v717
        %789 = vmatprep.subr.mxu0 %v715
        %790 = vmatpush1.msra.mxu0 %v714
        %791 = vmatprep.subr.mxu0 %v712
        %792 = vmatpush1.msra.mxu0 %v711
        %793 = vmatprep.subr.mxu0 %v709
        %794 = vmatpush1.msra.mxu0 %v708
        %795 = vmatprep.subr.mxu0 %v706
        %796 = vmatpush1.msra.mxu0 %v705
        %797 = vmatprep.subr.mxu0 %v703
        %798 = vmatpush1.msra.mxu0 %v702
        %799 = vmatprep.subr.mxu0 0.0
        %800 = vmatpush2.msra.mxu0 0.0
        %801 = vmatprep.subr.mxu0 0.0
        %802 = vmatpush2.msra.mxu0 0.0
        %803 = vmatprep.subr.mxu0 0.0
        %804 = vmatpush2.msra.mxu0 0.0
        %805 = vmatprep.subr.mxu0 0.0
        %806 = vmatpush2.msra.mxu0 0.0
        %807 = vmatprep.subr.mxu0 0.0
        %808 = vmatpush2.msra.mxu0 0.0
        %809 = vmatprep.subr.mxu0 0.0
        %810 = vmatpush2.msra.mxu0 0.0
        %811 = vmatprep.subr.mxu0 0.0
        %812 = vmatpush2.msra.mxu0 0.0
        %813 = vmatprep.subr.mxu0 0.0
        %814 = vmatpush2.msra.mxu0 0.0
        %815 = vmatprep.subr.mxu0 0.0
        %816 = vmatpush2.msra.mxu0 0.0
        %817 = vmatprep.subr.mxu0 0.0
        %818 = vmatpush2.msra.mxu0 0.0
        %819 = vmatprep.subr.mxu0 0.0
        %820 = vmatpush2.msra.mxu0 0.0
        %821 = vmatprep.subr.mxu0 0.0
        %822 = vmatpush2.msra.mxu0 0.0
        %823 = vmatprep.subr.mxu0 0.0
        %824 = vmatpush2.msra.mxu0 0.0
        %825 = vmatprep.subr.mxu0 0.0
        %826 = vmatpush2.msra.mxu0 0.0
        %827 = vmatprep.subr.mxu0 0.0
        %828 = vmatpush2.msra.mxu0 0.0
        %829 = vmatprep.subr.mxu0 0.0
        %830 = vmatpush2.msra.mxu0 0.0
        %831 = vmatprep.mubr.f32.mxu0 0.0
        %832 = vmatmul.mubr.f32.gmra.mxu0 %v686
        %v833 = vpop.f32.mrf.mxu0
        %v834 = vadd.f32 %v755, %v833
        %v835 = vpop.f32.mrf.mxu0
        %v836 = vadd.f32 %v759, %v835
        %837 = vmatprep.mubr.f32.mxu0 0.0
        %838 = vmatmul.mubr.f32.gmra.mxu0 %v687
        %v839 = vpop.f32.mrf.mxu0
        %v840 = vadd.f32 %v755, %v839
        %v841 = vpop.f32.mrf.mxu0
        %v842 = vadd.f32 %v759, %v841
        %843 = vmatprep.mubr.f32.mxu0 0.0
        %844 = vmatmul.mubr.f32.gmra.mxu0 %v688
        %v845 = vpop.f32.mrf.mxu0
        %v846 = vadd.f32 %v755, %v845
        %v847 = vpop.f32.mrf.mxu0
        %v848 = vadd.f32 %v759, %v847
        %849 = vmatprep.mubr.f32.mxu0 0.0
        %850 = vmatmul.mubr.f32.gmra.mxu0 %v689
        %v851 = vpop.f32.mrf.mxu0
        %v852 = vadd.f32 %v755, %v851
        %v853 = vpop.f32.mrf.mxu0
        %v854 = vadd.f32 %v759, %v853
        %855 = vmatprep.mubr.f32.mxu0 0.0
        %856 = vmatmul.mubr.f32.gmra.mxu0 %v690
        %v857 = vpop.f32.mrf.mxu0
        %v858 = vadd.f32 %v755, %v857
        %v859 = vpop.f32.mrf.mxu0
        %v860 = vadd.f32 %v759, %v859
        %861 = vmatprep.mubr.f32.mxu0 0.0
        %862 = vmatmul.mubr.f32.gmra.mxu0 %v691
        %v863 = vpop.f32.mrf.mxu0
        %v864 = vadd.f32 %v755, %v863
        %v865 = vpop.f32.mrf.mxu0
        %v866 = vadd.f32 %v759, %v865
        %867 = vmatprep.mubr.f32.mxu0 0.0
        %868 = vmatmul.mubr.f32.gmra.mxu0 %v692
        %v869 = vpop.f32.mrf.mxu0
        %v870 = vadd.f32 %v755, %v869
        %v871 = vpop.f32.mrf.mxu0
        %v872 = vadd.f32 %v759, %v871
        %873 = vmatprep.mubr.f32.mxu0 0.0
        %874 = vmatmul.mubr.f32.gmra.mxu0 %v693
        %v875 = vpop.f32.mrf.mxu0
        %v876 = vadd.f32 %v755, %v875
        %v877 = vpop.f32.mrf.mxu0
        %v878 = vadd.f32 %v759, %v877
        %879 = vmatprep.mubr.f32.mxu0 0.0
        %880 = vmatmul.mubr.f32.gmra.mxu0 %v694
        %v881 = vpop.f32.mrf.mxu0
        %v882 = vadd.f32 %v755, %v881
        %v883 = vpop.f32.mrf.mxu0
        %v884 = vadd.f32 %v759, %v883
        %885 = vmatprep.mubr.f32.mxu0 0.0
        %886 = vmatmul.mubr.f32.gmra.mxu0 %v695
        %v887 = vpop.f32.mrf.mxu0
        %v888 = vadd.f32 %v755, %v887
        %v889 = vpop.f32.mrf.mxu0
        %v890 = vadd.f32 %v759, %v889
        %891 = vmatprep.mubr.f32.mxu0 0.0
        %892 = vmatmul.mubr.f32.gmra.mxu0 %v696
        %v893 = vpop.f32.mrf.mxu0
        %v894 = vadd.f32 %v755, %v893
        %v895 = vpop.f32.mrf.mxu0
        %v896 = vadd.f32 %v759, %v895
        %897 = vmatprep.mubr.f32.mxu0 0.0
        %898 = vmatmul.mubr.f32.gmra.mxu0 %v697
        %v899 = vpop.f32.mrf.mxu0
        %v900 = vadd.f32 %v755, %v899
        %v901 = vpop.f32.mrf.mxu0
        %v902 = vadd.f32 %v759, %v901
        %903 = vmatprep.mubr.f32.mxu0 0.0
        %904 = vmatmul.mubr.f32.gmra.mxu0 %v698
        %v905 = vpop.f32.mrf.mxu0
        %v906 = vadd.f32 %v755, %v905
        %v907 = vpop.f32.mrf.mxu0
        %v908 = vadd.f32 %v759, %v907
        %909 = vmatprep.mubr.f32.mxu0 0.0
        %910 = vmatmul.mubr.f32.gmra.mxu0 %v699
        %v911 = vpop.f32.mrf.mxu0
        %v912 = vadd.f32 %v755, %v911
        %v913 = vpop.f32.mrf.mxu0
        %v914 = vadd.f32 %v759, %v913
        %915 = vmatprep.mubr.f32.mxu0 0.0
        %916 = vmatmul.mubr.f32.gmra.mxu0 %v700
        %v917 = vpop.f32.mrf.mxu0
        %v918 = vadd.f32 %v755, %v917
        %v919 = vpop.f32.mrf.mxu0
        %v920 = vadd.f32 %v759, %v919
        %921 = vmatprep.mubr.f32.mxu0 0.0
        %922 = vmatmul.mubr.f32.gmra.mxu0 %v701
        %v923 = vpop.f32.mrf.mxu0
        %v924 = vadd.f32 %v755, %v923
        %v925 = vpop.f32.mrf.mxu0
        %v926 = vadd.f32 %v759, %v925
        %927 = vdwg.mxu0
        %928 = vmatprep.subr.mxu0 0.0
        %929 = vmatpush1.msra.mxu0 %v749
        %930 = vmatprep.subr.mxu0 0.0
        %931 = vmatpush1.msra.mxu0 %v746
        %932 = vmatprep.subr.mxu0 0.0
        %933 = vmatpush1.msra.mxu0 %v743
        %934 = vmatprep.subr.mxu0 0.0
        %935 = vmatpush1.msra.mxu0 %v740
        %936 = vmatprep.subr.mxu0 0.0
        %937 = vmatpush1.msra.mxu0 %v737
        %938 = vmatprep.subr.mxu0 0.0
        %939 = vmatpush1.msra.mxu0 %v734
        %940 = vmatprep.subr.mxu0 0.0
        %941 = vmatpush1.msra.mxu0 %v731
        %942 = vmatprep.subr.mxu0 0.0
        %943 = vmatpush1.msra.mxu0 %v728
        %944 = vmatprep.subr.mxu0 0.0
        %945 = vmatpush1.msra.mxu0 %v725
        %946 = vmatprep.subr.mxu0 0.0
        %947 = vmatpush1.msra.mxu0 %v722
        %948 = vmatprep.subr.mxu0 0.0
        %949 = vmatpush1.msra.mxu0 %v719
        %950 = vmatprep.subr.mxu0 0.0
        %951 = vmatpush1.msra.mxu0 %v716
        %952 = vmatprep.subr.mxu0 0.0
        %953 = vmatpush1.msra.mxu0 %v713
        %954 = vmatprep.subr.mxu0 0.0
        %955 = vmatpush1.msra.mxu0 %v710
        %956 = vmatprep.subr.mxu0 0.0
        %957 = vmatpush1.msra.mxu0 %v707
        %958 = vmatprep.subr.mxu0 0.0
        %959 = vmatpush1.msra.mxu0 %v704
        %960 = vmatprep.subr.mxu0 0.0
        %961 = vmatpush2.msra.mxu0 0.0
        %962 = vmatprep.subr.mxu0 0.0
        %963 = vmatpush2.msra.mxu0 0.0
        %964 = vmatprep.subr.mxu0 0.0
        %965 = vmatpush2.msra.mxu0 0.0
        %966 = vmatprep.subr.mxu0 0.0
        %967 = vmatpush2.msra.mxu0 0.0
        %968 = vmatprep.subr.mxu0 0.0
        %969 = vmatpush2.msra.mxu0 0.0
        %970 = vmatprep.subr.mxu0 0.0
        %971 = vmatpush2.msra.mxu0 0.0
        %972 = vmatprep.subr.mxu0 0.0
        %973 = vmatpush2.msra.mxu0 0.0
        %974 = vmatprep.subr.mxu0 0.0
        %975 = vmatpush2.msra.mxu0 0.0
        %976 = vmatprep.subr.mxu0 0.0
        %977 = vmatpush2.msra.mxu0 0.0
        %978 = vmatprep.subr.mxu0 0.0
        %979 = vmatpush2.msra.mxu0 0.0
        %980 = vmatprep.subr.mxu0 0.0
        %981 = vmatpush2.msra.mxu0 0.0
        %982 = vmatprep.subr.mxu0 0.0
        %983 = vmatpush2.msra.mxu0 0.0
        %984 = vmatprep.subr.mxu0 0.0
        %985 = vmatpush2.msra.mxu0 0.0
        %986 = vmatprep.subr.mxu0 0.0
        %987 = vmatpush2.msra.mxu0 0.0
        %988 = vmatprep.subr.mxu0 0.0
        %989 = vmatpush2.msra.mxu0 0.0
        %990 = vmatprep.subr.mxu0 0.0
        %991 = vmatpush2.msra.mxu0 0.0
        %992 = vmatprep.mubr.f32.mxu0 0.0
        %993 = vmatmul.mubr.f32.gmra.mxu0 %v686
        %v994 = vpop.f32.mrf.mxu0
        %v995 = vadd.f32 %v763, %v994
        %v996 = vpop.f32.mrf.mxu0
        %997 = vmatprep.mubr.f32.mxu0 0.0
        %998 = vmatmul.mubr.f32.gmra.mxu0 %v687
        %v999 = vpop.f32.mrf.mxu0
        %v1000 = vadd.f32 %v763, %v999
        %v1001 = vpop.f32.mrf.mxu0
        %1002 = vmatprep.mubr.f32.mxu0 0.0
        %1003 = vmatmul.mubr.f32.gmra.mxu0 %v688
        %v1004 = vpop.f32.mrf.mxu0
        %v1005 = vadd.f32 %v763, %v1004
        %v1006 = vpop.f32.mrf.mxu0
        %1007 = vmatprep.mubr.f32.mxu0 0.0
        %1008 = vmatmul.mubr.f32.gmra.mxu0 %v689
        %v1009 = vpop.f32.mrf.mxu0
        %v1010 = vadd.f32 %v763, %v1009
        %v1011 = vpop.f32.mrf.mxu0
        %1012 = vmatprep.mubr.f32.mxu0 0.0
        %1013 = vmatmul.mubr.f32.gmra.mxu0 %v690
        %v1014 = vpop.f32.mrf.mxu0
        %v1015 = vadd.f32 %v763, %v1014
        %v1016 = vpop.f32.mrf.mxu0
        %1017 = vmatprep.mubr.f32.mxu0 0.0
        %1018 = vmatmul.mubr.f32.gmra.mxu0 %v691
        %v1019 = vpop.f32.mrf.mxu0
        %v1020 = vadd.f32 %v763, %v1019
        %v1021 = vpop.f32.mrf.mxu0
        %1022 = vmatprep.mubr.f32.mxu0 0.0
        %1023 = vmatmul.mubr.f32.gmra.mxu0 %v692
        %v1024 = vpop.f32.mrf.mxu0
        %v1025 = vadd.f32 %v763, %v1024
        %v1026 = vpop.f32.mrf.mxu0
        %1027 = vmatprep.mubr.f32.mxu0 0.0
        %1028 = vmatmul.mubr.f32.gmra.mxu0 %v693
        %v1029 = vpop.f32.mrf.mxu0
        %v1030 = vadd.f32 %v763, %v1029
        %v1031 = vpop.f32.mrf.mxu0
        %1032 = vmatprep.mubr.f32.mxu0 0.0
        %1033 = vmatmul.mubr.f32.gmra.mxu0 %v694
        %v1034 = vpop.f32.mrf.mxu0
        %v1035 = vadd.f32 %v763, %v1034
        %v1036 = vpop.f32.mrf.mxu0
        %1037 = vmatprep.mubr.f32.mxu0 0.0
        %1038 = vmatmul.mubr.f32.gmra.mxu0 %v695
        %v1039 = vpop.f32.mrf.mxu0
        %v1040 = vadd.f32 %v763, %v1039
        %v1041 = vpop.f32.mrf.mxu0
        %1042 = vmatprep.mubr.f32.mxu0 0.0
        %1043 = vmatmul.mubr.f32.gmra.mxu0 %v696
        %v1044 = vpop.f32.mrf.mxu0
        %v1045 = vadd.f32 %v763, %v1044
        %v1046 = vpop.f32.mrf.mxu0
        %1047 = vmatprep.mubr.f32.mxu0 0.0
        %1048 = vmatmul.mubr.f32.gmra.mxu0 %v697
        %v1049 = vpop.f32.mrf.mxu0
        %v1050 = vadd.f32 %v763, %v1049
        %v1051 = vpop.f32.mrf.mxu0
        %1052 = vmatprep.mubr.f32.mxu0 0.0
        %1053 = vmatmul.mubr.f32.gmra.mxu0 %v698
        %v1054 = vpop.f32.mrf.mxu0
        %v1055 = vadd.f32 %v763, %v1054
        %v1056 = vpop.f32.mrf.mxu0
        %1057 = vmatprep.mubr.f32.mxu0 0.0
        %1058 = vmatmul.mubr.f32.gmra.mxu0 %v699
        %v1059 = vpop.f32.mrf.mxu0
        %v1060 = vadd.f32 %v763, %v1059
        %v1061 = vpop.f32.mrf.mxu0
        %1062 = vmatprep.mubr.f32.mxu0 0.0
        %1063 = vmatmul.mubr.f32.gmra.mxu0 %v700
        %v1064 = vpop.f32.mrf.mxu0
        %v1065 = vadd.f32 %v763, %v1064
        %v1066 = vpop.f32.mrf.mxu0
        %1067 = vmatprep.mubr.f32.mxu0 0.0
        %1068 = vmatmul.mubr.f32.gmra.mxu0 %v701
        %v1069 = vpop.f32.mrf.mxu0
        %v1070 = vadd.f32 %v763, %v1069
        %v1071 = vpop.f32.mrf.mxu0
        %1072 = vdwg.mxu0
        %v1073 = vld [vmem:[%s457] sm:$0xff]
        %v1074 = vld [vmem:[%s457 + $0x8] sm:$0xff]
        %v1075 = vld [vmem:[%s457 + $0x10] sm:$0xff]
        %v1076 = vld [vmem:[%s457 + $0x18] sm:$0xff]
        %v1077 = vld [vmem:[%s457 + $0x20] sm:$0xff]
        %v1078 = vld [vmem:[%s457 + $0x28] sm:$0xff]
        %v1079 = vld [vmem:[%s457 + $0x30] sm:$0xff]
        %v1080 = vld [vmem:[%s457 + $0x38] sm:$0xff]
        %v1081 = vld [vmem:[%s457 + $0x40] sm:$0xff]
        %v1082 = vld [vmem:[%s457 + $0x48] sm:$0xff]
        %v1083 = vld [vmem:[%s457 + $0x50] sm:$0xff]
        %v1084 = vld [vmem:[%s457 + $0x58] sm:$0xff]
        %v1085 = vld [vmem:[%s457 + $0x60] sm:$0xff]
        %v1086 = vld [vmem:[%s457 + $0x68] sm:$0xff]
        %v1087 = vld [vmem:[%s457 + $0x70] sm:$0xff]
        %v1088 = vld [vmem:[%s457 + $0x78] sm:$0xff]
        %v1089 = vld [vmem:[%s461] sm:$0x1]
        %1090 = vset.pattern.permute.xlu0 0
        %1091 = vperm.xlu0 %1090, %v1073
        %v1092 = vpop.permute.xlu0 %1091
        %1093 = vset.pattern.permute.xlu0 0
        %1094 = vperm.xlu0 %1093, %v1074
        %v1095 = vpop.permute.xlu0 %1094
        %1096 = vset.pattern.permute.xlu0 0
        %1097 = vperm.xlu0 %1096, %v1075
        %v1098 = vpop.permute.xlu0 %1097
        %1099 = vset.pattern.permute.xlu0 0
        %1100 = vperm.xlu0 %1099, %v1076
        %v1101 = vpop.permute.xlu0 %1100
        %1102 = vset.pattern.permute.xlu0 0
        %1103 = vperm.xlu0 %1102, %v1077
        %v1104 = vpop.permute.xlu0 %1103
        %1105 = vset.pattern.permute.xlu0 0
        %1106 = vperm.xlu0 %1105, %v1078
        %v1107 = vpop.permute.xlu0 %1106
        %1108 = vset.pattern.permute.xlu0 0
        %1109 = vperm.xlu0 %1108, %v1079
        %v1110 = vpop.permute.xlu0 %1109
        %1111 = vset.pattern.permute.xlu0 0
        %1112 = vperm.xlu0 %1111, %v1080
        %v1113 = vpop.permute.xlu0 %1112
        %1114 = vset.pattern.permute.xlu0 0
        %1115 = vperm.xlu0 %1114, %v1081
        %v1116 = vpop.permute.xlu0 %1115
        %1117 = vset.pattern.permute.xlu0 0
        %1118 = vperm.xlu0 %1117, %v1082
        %v1119 = vpop.permute.xlu0 %1118
        %1120 = vset.pattern.permute.xlu0 0
        %1121 = vperm.xlu0 %1120, %v1083
        %v1122 = vpop.permute.xlu0 %1121
        %1123 = vset.pattern.permute.xlu0 0
        %1124 = vperm.xlu0 %1123, %v1084
        %v1125 = vpop.permute.xlu0 %1124
        %1126 = vset.pattern.permute.xlu0 0
        %1127 = vperm.xlu0 %1126, %v1085
        %v1128 = vpop.permute.xlu0 %1127
        %1129 = vset.pattern.permute.xlu0 0
        %1130 = vperm.xlu0 %1129, %v1086
        %v1131 = vpop.permute.xlu0 %1130
        %1132 = vset.pattern.permute.xlu0 0
        %1133 = vperm.xlu0 %1132, %v1087
        %v1134 = vpop.permute.xlu0 %1133
        %1135 = vset.pattern.permute.xlu0 0
        %1136 = vperm.xlu0 %1135, %v1088
        %v1137 = vpop.permute.xlu0 %1136
        %v1138 = vlaneseq
        %v1139 = vshrl.u32 %v1138, 7
        %v1140 = vsub.s32 0, %v1139
        %v1141 = vrot.slane %v1089, %v1140
        %vm1142 = vcmp.eq.s32.totalorder %v1092, %v1141
        %vm1143 = vcmp.eq.s32.totalorder %v1095, %v1141
        %vm1144 = vcmp.eq.s32.totalorder %v1098, %v1141
        %vm1145 = vcmp.eq.s32.totalorder %v1101, %v1141
        %vm1146 = vcmp.eq.s32.totalorder %v1104, %v1141
        %vm1147 = vcmp.eq.s32.totalorder %v1107, %v1141
        %vm1148 = vcmp.eq.s32.totalorder %v1110, %v1141
        %vm1149 = vcmp.eq.s32.totalorder %v1113, %v1141
        %vm1150 = vcmp.eq.s32.totalorder %v1116, %v1141
        %vm1151 = vcmp.eq.s32.totalorder %v1119, %v1141
        %vm1152 = vcmp.eq.s32.totalorder %v1122, %v1141
        %vm1153 = vcmp.eq.s32.totalorder %v1125, %v1141
        %vm1154 = vcmp.eq.s32.totalorder %v1128, %v1141
        %vm1155 = vcmp.eq.s32.totalorder %v1131, %v1141
        %vm1156 = vcmp.eq.s32.totalorder %v1134, %v1141
        %vm1157 = vcmp.eq.s32.totalorder %v1137, %v1141
        %v1158 = vsel %vm1142, 0.0, -1e+09
        %v1159 = vsel %vm1143, 0.0, -1e+09
        %v1160 = vsel %vm1144, 0.0, -1e+09
        %v1161 = vsel %vm1145, 0.0, -1e+09
        %v1162 = vsel %vm1146, 0.0, -1e+09
        %v1163 = vsel %vm1147, 0.0, -1e+09
        %v1164 = vsel %vm1148, 0.0, -1e+09
        %v1165 = vsel %vm1149, 0.0, -1e+09
        %v1166 = vsel %vm1150, 0.0, -1e+09
        %v1167 = vsel %vm1151, 0.0, -1e+09
        %v1168 = vsel %vm1152, 0.0, -1e+09
        %v1169 = vsel %vm1153, 0.0, -1e+09
        %v1170 = vsel %vm1154, 0.0, -1e+09
        %v1171 = vsel %vm1155, 0.0, -1e+09
        %v1172 = vsel %vm1156, 0.0, -1e+09
        %v1173 = vsel %vm1157, 0.0, -1e+09
        %v1174 = vld [vmem:[#allocation7] sm:$0xff]
        %v1175 = vld [vmem:[#allocation7 + $0x8] sm:$0xff]
        %v1176 = vld [vmem:[#allocation7 + $0x10] sm:$0xff]
        %v1177 = vld [vmem:[#allocation7 + $0x18] sm:$0xff]
        %v1178 = vld [vmem:[#allocation7 + $0x20] sm:$0xff]
        %v1179 = vld [vmem:[#allocation7 + $0x28] sm:$0xff]
        %v1180 = vld [vmem:[#allocation7 + $0x30] sm:$0xff]
        %v1181 = vld [vmem:[#allocation7 + $0x38] sm:$0xff]
        %v1182 = vld [vmem:[#allocation7 + $0x40] sm:$0xff]
        %v1183 = vld [vmem:[#allocation7 + $0x48] sm:$0xff]
        %v1184 = vld [vmem:[#allocation7 + $0x50] sm:$0xff]
        %v1185 = vld [vmem:[#allocation7 + $0x58] sm:$0xff]
        %v1186 = vld [vmem:[#allocation7 + $0x60] sm:$0xff]
        %v1187 = vld [vmem:[#allocation7 + $0x68] sm:$0xff]
        %v1188 = vld [vmem:[#allocation7 + $0x70] sm:$0xff]
        %v1189 = vld [vmem:[#allocation7 + $0x78] sm:$0xff]
        %vm1190 = vcmask 261120
        %v1192 = vsel %vm1190, %v834, 0
        %v1195 = vsel %vm1190, %v840, 0
        %v1198 = vsel %vm1190, %v846, 0
        %v1201 = vsel %vm1190, %v852, 0
        %v1204 = vsel %vm1190, %v858, 0
        %v1207 = vsel %vm1190, %v864, 0
        %v1210 = vsel %vm1190, %v870, 0
        %v1213 = vsel %vm1190, %v876, 0
        %v1216 = vsel %vm1190, %v882, 0
        %v1219 = vsel %vm1190, %v888, 0
        %v1222 = vsel %vm1190, %v894, 0
        %v1225 = vsel %vm1190, %v900, 0
        %v1228 = vsel %vm1190, %v906, 0
        %v1231 = vsel %vm1190, %v912, 0
        %v1234 = vsel %vm1190, %v918, 0
        %v1237 = vsel %vm1190, %v924, 0
        %v1240 = vsel %vm1190, %v836, 0
        %v1243 = vsel %vm1190, %v842, 0
        %v1246 = vsel %vm1190, %v848, 0
        %v1249 = vsel %vm1190, %v854, 0
        %v1252 = vsel %vm1190, %v860, 0
        %v1255 = vsel %vm1190, %v866, 0
        %v1258 = vsel %vm1190, %v872, 0
        %v1261 = vsel %vm1190, %v878, 0
        %v1264 = vsel %vm1190, %v884, 0
        %v1267 = vsel %vm1190, %v890, 0
        %v1270 = vsel %vm1190, %v896, 0
        %v1273 = vsel %vm1190, %v902, 0
        %v1276 = vsel %vm1190, %v908, 0
        %v1279 = vsel %vm1190, %v914, 0
        %v1282 = vsel %vm1190, %v920, 0
        %v1285 = vsel %vm1190, %v926, 0
        %1287 = vmatprep.subr.mxu0 0.0
        %1288 = vmatpush1.xpose.msra.mxu0 %v1285
        %1289 = vmatprep.subr.mxu0 0.0
        %1290 = vmatpush1.xpose.msra.mxu0 %v1282
        %1291 = vmatprep.subr.mxu0 0.0
        %1292 = vmatpush1.xpose.msra.mxu0 %v1279
        %1293 = vmatprep.subr.mxu0 0.0
        %1294 = vmatpush1.xpose.msra.mxu0 %v1276
        %1295 = vmatprep.subr.mxu0 0.0
        %1296 = vmatpush1.xpose.msra.mxu0 %v1273
        %1297 = vmatprep.subr.mxu0 0.0
        %1298 = vmatpush1.xpose.msra.mxu0 %v1270
        %1299 = vmatprep.subr.mxu0 0.0
        %1300 = vmatpush1.xpose.msra.mxu0 %v1267
        %1301 = vmatprep.subr.mxu0 0.0
        %1302 = vmatpush1.xpose.msra.mxu0 %v1264
        %1303 = vmatprep.subr.mxu0 0.0
        %1304 = vmatpush1.xpose.msra.mxu0 %v1261
        %1305 = vmatprep.subr.mxu0 0.0
        %1306 = vmatpush1.xpose.msra.mxu0 %v1258
        %1307 = vmatprep.subr.mxu0 0.0
        %1308 = vmatpush1.xpose.msra.mxu0 %v1255
        %1309 = vmatprep.subr.mxu0 0.0
        %1310 = vmatpush1.xpose.msra.mxu0 %v1252
        %1311 = vmatprep.subr.mxu0 0.0
        %1312 = vmatpush1.xpose.msra.mxu0 %v1249
        %1313 = vmatprep.subr.mxu0 0.0
        %1314 = vmatpush1.xpose.msra.mxu0 %v1246
        %1315 = vmatprep.subr.mxu0 0.0
        %1316 = vmatpush1.xpose.msra.mxu0 %v1243
        %1317 = vmatprep.subr.mxu0 0.0
        %1318 = vmatpush1.xpose.msra.mxu0 %v1240
        %1319 = vmatprep.subr.mxu0 0.0
        %1320 = vmatpush2.xpose.msra.mxu0 0.0
        %1321 = vmatprep.subr.mxu0 0.0
        %1322 = vmatpush2.xpose.msra.mxu0 0.0
        %1323 = vmatprep.subr.mxu0 0.0
        %1324 = vmatpush2.xpose.msra.mxu0 0.0
        %1325 = vmatprep.subr.mxu0 0.0
        %1326 = vmatpush2.xpose.msra.mxu0 0.0
        %1327 = vmatprep.subr.mxu0 0.0
        %1328 = vmatpush2.xpose.msra.mxu0 0.0
        %1329 = vmatprep.subr.mxu0 0.0
        %1330 = vmatpush2.xpose.msra.mxu0 0.0
        %1331 = vmatprep.subr.mxu0 0.0
        %1332 = vmatpush2.xpose.msra.mxu0 0.0
        %1333 = vmatprep.subr.mxu0 0.0
        %1334 = vmatpush2.xpose.msra.mxu0 0.0
        %1335 = vmatprep.subr.mxu0 0.0
        %1336 = vmatpush2.xpose.msra.mxu0 0.0
        %1337 = vmatprep.subr.mxu0 0.0
        %1338 = vmatpush2.xpose.msra.mxu0 0.0
        %1339 = vmatprep.subr.mxu0 0.0
        %1340 = vmatpush2.xpose.msra.mxu0 0.0
        %1341 = vmatprep.subr.mxu0 0.0
        %1342 = vmatpush2.xpose.msra.mxu0 0.0
        %1343 = vmatprep.subr.mxu0 0.0
        %1344 = vmatpush2.xpose.msra.mxu0 0.0
        %1345 = vmatprep.subr.mxu0 0.0
        %1346 = vmatpush2.xpose.msra.mxu0 0.0
        %1347 = vmatprep.subr.mxu0 0.0
        %1348 = vmatpush2.xpose.msra.mxu0 0.0
        %1349 = vmatprep.subr.mxu0 0.0
        %1350 = vmatpush2.xpose.msra.mxu0 0.0
        %1351 = vmatprep.mubr.f32.mxu0 0.0
        %1352 = vmatmul.mubr.f32.gmra.mxu0 %v1192
        %v1353 = vpop.f32.mrf.mxu0
        %v1354 = vadd.f32 %v1174, %v1353
        %v1355 = vpop.f32.mrf.mxu0
        %1356 = vmatprep.mubr.f32.mxu0 0.0
        %1357 = vmatmul.mubr.f32.gmra.mxu0 %v1195
        %v1358 = vpop.f32.mrf.mxu0
        %v1359 = vadd.f32 %v1175, %v1358
        %v1360 = vpop.f32.mrf.mxu0
        %1361 = vmatprep.mubr.f32.mxu0 0.0
        %1362 = vmatmul.mubr.f32.gmra.mxu0 %v1198
        %v1363 = vpop.f32.mrf.mxu0
        %v1364 = vadd.f32 %v1176, %v1363
        %v1365 = vpop.f32.mrf.mxu0
        %1366 = vmatprep.mubr.f32.mxu0 0.0
        %1367 = vmatmul.mubr.f32.gmra.mxu0 %v1201
        %v1368 = vpop.f32.mrf.mxu0
        %v1369 = vadd.f32 %v1177, %v1368
        %v1370 = vpop.f32.mrf.mxu0
        %1371 = vmatprep.mubr.f32.mxu0 0.0
        %1372 = vmatmul.mubr.f32.gmra.mxu0 %v1204
        %v1373 = vpop.f32.mrf.mxu0
        %v1374 = vadd.f32 %v1178, %v1373
        %v1375 = vpop.f32.mrf.mxu0
        %1376 = vmatprep.mubr.f32.mxu0 0.0
        %1377 = vmatmul.mubr.f32.gmra.mxu0 %v1207
        %v1378 = vpop.f32.mrf.mxu0
        %v1379 = vadd.f32 %v1179, %v1378
        %v1380 = vpop.f32.mrf.mxu0
        %1381 = vmatprep.mubr.f32.mxu0 0.0
        %1382 = vmatmul.mubr.f32.gmra.mxu0 %v1210
        %v1383 = vpop.f32.mrf.mxu0
        %v1384 = vadd.f32 %v1180, %v1383
        %v1385 = vpop.f32.mrf.mxu0
        %1386 = vmatprep.mubr.f32.mxu0 0.0
        %1387 = vmatmul.mubr.f32.gmra.mxu0 %v1213
        %v1388 = vpop.f32.mrf.mxu0
        %v1389 = vadd.f32 %v1181, %v1388
        %v1390 = vpop.f32.mrf.mxu0
        %1391 = vmatprep.mubr.f32.mxu0 0.0
        %1392 = vmatmul.mubr.f32.gmra.mxu0 %v1216
        %v1393 = vpop.f32.mrf.mxu0
        %v1394 = vadd.f32 %v1182, %v1393
        %v1395 = vpop.f32.mrf.mxu0
        %1396 = vmatprep.mubr.f32.mxu0 0.0
        %1397 = vmatmul.mubr.f32.gmra.mxu0 %v1219
        %v1398 = vpop.f32.mrf.mxu0
        %v1399 = vadd.f32 %v1183, %v1398
        %v1400 = vpop.f32.mrf.mxu0
        %1401 = vmatprep.mubr.f32.mxu0 0.0
        %1402 = vmatmul.mubr.f32.gmra.mxu0 %v1222
        %v1403 = vpop.f32.mrf.mxu0
        %v1404 = vadd.f32 %v1184, %v1403
        %v1405 = vpop.f32.mrf.mxu0
        %1406 = vmatprep.mubr.f32.mxu0 0.0
        %1407 = vmatmul.mubr.f32.gmra.mxu0 %v1225
        %v1408 = vpop.f32.mrf.mxu0
        %v1409 = vadd.f32 %v1185, %v1408
        %v1410 = vpop.f32.mrf.mxu0
        %1411 = vmatprep.mubr.f32.mxu0 0.0
        %1412 = vmatmul.mubr.f32.gmra.mxu0 %v1228
        %v1413 = vpop.f32.mrf.mxu0
        %v1414 = vadd.f32 %v1186, %v1413
        %v1415 = vpop.f32.mrf.mxu0
        %1416 = vmatprep.mubr.f32.mxu0 0.0
        %1417 = vmatmul.mubr.f32.gmra.mxu0 %v1231
        %v1418 = vpop.f32.mrf.mxu0
        %v1419 = vadd.f32 %v1187, %v1418
        %v1420 = vpop.f32.mrf.mxu0
        %1421 = vmatprep.mubr.f32.mxu0 0.0
        %1422 = vmatmul.mubr.f32.gmra.mxu0 %v1234
        %v1423 = vpop.f32.mrf.mxu0
        %v1424 = vadd.f32 %v1188, %v1423
        %v1425 = vpop.f32.mrf.mxu0
        %1426 = vmatprep.mubr.f32.mxu0 0.0
        %1427 = vmatmul.mubr.f32.gmra.mxu0 %v1237
        %v1428 = vpop.f32.mrf.mxu0
        %v1429 = vadd.f32 %v1189, %v1428
        %v1430 = vpop.f32.mrf.mxu0
        %1431 = vdwg.mxu0
        %v1432 = vadd.f32 %v1354, %v1158
        %v1433 = vadd.f32 %v1359, %v1159
        %v1434 = vadd.f32 %v1364, %v1160
        %v1435 = vadd.f32 %v1369, %v1161
        %v1436 = vadd.f32 %v1374, %v1162
        %v1437 = vadd.f32 %v1379, %v1163
        %v1438 = vadd.f32 %v1384, %v1164
        %v1439 = vadd.f32 %v1389, %v1165
        %v1440 = vadd.f32 %v1394, %v1166
        %v1441 = vadd.f32 %v1399, %v1167
        %v1442 = vadd.f32 %v1404, %v1168
        %v1443 = vadd.f32 %v1409, %v1169
        %v1444 = vadd.f32 %v1414, %v1170
        %v1445 = vadd.f32 %v1419, %v1171
        %v1446 = vadd.f32 %v1424, %v1172
        %v1447 = vadd.f32 %v1429, %v1173
        %1448 = vmax.xlane.f32.xlu0 %v1432
        %v1449 = vpop.xlane.xlu0 %1448
        %1450 = vmax.xlane.f32.xlu0 %v1433
        %v1451 = vpop.xlane.xlu0 %1450
        %1452 = vmax.xlane.f32.xlu0 %v1434
        %v1453 = vpop.xlane.xlu0 %1452
        %1454 = vmax.xlane.f32.xlu0 %v1435
        %v1455 = vpop.xlane.xlu0 %1454
        %1456 = vmax.xlane.f32.xlu0 %v1436
        %v1457 = vpop.xlane.xlu0 %1456
        %1458 = vmax.xlane.f32.xlu0 %v1437
        %v1459 = vpop.xlane.xlu0 %1458
        %1460 = vmax.xlane.f32.xlu0 %v1438
        %v1461 = vpop.xlane.xlu0 %1460
        %1462 = vmax.xlane.f32.xlu0 %v1439
        %v1463 = vpop.xlane.xlu0 %1462
        %1464 = vmax.xlane.f32.xlu0 %v1440
        %v1465 = vpop.xlane.xlu0 %1464
        %1466 = vmax.xlane.f32.xlu0 %v1441
        %v1467 = vpop.xlane.xlu0 %1466
        %1468 = vmax.xlane.f32.xlu0 %v1442
        %v1469 = vpop.xlane.xlu0 %1468
        %1470 = vmax.xlane.f32.xlu0 %v1443
        %v1471 = vpop.xlane.xlu0 %1470
        %1472 = vmax.xlane.f32.xlu0 %v1444
        %v1473 = vpop.xlane.xlu0 %1472
        %1474 = vmax.xlane.f32.xlu0 %v1445
        %v1475 = vpop.xlane.xlu0 %1474
        %1476 = vmax.xlane.f32.xlu0 %v1446
        %v1477 = vpop.xlane.xlu0 %1476
        %1478 = vmax.xlane.f32.xlu0 %v1447
        %v1479 = vpop.xlane.xlu0 %1478
        %v1480 = vsub.f32 %v1432, %v1449
        %v1481 = vsub.f32 %v1433, %v1451
        %v1482 = vsub.f32 %v1434, %v1453
        %v1483 = vsub.f32 %v1435, %v1455
        %v1484 = vsub.f32 %v1436, %v1457
        %v1485 = vsub.f32 %v1437, %v1459
        %v1486 = vsub.f32 %v1438, %v1461
        %v1487 = vsub.f32 %v1439, %v1463
        %v1488 = vsub.f32 %v1440, %v1465
        %v1489 = vsub.f32 %v1441, %v1467
        %v1490 = vsub.f32 %v1442, %v1469
        %v1491 = vsub.f32 %v1443, %v1471
        %v1492 = vsub.f32 %v1444, %v1473
        %v1493 = vsub.f32 %v1445, %v1475
        %v1494 = vsub.f32 %v1446, %v1477
        %v1495 = vsub.f32 %v1447, %v1479
        %v1496 = vmul.f32 %v1480, 1.442695
        %v1497 = vpow.pop %v1496
        %v1498 = vmul.f32 %v1481, 1.442695
        %v1499 = vpow.pop %v1498
        %v1500 = vmul.f32 %v1482, 1.442695
        %v1501 = vpow.pop %v1500
        %v1502 = vmul.f32 %v1483, 1.442695
        %v1503 = vpow.pop %v1502
        %v1504 = vmul.f32 %v1484, 1.442695
        %v1505 = vpow.pop %v1504
        %v1506 = vmul.f32 %v1485, 1.442695
        %v1507 = vpow.pop %v1506
        %v1508 = vmul.f32 %v1486, 1.442695
        %v1509 = vpow.pop %v1508
        %v1510 = vmul.f32 %v1487, 1.442695
        %v1511 = vpow.pop %v1510
        %v1512 = vmul.f32 %v1488, 1.442695
        %v1513 = vpow.pop %v1512
        %v1514 = vmul.f32 %v1489, 1.442695
        %v1515 = vpow.pop %v1514
        %v1516 = vmul.f32 %v1490, 1.442695
        %v1517 = vpow.pop %v1516
        %v1518 = vmul.f32 %v1491, 1.442695
        %v1519 = vpow.pop %v1518
        %v1520 = vmul.f32 %v1492, 1.442695
        %v1521 = vpow.pop %v1520
        %v1522 = vmul.f32 %v1493, 1.442695
        %v1523 = vpow.pop %v1522
        %v1524 = vmul.f32 %v1494, 1.442695
        %v1525 = vpow.pop %v1524
        %v1526 = vmul.f32 %v1495, 1.442695
        %v1527 = vpow.pop %v1526
        %1528 = vadd.xlane.f32.xlu0 %v1497
        %v1529 = vpop.xlane.xlu0 %1528
        %1530 = vadd.xlane.f32.xlu0 %v1499
        %v1531 = vpop.xlane.xlu0 %1530
        %1532 = vadd.xlane.f32.xlu0 %v1501
        %v1533 = vpop.xlane.xlu0 %1532
        %1534 = vadd.xlane.f32.xlu0 %v1503
        %v1535 = vpop.xlane.xlu0 %1534
        %1536 = vadd.xlane.f32.xlu0 %v1505
        %v1537 = vpop.xlane.xlu0 %1536
        %1538 = vadd.xlane.f32.xlu0 %v1507
        %v1539 = vpop.xlane.xlu0 %1538
        %1540 = vadd.xlane.f32.xlu0 %v1509
        %v1541 = vpop.xlane.xlu0 %1540
        %1542 = vadd.xlane.f32.xlu0 %v1511
        %v1543 = vpop.xlane.xlu0 %1542
        %1544 = vadd.xlane.f32.xlu0 %v1513
        %v1545 = vpop.xlane.xlu0 %1544
        %1546 = vadd.xlane.f32.xlu0 %v1515
        %v1547 = vpop.xlane.xlu0 %1546
        %1548 = vadd.xlane.f32.xlu0 %v1517
        %v1549 = vpop.xlane.xlu0 %1548
        %1550 = vadd.xlane.f32.xlu0 %v1519
        %v1551 = vpop.xlane.xlu0 %1550
        %1552 = vadd.xlane.f32.xlu0 %v1521
        %v1553 = vpop.xlane.xlu0 %1552
        %1554 = vadd.xlane.f32.xlu0 %v1523
        %v1555 = vpop.xlane.xlu0 %1554
        %1556 = vadd.xlane.f32.xlu0 %v1525
        %v1557 = vpop.xlane.xlu0 %1556
        %1558 = vadd.xlane.f32.xlu0 %v1527
        %v1559 = vpop.xlane.xlu0 %1558
        %v1560 = vrcp.pop %v1529
        %v1561 = vrcp.pop %v1531
        %v1562 = vrcp.pop %v1533
        %v1563 = vrcp.pop %v1535
        %v1564 = vrcp.pop %v1537
        %v1565 = vrcp.pop %v1539
        %v1566 = vrcp.pop %v1541
        %v1567 = vrcp.pop %v1543
        %v1568 = vrcp.pop %v1545
        %v1569 = vrcp.pop %v1547
        %v1570 = vrcp.pop %v1549
        %v1571 = vrcp.pop %v1551
        %v1572 = vrcp.pop %v1553
        %v1573 = vrcp.pop %v1555
        %v1574 = vrcp.pop %v1557
        %v1575 = vrcp.pop %v1559
        %v1576 = vmul.f32 %v1497, %v1560
        %v1577 = vmul.f32 %v1499, %v1561
        %v1578 = vmul.f32 %v1501, %v1562
        %v1579 = vmul.f32 %v1503, %v1563
        %v1580 = vmul.f32 %v1505, %v1564
        %v1581 = vmul.f32 %v1507, %v1565
        %v1582 = vmul.f32 %v1509, %v1566
        %v1583 = vmul.f32 %v1511, %v1567
        %v1584 = vmul.f32 %v1513, %v1568
        %v1585 = vmul.f32 %v1515, %v1569
        %v1586 = vmul.f32 %v1517, %v1570
        %v1587 = vmul.f32 %v1519, %v1571
        %v1588 = vmul.f32 %v1521, %v1572
        %v1589 = vmul.f32 %v1523, %v1573
        %v1590 = vmul.f32 %v1525, %v1574
        %v1591 = vmul.f32 %v1527, %v1575
        %1592 = vmatprep.subr.mxu0 0.0
        %1593 = vmatpush1.msra.mxu0 %v1070
        %1594 = vmatprep.subr.mxu0 0.0
        %1595 = vmatpush1.msra.mxu0 %v1065
        %1596 = vmatprep.subr.mxu0 0.0
        %1597 = vmatpush1.msra.mxu0 %v1060
        %1598 = vmatprep.subr.mxu0 0.0
        %1599 = vmatpush1.msra.mxu0 %v1055
        %1600 = vmatprep.subr.mxu0 0.0
        %1601 = vmatpush1.msra.mxu0 %v1050
        %1602 = vmatprep.subr.mxu0 0.0
        %1603 = vmatpush1.msra.mxu0 %v1045
        %1604 = vmatprep.subr.mxu0 0.0
        %1605 = vmatpush1.msra.mxu0 %v1040
        %1606 = vmatprep.subr.mxu0 0.0
        %1607 = vmatpush1.msra.mxu0 %v1035
        %1608 = vmatprep.subr.mxu0 0.0
        %1609 = vmatpush1.msra.mxu0 %v1030
        %1610 = vmatprep.subr.mxu0 0.0
        %1611 = vmatpush1.msra.mxu0 %v1025
        %1612 = vmatprep.subr.mxu0 0.0
        %1613 = vmatpush1.msra.mxu0 %v1020
        %1614 = vmatprep.subr.mxu0 0.0
        %1615 = vmatpush1.msra.mxu0 %v1015
        %1616 = vmatprep.subr.mxu0 0.0
        %1617 = vmatpush1.msra.mxu0 %v1010
        %1618 = vmatprep.subr.mxu0 0.0
        %1619 = vmatpush1.msra.mxu0 %v1005
        %1620 = vmatprep.subr.mxu0 0.0
        %1621 = vmatpush1.msra.mxu0 %v1000
        %1622 = vmatprep.subr.mxu0 0.0
        %1623 = vmatpush1.msra.mxu0 %v995
        %1624 = vmatprep.subr.mxu0 0.0
        %1625 = vmatpush2.msra.mxu0 0.0
        %1626 = vmatprep.subr.mxu0 0.0
        %1627 = vmatpush2.msra.mxu0 0.0
        %1628 = vmatprep.subr.mxu0 0.0
        %1629 = vmatpush2.msra.mxu0 0.0
        %1630 = vmatprep.subr.mxu0 0.0
        %1631 = vmatpush2.msra.mxu0 0.0
        %1632 = vmatprep.subr.mxu0 0.0
        %1633 = vmatpush2.msra.mxu0 0.0
        %1634 = vmatprep.subr.mxu0 0.0
        %1635 = vmatpush2.msra.mxu0 0.0
        %1636 = vmatprep.subr.mxu0 0.0
        %1637 = vmatpush2.msra.mxu0 0.0
        %1638 = vmatprep.subr.mxu0 0.0
        %1639 = vmatpush2.msra.mxu0 0.0
        %1640 = vmatprep.subr.mxu0 0.0
        %1641 = vmatpush2.msra.mxu0 0.0
        %1642 = vmatprep.subr.mxu0 0.0
        %1643 = vmatpush2.msra.mxu0 0.0
        %1644 = vmatprep.subr.mxu0 0.0
        %1645 = vmatpush2.msra.mxu0 0.0
        %1646 = vmatprep.subr.mxu0 0.0
        %1647 = vmatpush2.msra.mxu0 0.0
        %1648 = vmatprep.subr.mxu0 0.0
        %1649 = vmatpush2.msra.mxu0 0.0
        %1650 = vmatprep.subr.mxu0 0.0
        %1651 = vmatpush2.msra.mxu0 0.0
        %1652 = vmatprep.subr.mxu0 0.0
        %1653 = vmatpush2.msra.mxu0 0.0
        %1654 = vmatprep.subr.mxu0 0.0
        %1655 = vmatpush2.msra.mxu0 0.0
        %1656 = vmatprep.mubr.f32.mxu0 0.0
        %1657 = vmatmul.mubr.f32.gmra.mxu0 %v1576
        %v1658 = vpop.f32.mrf.mxu0
        %v1659 = vadd.f32 0.0, %v1658
        %v1660 = vpop.f32.mrf.mxu0
        %1661 = vmatprep.mubr.f32.mxu0 0.0
        %1662 = vmatmul.mubr.f32.gmra.mxu0 %v1577
        %v1663 = vpop.f32.mrf.mxu0
        %v1664 = vadd.f32 0.0, %v1663
        %v1665 = vpop.f32.mrf.mxu0
        %1666 = vmatprep.mubr.f32.mxu0 0.0
        %1667 = vmatmul.mubr.f32.gmra.mxu0 %v1578
        %v1668 = vpop.f32.mrf.mxu0
        %v1669 = vadd.f32 0.0, %v1668
        %v1670 = vpop.f32.mrf.mxu0
        %1671 = vmatprep.mubr.f32.mxu0 0.0
        %1672 = vmatmul.mubr.f32.gmra.mxu0 %v1579
        %v1673 = vpop.f32.mrf.mxu0
        %v1674 = vadd.f32 0.0, %v1673
        %v1675 = vpop.f32.mrf.mxu0
        %1676 = vmatprep.mubr.f32.mxu0 0.0
        %1677 = vmatmul.mubr.f32.gmra.mxu0 %v1580
        %v1678 = vpop.f32.mrf.mxu0
        %v1679 = vadd.f32 0.0, %v1678
        %v1680 = vpop.f32.mrf.mxu0
        %1681 = vmatprep.mubr.f32.mxu0 0.0
        %1682 = vmatmul.mubr.f32.gmra.mxu0 %v1581
        %v1683 = vpop.f32.mrf.mxu0
        %v1684 = vadd.f32 0.0, %v1683
        %v1685 = vpop.f32.mrf.mxu0
        %1686 = vmatprep.mubr.f32.mxu0 0.0
        %1687 = vmatmul.mubr.f32.gmra.mxu0 %v1582
        %v1688 = vpop.f32.mrf.mxu0
        %v1689 = vadd.f32 0.0, %v1688
        %v1690 = vpop.f32.mrf.mxu0
        %1691 = vmatprep.mubr.f32.mxu0 0.0
        %1692 = vmatmul.mubr.f32.gmra.mxu0 %v1583
        %v1693 = vpop.f32.mrf.mxu0
        %v1694 = vadd.f32 0.0, %v1693
        %v1695 = vpop.f32.mrf.mxu0
        %1696 = vmatprep.mubr.f32.mxu0 0.0
        %1697 = vmatmul.mubr.f32.gmra.mxu0 %v1584
        %v1698 = vpop.f32.mrf.mxu0
        %v1699 = vadd.f32 0.0, %v1698
        %v1700 = vpop.f32.mrf.mxu0
        %1701 = vmatprep.mubr.f32.mxu0 0.0
        %1702 = vmatmul.mubr.f32.gmra.mxu0 %v1585
        %v1703 = vpop.f32.mrf.mxu0
        %v1704 = vadd.f32 0.0, %v1703
        %v1705 = vpop.f32.mrf.mxu0
        %1706 = vmatprep.mubr.f32.mxu0 0.0
        %1707 = vmatmul.mubr.f32.gmra.mxu0 %v1586
        %v1708 = vpop.f32.mrf.mxu0
        %v1709 = vadd.f32 0.0, %v1708
        %v1710 = vpop.f32.mrf.mxu0
        %1711 = vmatprep.mubr.f32.mxu0 0.0
        %1712 = vmatmul.mubr.f32.gmra.mxu0 %v1587
        %v1713 = vpop.f32.mrf.mxu0
        %v1714 = vadd.f32 0.0, %v1713
        %v1715 = vpop.f32.mrf.mxu0
        %1716 = vmatprep.mubr.f32.mxu0 0.0
        %1717 = vmatmul.mubr.f32.gmra.mxu0 %v1588
        %v1718 = vpop.f32.mrf.mxu0
        %v1719 = vadd.f32 0.0, %v1718
        %v1720 = vpop.f32.mrf.mxu0
        %1721 = vmatprep.mubr.f32.mxu0 0.0
        %1722 = vmatmul.mubr.f32.gmra.mxu0 %v1589
        %v1723 = vpop.f32.mrf.mxu0
        %v1724 = vadd.f32 0.0, %v1723
        %v1725 = vpop.f32.mrf.mxu0
        %1726 = vmatprep.mubr.f32.mxu0 0.0
        %1727 = vmatmul.mubr.f32.gmra.mxu0 %v1590
        %v1728 = vpop.f32.mrf.mxu0
        %v1729 = vadd.f32 0.0, %v1728
        %v1730 = vpop.f32.mrf.mxu0
        %1731 = vmatprep.mubr.f32.mxu0 0.0
        %1732 = vmatmul.mubr.f32.gmra.mxu0 %v1591
        %v1733 = vpop.f32.mrf.mxu0
        %v1734 = vadd.f32 0.0, %v1733
        %v1735 = vpop.f32.mrf.mxu0
        %1736 = vdwg.mxu0
        %v1737 = vld [vmem:[%s8] sm:$0xff]
        %v1738 = vld [vmem:[%s8 + $0x8] sm:$0xff]
        %v1739 = vld [vmem:[%s8 + $0x10] sm:$0xff]
        %v1740 = vld [vmem:[%s8 + $0x18] sm:$0xff]
        %s1741 = scalar_lea.vmem [#allocation7], 128
        %v1742 = vld [vmem:[%s1741] sm:$0xff]
        %v1743 = vld [vmem:[%s1741 + $0x8] sm:$0xff]
        %v1744 = vld [vmem:[%s1741 + $0x10] sm:$0xff]
        %v1745 = vld [vmem:[%s1741 + $0x18] sm:$0xff]
        %v1746 = vld [vmem:[%s1741 + $0x20] sm:$0xff]
        %v1747 = vld [vmem:[%s1741 + $0x28] sm:$0xff]
        %v1748 = vld [vmem:[%s1741 + $0x30] sm:$0xff]
        %v1749 = vld [vmem:[%s1741 + $0x38] sm:$0xff]
        %v1750 = vld [vmem:[%s1741 + $0x40] sm:$0xff]
        %v1751 = vld [vmem:[%s1741 + $0x48] sm:$0xff]
        %v1752 = vld [vmem:[%s1741 + $0x50] sm:$0xff]
        %v1753 = vld [vmem:[%s1741 + $0x58] sm:$0xff]
        %v1754 = vld [vmem:[%s1741 + $0x60] sm:$0xff]
        %v1755 = vld [vmem:[%s1741 + $0x68] sm:$0xff]
        %v1756 = vld [vmem:[%s1741 + $0x70] sm:$0xff]
        %v1757 = vld [vmem:[%s1741 + $0x78] sm:$0xff]
        %1758 = vrot.lane.b32.xlu0 %v834, 96
        %v1759 = vpop.permute.xlu0 %1758
        %1760 = vrot.lane.b32.xlu0 %v840, 96
        %v1761 = vpop.permute.xlu0 %1760
        %1762 = vrot.lane.b32.xlu0 %v846, 96
        %v1763 = vpop.permute.xlu0 %1762
        %1764 = vrot.lane.b32.xlu0 %v852, 96
        %v1765 = vpop.permute.xlu0 %1764
        %1766 = vrot.lane.b32.xlu0 %v858, 96
        %v1767 = vpop.permute.xlu0 %1766
        %1768 = vrot.lane.b32.xlu0 %v864, 96
        %v1769 = vpop.permute.xlu0 %1768
        %1770 = vrot.lane.b32.xlu0 %v870, 96
        %v1771 = vpop.permute.xlu0 %1770
        %1772 = vrot.lane.b32.xlu0 %v876, 96
        %v1773 = vpop.permute.xlu0 %1772
        %1774 = vrot.lane.b32.xlu0 %v882, 96
        %v1775 = vpop.permute.xlu0 %1774
        %1776 = vrot.lane.b32.xlu0 %v888, 96
        %v1777 = vpop.permute.xlu0 %1776
        %1778 = vrot.lane.b32.xlu0 %v894, 96
        %v1779 = vpop.permute.xlu0 %1778
        %1780 = vrot.lane.b32.xlu0 %v900, 96
        %v1781 = vpop.permute.xlu0 %1780
        %1782 = vrot.lane.b32.xlu0 %v906, 96
        %v1783 = vpop.permute.xlu0 %1782
        %1784 = vrot.lane.b32.xlu0 %v912, 96
        %v1785 = vpop.permute.xlu0 %1784
        %1786 = vrot.lane.b32.xlu0 %v918, 96
        %v1787 = vpop.permute.xlu0 %1786
        %1788 = vrot.lane.b32.xlu0 %v924, 96
        %v1789 = vpop.permute.xlu0 %1788
        %1790 = vrot.lane.b32.xlu0 %v836, 96
        %v1791 = vpop.permute.xlu0 %1790
        %1792 = vrot.lane.b32.xlu0 %v842, 96
        %v1793 = vpop.permute.xlu0 %1792
        %1794 = vrot.lane.b32.xlu0 %v848, 96
        %v1795 = vpop.permute.xlu0 %1794
        %1796 = vrot.lane.b32.xlu0 %v854, 96
        %v1797 = vpop.permute.xlu0 %1796
        %1798 = vrot.lane.b32.xlu0 %v860, 96
        %v1799 = vpop.permute.xlu0 %1798
        %1800 = vrot.lane.b32.xlu0 %v866, 96
        %v1801 = vpop.permute.xlu0 %1800
        %1802 = vrot.lane.b32.xlu0 %v872, 96
        %v1803 = vpop.permute.xlu0 %1802
        %1804 = vrot.lane.b32.xlu0 %v878, 96
        %v1805 = vpop.permute.xlu0 %1804
        %1806 = vrot.lane.b32.xlu0 %v884, 96
        %v1807 = vpop.permute.xlu0 %1806
        %1808 = vrot.lane.b32.xlu0 %v890, 96
        %v1809 = vpop.permute.xlu0 %1808
        %1810 = vrot.lane.b32.xlu0 %v896, 96
        %v1811 = vpop.permute.xlu0 %1810
        %1812 = vrot.lane.b32.xlu0 %v902, 96
        %v1813 = vpop.permute.xlu0 %1812
        %1814 = vrot.lane.b32.xlu0 %v908, 96
        %v1815 = vpop.permute.xlu0 %1814
        %1816 = vrot.lane.b32.xlu0 %v914, 96
        %v1817 = vpop.permute.xlu0 %1816
        %1818 = vrot.lane.b32.xlu0 %v920, 96
        %v1819 = vpop.permute.xlu0 %1818
        %1820 = vrot.lane.b32.xlu0 %v926, 96
        %v1821 = vpop.permute.xlu0 %1820
        %v1822 = vsel %vm1190, %v1759, 0
        %v1824 = vsel %vm1190, %v1761, 0
        %v1826 = vsel %vm1190, %v1763, 0
        %v1828 = vsel %vm1190, %v1765, 0
        %v1830 = vsel %vm1190, %v1767, 0
        %v1832 = vsel %vm1190, %v1769, 0
        %v1834 = vsel %vm1190, %v1771, 0
        %v1836 = vsel %vm1190, %v1773, 0
        %v1838 = vsel %vm1190, %v1775, 0
        %v1840 = vsel %vm1190, %v1777, 0
        %v1842 = vsel %vm1190, %v1779, 0
        %v1844 = vsel %vm1190, %v1781, 0
        %v1846 = vsel %vm1190, %v1783, 0
        %v1848 = vsel %vm1190, %v1785, 0
        %v1850 = vsel %vm1190, %v1787, 0
        %v1852 = vsel %vm1190, %v1789, 0
        %v1854 = vsel %vm1190, %v1791, 0
        %v1856 = vsel %vm1190, %v1793, 0
        %v1858 = vsel %vm1190, %v1795, 0
        %v1860 = vsel %vm1190, %v1797, 0
        %v1862 = vsel %vm1190, %v1799, 0
        %v1864 = vsel %vm1190, %v1801, 0
        %v1866 = vsel %vm1190, %v1803, 0
        %v1868 = vsel %vm1190, %v1805, 0
        %v1870 = vsel %vm1190, %v1807, 0
        %v1872 = vsel %vm1190, %v1809, 0
        %v1874 = vsel %vm1190, %v1811, 0
        %v1876 = vsel %vm1190, %v1813, 0
        %v1878 = vsel %vm1190, %v1815, 0
        %v1880 = vsel %vm1190, %v1817, 0
        %v1882 = vsel %vm1190, %v1819, 0
        %v1884 = vsel %vm1190, %v1821, 0
        %1886 = vmatprep.subr.mxu0 0.0
        %1887 = vmatpush1.xpose.msra.mxu0 %v1884
        %1888 = vmatprep.subr.mxu0 0.0
        %1889 = vmatpush1.xpose.msra.mxu0 %v1882
        %1890 = vmatprep.subr.mxu0 0.0
        %1891 = vmatpush1.xpose.msra.mxu0 %v1880
        %1892 = vmatprep.subr.mxu0 0.0
        %1893 = vmatpush1.xpose.msra.mxu0 %v1878
        %1894 = vmatprep.subr.mxu0 0.0
        %1895 = vmatpush1.xpose.msra.mxu0 %v1876
        %1896 = vmatprep.subr.mxu0 0.0
        %1897 = vmatpush1.xpose.msra.mxu0 %v1874
        %1898 = vmatprep.subr.mxu0 0.0
        %1899 = vmatpush1.xpose.msra.mxu0 %v1872
        %1900 = vmatprep.subr.mxu0 0.0
        %1901 = vmatpush1.xpose.msra.mxu0 %v1870
        %1902 = vmatprep.subr.mxu0 0.0
        %1903 = vmatpush1.xpose.msra.mxu0 %v1868
        %1904 = vmatprep.subr.mxu0 0.0
        %1905 = vmatpush1.xpose.msra.mxu0 %v1866
        %1906 = vmatprep.subr.mxu0 0.0
        %1907 = vmatpush1.xpose.msra.mxu0 %v1864
        %1908 = vmatprep.subr.mxu0 0.0
        %1909 = vmatpush1.xpose.msra.mxu0 %v1862
        %1910 = vmatprep.subr.mxu0 0.0
        %1911 = vmatpush1.xpose.msra.mxu0 %v1860
        %1912 = vmatprep.subr.mxu0 0.0
        %1913 = vmatpush1.xpose.msra.mxu0 %v1858
        %1914 = vmatprep.subr.mxu0 0.0
        %1915 = vmatpush1.xpose.msra.mxu0 %v1856
        %1916 = vmatprep.subr.mxu0 0.0
        %1917 = vmatpush1.xpose.msra.mxu0 %v1854
        %1918 = vmatprep.subr.mxu0 0.0
        %1919 = vmatpush2.xpose.msra.mxu0 0.0
        %1920 = vmatprep.subr.mxu0 0.0
        %1921 = vmatpush2.xpose.msra.mxu0 0.0
        %1922 = vmatprep.subr.mxu0 0.0
        %1923 = vmatpush2.xpose.msra.mxu0 0.0
        %1924 = vmatprep.subr.mxu0 0.0
        %1925 = vmatpush2.xpose.msra.mxu0 0.0
        %1926 = vmatprep.subr.mxu0 0.0
        %1927 = vmatpush2.xpose.msra.mxu0 0.0
        %1928 = vmatprep.subr.mxu0 0.0
        %1929 = vmatpush2.xpose.msra.mxu0 0.0
        %1930 = vmatprep.subr.mxu0 0.0
        %1931 = vmatpush2.xpose.msra.mxu0 0.0
        %1932 = vmatprep.subr.mxu0 0.0
        %1933 = vmatpush2.xpose.msra.mxu0 0.0
        %1934 = vmatprep.subr.mxu0 0.0
        %1935 = vmatpush2.xpose.msra.mxu0 0.0
        %1936 = vmatprep.subr.mxu0 0.0
        %1937 = vmatpush2.xpose.msra.mxu0 0.0
        %1938 = vmatprep.subr.mxu0 0.0
        %1939 = vmatpush2.xpose.msra.mxu0 0.0
        %1940 = vmatprep.subr.mxu0 0.0
        %1941 = vmatpush2.xpose.msra.mxu0 0.0
        %1942 = vmatprep.subr.mxu0 0.0
        %1943 = vmatpush2.xpose.msra.mxu0 0.0
        %1944 = vmatprep.subr.mxu0 0.0
        %1945 = vmatpush2.xpose.msra.mxu0 0.0
        %1946 = vmatprep.subr.mxu0 0.0
        %1947 = vmatpush2.xpose.msra.mxu0 0.0
        %1948 = vmatprep.subr.mxu0 0.0
        %1949 = vmatpush2.xpose.msra.mxu0 0.0
        %1950 = vmatprep.mubr.f32.mxu0 0.0
        %1951 = vmatmul.mubr.f32.gmra.mxu0 %v1822
        %v1952 = vpop.f32.mrf.mxu0
        %v1953 = vadd.f32 %v1742, %v1952
        %v1954 = vpop.f32.mrf.mxu0
        %1955 = vmatprep.mubr.f32.mxu0 0.0
        %1956 = vmatmul.mubr.f32.gmra.mxu0 %v1824
        %v1957 = vpop.f32.mrf.mxu0
        %v1958 = vadd.f32 %v1743, %v1957
        %v1959 = vpop.f32.mrf.mxu0
        %1960 = vmatprep.mubr.f32.mxu0 0.0
        %1961 = vmatmul.mubr.f32.gmra.mxu0 %v1826
        %v1962 = vpop.f32.mrf.mxu0
        %v1963 = vadd.f32 %v1744, %v1962
        %v1964 = vpop.f32.mrf.mxu0
        %1965 = vmatprep.mubr.f32.mxu0 0.0
        %1966 = vmatmul.mubr.f32.gmra.mxu0 %v1828
        %v1967 = vpop.f32.mrf.mxu0
        %v1968 = vadd.f32 %v1745, %v1967
        %v1969 = vpop.f32.mrf.mxu0
        %1970 = vmatprep.mubr.f32.mxu0 0.0
        %1971 = vmatmul.mubr.f32.gmra.mxu0 %v1830
        %v1972 = vpop.f32.mrf.mxu0
        %v1973 = vadd.f32 %v1746, %v1972
        %v1974 = vpop.f32.mrf.mxu0
        %1975 = vmatprep.mubr.f32.mxu0 0.0
        %1976 = vmatmul.mubr.f32.gmra.mxu0 %v1832
        %v1977 = vpop.f32.mrf.mxu0
        %v1978 = vadd.f32 %v1747, %v1977
        %v1979 = vpop.f32.mrf.mxu0
        %1980 = vmatprep.mubr.f32.mxu0 0.0
        %1981 = vmatmul.mubr.f32.gmra.mxu0 %v1834
        %v1982 = vpop.f32.mrf.mxu0
        %v1983 = vadd.f32 %v1748, %v1982
        %v1984 = vpop.f32.mrf.mxu0
        %1985 = vmatprep.mubr.f32.mxu0 0.0
        %1986 = vmatmul.mubr.f32.gmra.mxu0 %v1836
        %v1987 = vpop.f32.mrf.mxu0
        %v1988 = vadd.f32 %v1749, %v1987
        %v1989 = vpop.f32.mrf.mxu0
        %1990 = vmatprep.mubr.f32.mxu0 0.0
        %1991 = vmatmul.mubr.f32.gmra.mxu0 %v1838
        %v1992 = vpop.f32.mrf.mxu0
        %v1993 = vadd.f32 %v1750, %v1992
        %v1994 = vpop.f32.mrf.mxu0
        %1995 = vmatprep.mubr.f32.mxu0 0.0
        %1996 = vmatmul.mubr.f32.gmra.mxu0 %v1840
        %v1997 = vpop.f32.mrf.mxu0
        %v1998 = vadd.f32 %v1751, %v1997
        %v1999 = vpop.f32.mrf.mxu0
        %2000 = vmatprep.mubr.f32.mxu0 0.0
        %2001 = vmatmul.mubr.f32.gmra.mxu0 %v1842
        %v2002 = vpop.f32.mrf.mxu0
        %v2003 = vadd.f32 %v1752, %v2002
        %v2004 = vpop.f32.mrf.mxu0
        %2005 = vmatprep.mubr.f32.mxu0 0.0
        %2006 = vmatmul.mubr.f32.gmra.mxu0 %v1844
        %v2007 = vpop.f32.mrf.mxu0
        %v2008 = vadd.f32 %v1753, %v2007
        %v2009 = vpop.f32.mrf.mxu0
        %2010 = vmatprep.mubr.f32.mxu0 0.0
        %2011 = vmatmul.mubr.f32.gmra.mxu0 %v1846
        %v2012 = vpop.f32.mrf.mxu0
        %v2013 = vadd.f32 %v1754, %v2012
        %v2014 = vpop.f32.mrf.mxu0
        %2015 = vmatprep.mubr.f32.mxu0 0.0
        %2016 = vmatmul.mubr.f32.gmra.mxu0 %v1848
        %v2017 = vpop.f32.mrf.mxu0
        %v2018 = vadd.f32 %v1755, %v2017
        %v2019 = vpop.f32.mrf.mxu0
        %2020 = vmatprep.mubr.f32.mxu0 0.0
        %2021 = vmatmul.mubr.f32.gmra.mxu0 %v1850
        %v2022 = vpop.f32.mrf.mxu0
        %v2023 = vadd.f32 %v1756, %v2022
        %v2024 = vpop.f32.mrf.mxu0
        %2025 = vmatprep.mubr.f32.mxu0 0.0
        %2026 = vmatmul.mubr.f32.gmra.mxu0 %v1852
        %v2027 = vpop.f32.mrf.mxu0
        %v2028 = vadd.f32 %v1757, %v2027
        %v2029 = vpop.f32.mrf.mxu0
        %2030 = vdwg.mxu0
        %v2031 = vadd.f32 %v1953, %v1158
        %v2032 = vadd.f32 %v1958, %v1159
        %v2033 = vadd.f32 %v1963, %v1160
        %v2034 = vadd.f32 %v1968, %v1161
        %v2035 = vadd.f32 %v1973, %v1162
        %v2036 = vadd.f32 %v1978, %v1163
        %v2037 = vadd.f32 %v1983, %v1164
        %v2038 = vadd.f32 %v1988, %v1165
        %v2039 = vadd.f32 %v1993, %v1166
        %v2040 = vadd.f32 %v1998, %v1167
        %v2041 = vadd.f32 %v2003, %v1168
        %v2042 = vadd.f32 %v2008, %v1169
        %v2043 = vadd.f32 %v2013, %v1170
        %v2044 = vadd.f32 %v2018, %v1171
        %v2045 = vadd.f32 %v2023, %v1172
        %v2046 = vadd.f32 %v2028, %v1173
        %2047 = vmax.xlane.f32.xlu0 %v2031
        %v2048 = vpop.xlane.xlu0 %2047
        %2049 = vmax.xlane.f32.xlu0 %v2032
        %v2050 = vpop.xlane.xlu0 %2049
        %2051 = vmax.xlane.f32.xlu0 %v2033
        %v2052 = vpop.xlane.xlu0 %2051
        %2053 = vmax.xlane.f32.xlu0 %v2034
        %v2054 = vpop.xlane.xlu0 %2053
        %2055 = vmax.xlane.f32.xlu0 %v2035
        %v2056 = vpop.xlane.xlu0 %2055
        %2057 = vmax.xlane.f32.xlu0 %v2036
        %v2058 = vpop.xlane.xlu0 %2057
        %2059 = vmax.xlane.f32.xlu0 %v2037
        %v2060 = vpop.xlane.xlu0 %2059
        %2061 = vmax.xlane.f32.xlu0 %v2038
        %v2062 = vpop.xlane.xlu0 %2061
        %2063 = vmax.xlane.f32.xlu0 %v2039
        %v2064 = vpop.xlane.xlu0 %2063
        %2065 = vmax.xlane.f32.xlu0 %v2040
        %v2066 = vpop.xlane.xlu0 %2065
        %2067 = vmax.xlane.f32.xlu0 %v2041
        %v2068 = vpop.xlane.xlu0 %2067
        %2069 = vmax.xlane.f32.xlu0 %v2042
        %v2070 = vpop.xlane.xlu0 %2069
        %2071 = vmax.xlane.f32.xlu0 %v2043
        %v2072 = vpop.xlane.xlu0 %2071
        %2073 = vmax.xlane.f32.xlu0 %v2044
        %v2074 = vpop.xlane.xlu0 %2073
        %2075 = vmax.xlane.f32.xlu0 %v2045
        %v2076 = vpop.xlane.xlu0 %2075
        %2077 = vmax.xlane.f32.xlu0 %v2046
        %v2078 = vpop.xlane.xlu0 %2077
        %v2079 = vsub.f32 %v2031, %v2048
        %v2080 = vsub.f32 %v2032, %v2050
        %v2081 = vsub.f32 %v2033, %v2052
        %v2082 = vsub.f32 %v2034, %v2054
        %v2083 = vsub.f32 %v2035, %v2056
        %v2084 = vsub.f32 %v2036, %v2058
        %v2085 = vsub.f32 %v2037, %v2060
        %v2086 = vsub.f32 %v2038, %v2062
        %v2087 = vsub.f32 %v2039, %v2064
        %v2088 = vsub.f32 %v2040, %v2066
        %v2089 = vsub.f32 %v2041, %v2068
        %v2090 = vsub.f32 %v2042, %v2070
        %v2091 = vsub.f32 %v2043, %v2072
        %v2092 = vsub.f32 %v2044, %v2074
        %v2093 = vsub.f32 %v2045, %v2076
        %v2094 = vsub.f32 %v2046, %v2078
        %v2095 = vmul.f32 %v2079, 1.442695
        %v2096 = vpow.pop %v2095
        %v2097 = vmul.f32 %v2080, 1.442695
        %v2098 = vpow.pop %v2097
        %v2099 = vmul.f32 %v2081, 1.442695
        %v2100 = vpow.pop %v2099
        %v2101 = vmul.f32 %v2082, 1.442695
        %v2102 = vpow.pop %v2101
        %v2103 = vmul.f32 %v2083, 1.442695
        %v2104 = vpow.pop %v2103
        %v2105 = vmul.f32 %v2084, 1.442695
        %v2106 = vpow.pop %v2105
        %v2107 = vmul.f32 %v2085, 1.442695
        %v2108 = vpow.pop %v2107
        %v2109 = vmul.f32 %v2086, 1.442695
        %v2110 = vpow.pop %v2109
        %v2111 = vmul.f32 %v2087, 1.442695
        %v2112 = vpow.pop %v2111
        %v2113 = vmul.f32 %v2088, 1.442695
        %v2114 = vpow.pop %v2113
        %v2115 = vmul.f32 %v2089, 1.442695
        %v2116 = vpow.pop %v2115
        %v2117 = vmul.f32 %v2090, 1.442695
        %v2118 = vpow.pop %v2117
        %v2119 = vmul.f32 %v2091, 1.442695
        %v2120 = vpow.pop %v2119
        %v2121 = vmul.f32 %v2092, 1.442695
        %v2122 = vpow.pop %v2121
        %v2123 = vmul.f32 %v2093, 1.442695
        %v2124 = vpow.pop %v2123
        %v2125 = vmul.f32 %v2094, 1.442695
        %v2126 = vpow.pop %v2125
        %2127 = vadd.xlane.f32.xlu0 %v2096
        %v2128 = vpop.xlane.xlu0 %2127
        %2129 = vadd.xlane.f32.xlu0 %v2098
        %v2130 = vpop.xlane.xlu0 %2129
        %2131 = vadd.xlane.f32.xlu0 %v2100
        %v2132 = vpop.xlane.xlu0 %2131
        %2133 = vadd.xlane.f32.xlu0 %v2102
        %v2134 = vpop.xlane.xlu0 %2133
        %2135 = vadd.xlane.f32.xlu0 %v2104
        %v2136 = vpop.xlane.xlu0 %2135
        %2137 = vadd.xlane.f32.xlu0 %v2106
        %v2138 = vpop.xlane.xlu0 %2137
        %2139 = vadd.xlane.f32.xlu0 %v2108
        %v2140 = vpop.xlane.xlu0 %2139
        %2141 = vadd.xlane.f32.xlu0 %v2110
        %v2142 = vpop.xlane.xlu0 %2141
        %2143 = vadd.xlane.f32.xlu0 %v2112
        %v2144 = vpop.xlane.xlu0 %2143
        %2145 = vadd.xlane.f32.xlu0 %v2114
        %v2146 = vpop.xlane.xlu0 %2145
        %2147 = vadd.xlane.f32.xlu0 %v2116
        %v2148 = vpop.xlane.xlu0 %2147
        %2149 = vadd.xlane.f32.xlu0 %v2118
        %v2150 = vpop.xlane.xlu0 %2149
        %2151 = vadd.xlane.f32.xlu0 %v2120
        %v2152 = vpop.xlane.xlu0 %2151
        %2153 = vadd.xlane.f32.xlu0 %v2122
        %v2154 = vpop.xlane.xlu0 %2153
        %2155 = vadd.xlane.f32.xlu0 %v2124
        %v2156 = vpop.xlane.xlu0 %2155
        %2157 = vadd.xlane.f32.xlu0 %v2126
        %v2158 = vpop.xlane.xlu0 %2157
        %v2159 = vrcp.pop %v2128
        %v2160 = vrcp.pop %v2130
        %v2161 = vrcp.pop %v2132
        %v2162 = vrcp.pop %v2134
        %v2163 = vrcp.pop %v2136
        %v2164 = vrcp.pop %v2138
        %v2165 = vrcp.pop %v2140
        %v2166 = vrcp.pop %v2142
        %v2167 = vrcp.pop %v2144
        %v2168 = vrcp.pop %v2146
        %v2169 = vrcp.pop %v2148
        %v2170 = vrcp.pop %v2150
        %v2171 = vrcp.pop %v2152
        %v2172 = vrcp.pop %v2154
        %v2173 = vrcp.pop %v2156
        %v2174 = vrcp.pop %v2158
        %v2175 = vmul.f32 %v2096, %v2159
        %v2176 = vmul.f32 %v2098, %v2160
        %v2177 = vmul.f32 %v2100, %v2161
        %v2178 = vmul.f32 %v2102, %v2162
        %v2179 = vmul.f32 %v2104, %v2163
        %v2180 = vmul.f32 %v2106, %v2164
        %v2181 = vmul.f32 %v2108, %v2165
        %v2182 = vmul.f32 %v2110, %v2166
        %v2183 = vmul.f32 %v2112, %v2167
        %v2184 = vmul.f32 %v2114, %v2168
        %v2185 = vmul.f32 %v2116, %v2169
        %v2186 = vmul.f32 %v2118, %v2170
        %v2187 = vmul.f32 %v2120, %v2171
        %v2188 = vmul.f32 %v2122, %v2172
        %v2189 = vmul.f32 %v2124, %v2173
        %v2190 = vmul.f32 %v2126, %v2174
        %2207 = vrot.lane.b32.xlu0 %v995, 96
        %v2208 = vpop.permute.xlu0 %2207
        %2209 = vrot.lane.b32.xlu0 %v1000, 96
        %v2210 = vpop.permute.xlu0 %2209
        %2211 = vrot.lane.b32.xlu0 %v1005, 96
        %v2212 = vpop.permute.xlu0 %2211
        %2213 = vrot.lane.b32.xlu0 %v1010, 96
        %v2214 = vpop.permute.xlu0 %2213
        %2215 = vrot.lane.b32.xlu0 %v1015, 96
        %v2216 = vpop.permute.xlu0 %2215
        %2217 = vrot.lane.b32.xlu0 %v1020, 96
        %v2218 = vpop.permute.xlu0 %2217
        %2219 = vrot.lane.b32.xlu0 %v1025, 96
        %v2220 = vpop.permute.xlu0 %2219
        %2221 = vrot.lane.b32.xlu0 %v1030, 96
        %v2222 = vpop.permute.xlu0 %2221
        %2223 = vrot.lane.b32.xlu0 %v1035, 96
        %v2224 = vpop.permute.xlu0 %2223
        %2225 = vrot.lane.b32.xlu0 %v1040, 96
        %v2226 = vpop.permute.xlu0 %2225
        %2227 = vrot.lane.b32.xlu0 %v1045, 96
        %v2228 = vpop.permute.xlu0 %2227
        %2229 = vrot.lane.b32.xlu0 %v1050, 96
        %v2230 = vpop.permute.xlu0 %2229
        %2231 = vrot.lane.b32.xlu0 %v1055, 96
        %v2232 = vpop.permute.xlu0 %2231
        %2233 = vrot.lane.b32.xlu0 %v1060, 96
        %v2234 = vpop.permute.xlu0 %2233
        %2235 = vrot.lane.b32.xlu0 %v1065, 96
        %v2236 = vpop.permute.xlu0 %2235
        %2237 = vrot.lane.b32.xlu0 %v1070, 96
        %v2238 = vpop.permute.xlu0 %2237
        %2255 = vmatprep.subr.mxu0 0.0
        %2256 = vmatpush1.msra.mxu0 %v2238
        %2257 = vmatprep.subr.mxu0 0.0
        %2258 = vmatpush1.msra.mxu0 %v2236
        %2259 = vmatprep.subr.mxu0 0.0
        %2260 = vmatpush1.msra.mxu0 %v2234
        %2261 = vmatprep.subr.mxu0 0.0
        %2262 = vmatpush1.msra.mxu0 %v2232
        %2263 = vmatprep.subr.mxu0 0.0
        %2264 = vmatpush1.msra.mxu0 %v2230
        %2265 = vmatprep.subr.mxu0 0.0
        %2266 = vmatpush1.msra.mxu0 %v2228
        %2267 = vmatprep.subr.mxu0 0.0
        %2268 = vmatpush1.msra.mxu0 %v2226
        %2269 = vmatprep.subr.mxu0 0.0
        %2270 = vmatpush1.msra.mxu0 %v2224
        %2271 = vmatprep.subr.mxu0 0.0
        %2272 = vmatpush1.msra.mxu0 %v2222
        %2273 = vmatprep.subr.mxu0 0.0
        %2274 = vmatpush1.msra.mxu0 %v2220
        %2275 = vmatprep.subr.mxu0 0.0
        %2276 = vmatpush1.msra.mxu0 %v2218
        %2277 = vmatprep.subr.mxu0 0.0
        %2278 = vmatpush1.msra.mxu0 %v2216
        %2279 = vmatprep.subr.mxu0 0.0
        %2280 = vmatpush1.msra.mxu0 %v2214
        %2281 = vmatprep.subr.mxu0 0.0
        %2282 = vmatpush1.msra.mxu0 %v2212
        %2283 = vmatprep.subr.mxu0 0.0
        %2284 = vmatpush1.msra.mxu0 %v2210
        %2285 = vmatprep.subr.mxu0 0.0
        %2286 = vmatpush1.msra.mxu0 %v2208
        %2287 = vmatprep.subr.mxu0 0.0
        %2288 = vmatpush2.msra.mxu0 0.0
        %2289 = vmatprep.subr.mxu0 0.0
        %2290 = vmatpush2.msra.mxu0 0.0
        %2291 = vmatprep.subr.mxu0 0.0
        %2292 = vmatpush2.msra.mxu0 0.0
        %2293 = vmatprep.subr.mxu0 0.0
        %2294 = vmatpush2.msra.mxu0 0.0
        %2295 = vmatprep.subr.mxu0 0.0
        %2296 = vmatpush2.msra.mxu0 0.0
        %2297 = vmatprep.subr.mxu0 0.0
        %2298 = vmatpush2.msra.mxu0 0.0
        %2299 = vmatprep.subr.mxu0 0.0
        %2300 = vmatpush2.msra.mxu0 0.0
        %2301 = vmatprep.subr.mxu0 0.0
        %2302 = vmatpush2.msra.mxu0 0.0
        %2303 = vmatprep.subr.mxu0 0.0
        %2304 = vmatpush2.msra.mxu0 0.0
        %2305 = vmatprep.subr.mxu0 0.0
        %2306 = vmatpush2.msra.mxu0 0.0
        %2307 = vmatprep.subr.mxu0 0.0
        %2308 = vmatpush2.msra.mxu0 0.0
        %2309 = vmatprep.subr.mxu0 0.0
        %2310 = vmatpush2.msra.mxu0 0.0
        %2311 = vmatprep.subr.mxu0 0.0
        %2312 = vmatpush2.msra.mxu0 0.0
        %2313 = vmatprep.subr.mxu0 0.0
        %2314 = vmatpush2.msra.mxu0 0.0
        %2315 = vmatprep.subr.mxu0 0.0
        %2316 = vmatpush2.msra.mxu0 0.0
        %2317 = vmatprep.subr.mxu0 0.0
        %2318 = vmatpush2.msra.mxu0 0.0
        %2319 = vmatprep.mubr.f32.mxu0 0.0
        %2320 = vmatmul.mubr.f32.gmra.mxu0 %v2175
        %v2321 = vpop.f32.mrf.mxu0
        %v2322 = vadd.f32 0.0, %v2321
        %v2323 = vpop.f32.mrf.mxu0
        %2324 = vmatprep.mubr.f32.mxu0 0.0
        %2325 = vmatmul.mubr.f32.gmra.mxu0 %v2176
        %v2326 = vpop.f32.mrf.mxu0
        %v2327 = vadd.f32 0.0, %v2326
        %v2328 = vpop.f32.mrf.mxu0
        %2329 = vmatprep.mubr.f32.mxu0 0.0
        %2330 = vmatmul.mubr.f32.gmra.mxu0 %v2177
        %v2331 = vpop.f32.mrf.mxu0
        %v2332 = vadd.f32 0.0, %v2331
        %v2333 = vpop.f32.mrf.mxu0
        %2334 = vmatprep.mubr.f32.mxu0 0.0
        %2335 = vmatmul.mubr.f32.gmra.mxu0 %v2178
        %v2336 = vpop.f32.mrf.mxu0
        %v2337 = vadd.f32 0.0, %v2336
        %v2338 = vpop.f32.mrf.mxu0
        %2339 = vmatprep.mubr.f32.mxu0 0.0
        %2340 = vmatmul.mubr.f32.gmra.mxu0 %v2179
        %v2341 = vpop.f32.mrf.mxu0
        %v2342 = vadd.f32 0.0, %v2341
        %v2343 = vpop.f32.mrf.mxu0
        %2344 = vmatprep.mubr.f32.mxu0 0.0
        %2345 = vmatmul.mubr.f32.gmra.mxu0 %v2180
        %v2346 = vpop.f32.mrf.mxu0
        %v2347 = vadd.f32 0.0, %v2346
        %v2348 = vpop.f32.mrf.mxu0
        %2349 = vmatprep.mubr.f32.mxu0 0.0
        %2350 = vmatmul.mubr.f32.gmra.mxu0 %v2181
        %v2351 = vpop.f32.mrf.mxu0
        %v2352 = vadd.f32 0.0, %v2351
        %v2353 = vpop.f32.mrf.mxu0
        %2354 = vmatprep.mubr.f32.mxu0 0.0
        %2355 = vmatmul.mubr.f32.gmra.mxu0 %v2182
        %v2356 = vpop.f32.mrf.mxu0
        %v2357 = vadd.f32 0.0, %v2356
        %v2358 = vpop.f32.mrf.mxu0
        %2359 = vmatprep.mubr.f32.mxu0 0.0
        %2360 = vmatmul.mubr.f32.gmra.mxu0 %v2183
        %v2361 = vpop.f32.mrf.mxu0
        %v2362 = vadd.f32 0.0, %v2361
        %v2363 = vpop.f32.mrf.mxu0
        %2364 = vmatprep.mubr.f32.mxu0 0.0
        %2365 = vmatmul.mubr.f32.gmra.mxu0 %v2184
        %v2366 = vpop.f32.mrf.mxu0
        %v2367 = vadd.f32 0.0, %v2366
        %v2368 = vpop.f32.mrf.mxu0
        %2369 = vmatprep.mubr.f32.mxu0 0.0
        %2370 = vmatmul.mubr.f32.gmra.mxu0 %v2185
        %v2371 = vpop.f32.mrf.mxu0
        %v2372 = vadd.f32 0.0, %v2371
        %v2373 = vpop.f32.mrf.mxu0
        %2374 = vmatprep.mubr.f32.mxu0 0.0
        %2375 = vmatmul.mubr.f32.gmra.mxu0 %v2186
        %v2376 = vpop.f32.mrf.mxu0
        %v2377 = vadd.f32 0.0, %v2376
        %v2378 = vpop.f32.mrf.mxu0
        %2379 = vmatprep.mubr.f32.mxu0 0.0
        %2380 = vmatmul.mubr.f32.gmra.mxu0 %v2187
        %v2381 = vpop.f32.mrf.mxu0
        %v2382 = vadd.f32 0.0, %v2381
        %v2383 = vpop.f32.mrf.mxu0
        %2384 = vmatprep.mubr.f32.mxu0 0.0
        %2385 = vmatmul.mubr.f32.gmra.mxu0 %v2188
        %v2386 = vpop.f32.mrf.mxu0
        %v2387 = vadd.f32 0.0, %v2386
        %v2388 = vpop.f32.mrf.mxu0
        %2389 = vmatprep.mubr.f32.mxu0 0.0
        %2390 = vmatmul.mubr.f32.gmra.mxu0 %v2189
        %v2391 = vpop.f32.mrf.mxu0
        %v2392 = vadd.f32 0.0, %v2391
        %v2393 = vpop.f32.mrf.mxu0
        %2394 = vmatprep.mubr.f32.mxu0 0.0
        %2395 = vmatmul.mubr.f32.gmra.mxu0 %v2190
        %v2396 = vpop.f32.mrf.mxu0
        %v2397 = vadd.f32 0.0, %v2396
        %v2398 = vpop.f32.mrf.mxu0
        %2399 = vdwg.mxu0
        %v2400 = vld [vmem:[%s8 + $0x20] sm:$0xff]
        %v2401 = vld [vmem:[%s8 + $0x28] sm:$0xff]
        %v2402 = vld [vmem:[%s8 + $0x30] sm:$0xff]
        %v2403 = vld [vmem:[%s8 + $0x38] sm:$0xff]
        %v2405 = vsel %vm1190, %v2322, 0
        %v2408 = vsel %vm1190, %v2327, 0
        %v2411 = vsel %vm1190, %v2332, 0
        %v2414 = vsel %vm1190, %v2337, 0
        %v2417 = vsel %vm1190, %v2342, 0
        %v2420 = vsel %vm1190, %v2347, 0
        %v2423 = vsel %vm1190, %v2352, 0
        %v2426 = vsel %vm1190, %v2357, 0
        %v2429 = vsel %vm1190, %v2362, 0
        %v2432 = vsel %vm1190, %v2367, 0
        %v2435 = vsel %vm1190, %v2372, 0
        %v2438 = vsel %vm1190, %v2377, 0
        %v2441 = vsel %vm1190, %v2382, 0
        %v2444 = vsel %vm1190, %v2387, 0
        %v2447 = vsel %vm1190, %v2392, 0
        %v2450 = vsel %vm1190, %v2397, 0
        %2452 = vmatprep.subr.mxu0 0.0
        %2453 = vmatpush1.msra.mxu0 0.0
        %2454 = vmatprep.subr.mxu0 0.0
        %2455 = vmatpush1.msra.mxu0 0.0
        %2456 = vmatprep.subr.mxu0 0.0
        %2457 = vmatpush1.msra.mxu0 0.0
        %2458 = vmatprep.subr.mxu0 0.0
        %2459 = vmatpush1.msra.mxu0 0.0
        %2460 = vmatprep.subr.mxu0 0.0
        %2461 = vmatpush1.msra.mxu0 0.0
        %2462 = vmatprep.subr.mxu0 0.0
        %2463 = vmatpush1.msra.mxu0 0.0
        %2464 = vmatprep.subr.mxu0 0.0
        %2465 = vmatpush1.msra.mxu0 0.0
        %2466 = vmatprep.subr.mxu0 0.0
        %2467 = vmatpush1.msra.mxu0 0.0
        %2468 = vmatprep.subr.mxu0 0.0
        %2469 = vmatpush1.msra.mxu0 0.0
        %2470 = vmatprep.subr.mxu0 0.0
        %2471 = vmatpush1.msra.mxu0 0.0
        %2472 = vmatprep.subr.mxu0 0.0
        %2473 = vmatpush1.msra.mxu0 0.0
        %2474 = vmatprep.subr.mxu0 0.0
        %2475 = vmatpush1.msra.mxu0 0.0
        %2476 = vmatprep.subr.mxu0 0.0
        %2477 = vmatpush1.msra.mxu0 %v2403
        %2478 = vmatprep.subr.mxu0 0.0
        %2479 = vmatpush1.msra.mxu0 %v2402
        %2480 = vmatprep.subr.mxu0 0.0
        %2481 = vmatpush1.msra.mxu0 %v2401
        %2482 = vmatprep.subr.mxu0 0.0
        %2483 = vmatpush1.msra.mxu0 %v2400
        %2484 = vmatprep.subr.mxu0 0.0
        %2485 = vmatpush2.msra.mxu0 0.0
        %2486 = vmatprep.subr.mxu0 0.0
        %2487 = vmatpush2.msra.mxu0 0.0
        %2488 = vmatprep.subr.mxu0 0.0
        %2489 = vmatpush2.msra.mxu0 0.0
        %2490 = vmatprep.subr.mxu0 0.0
        %2491 = vmatpush2.msra.mxu0 0.0
        %2492 = vmatprep.subr.mxu0 0.0
        %2493 = vmatpush2.msra.mxu0 0.0
        %2494 = vmatprep.subr.mxu0 0.0
        %2495 = vmatpush2.msra.mxu0 0.0
        %2496 = vmatprep.subr.mxu0 0.0
        %2497 = vmatpush2.msra.mxu0 0.0
        %2498 = vmatprep.subr.mxu0 0.0
        %2499 = vmatpush2.msra.mxu0 0.0
        %2500 = vmatprep.subr.mxu0 0.0
        %2501 = vmatpush2.msra.mxu0 0.0
        %2502 = vmatprep.subr.mxu0 0.0
        %2503 = vmatpush2.msra.mxu0 0.0
        %2504 = vmatprep.subr.mxu0 0.0
        %2505 = vmatpush2.msra.mxu0 0.0
        %2506 = vmatprep.subr.mxu0 0.0
        %2507 = vmatpush2.msra.mxu0 0.0
        %2508 = vmatprep.subr.mxu0 0.0
        %2509 = vmatpush2.msra.mxu0 0.0
        %2510 = vmatprep.subr.mxu0 0.0
        %2511 = vmatpush2.msra.mxu0 0.0
        %2512 = vmatprep.subr.mxu0 0.0
        %2513 = vmatpush2.msra.mxu0 0.0
        %2514 = vmatprep.subr.mxu0 0.0
        %2515 = vmatpush2.msra.mxu0 0.0
        %2516 = vmatprep.mubr.f32.mxu0 0.0
        %2517 = vmatmul.mubr.f32.gmra.mxu0 %v2405
        %v2518 = vpop.f32.mrf.mxu0
        %v2519 = vadd.f32 0.0, %v2518
        %v2520 = vpop.f32.mrf.mxu0
        %2521 = vmatprep.mubr.f32.mxu0 0.0
        %2522 = vmatmul.mubr.f32.gmra.mxu0 %v2408
        %v2523 = vpop.f32.mrf.mxu0
        %v2524 = vadd.f32 0.0, %v2523
        %v2525 = vpop.f32.mrf.mxu0
        %2526 = vmatprep.mubr.f32.mxu0 0.0
        %2527 = vmatmul.mubr.f32.gmra.mxu0 %v2411
        %v2528 = vpop.f32.mrf.mxu0
        %v2529 = vadd.f32 0.0, %v2528
        %v2530 = vpop.f32.mrf.mxu0
        %2531 = vmatprep.mubr.f32.mxu0 0.0
        %2532 = vmatmul.mubr.f32.gmra.mxu0 %v2414
        %v2533 = vpop.f32.mrf.mxu0
        %v2534 = vadd.f32 0.0, %v2533
        %v2535 = vpop.f32.mrf.mxu0
        %2536 = vmatprep.mubr.f32.mxu0 0.0
        %2537 = vmatmul.mubr.f32.gmra.mxu0 %v2417
        %v2538 = vpop.f32.mrf.mxu0
        %v2539 = vadd.f32 0.0, %v2538
        %v2540 = vpop.f32.mrf.mxu0
        %2541 = vmatprep.mubr.f32.mxu0 0.0
        %2542 = vmatmul.mubr.f32.gmra.mxu0 %v2420
        %v2543 = vpop.f32.mrf.mxu0
        %v2544 = vadd.f32 0.0, %v2543
        %v2545 = vpop.f32.mrf.mxu0
        %2546 = vmatprep.mubr.f32.mxu0 0.0
        %2547 = vmatmul.mubr.f32.gmra.mxu0 %v2423
        %v2548 = vpop.f32.mrf.mxu0
        %v2549 = vadd.f32 0.0, %v2548
        %v2550 = vpop.f32.mrf.mxu0
        %2551 = vmatprep.mubr.f32.mxu0 0.0
        %2552 = vmatmul.mubr.f32.gmra.mxu0 %v2426
        %v2553 = vpop.f32.mrf.mxu0
        %v2554 = vadd.f32 0.0, %v2553
        %v2555 = vpop.f32.mrf.mxu0
        %2556 = vmatprep.mubr.f32.mxu0 0.0
        %2557 = vmatmul.mubr.f32.gmra.mxu0 %v2429
        %v2558 = vpop.f32.mrf.mxu0
        %v2559 = vadd.f32 0.0, %v2558
        %v2560 = vpop.f32.mrf.mxu0
        %2561 = vmatprep.mubr.f32.mxu0 0.0
        %2562 = vmatmul.mubr.f32.gmra.mxu0 %v2432
        %v2563 = vpop.f32.mrf.mxu0
        %v2564 = vadd.f32 0.0, %v2563
        %v2565 = vpop.f32.mrf.mxu0
        %2566 = vmatprep.mubr.f32.mxu0 0.0
        %2567 = vmatmul.mubr.f32.gmra.mxu0 %v2435
        %v2568 = vpop.f32.mrf.mxu0
        %v2569 = vadd.f32 0.0, %v2568
        %v2570 = vpop.f32.mrf.mxu0
        %2571 = vmatprep.mubr.f32.mxu0 0.0
        %2572 = vmatmul.mubr.f32.gmra.mxu0 %v2438
        %v2573 = vpop.f32.mrf.mxu0
        %v2574 = vadd.f32 0.0, %v2573
        %v2575 = vpop.f32.mrf.mxu0
        %2576 = vmatprep.mubr.f32.mxu0 0.0
        %2577 = vmatmul.mubr.f32.gmra.mxu0 %v2441
        %v2578 = vpop.f32.mrf.mxu0
        %v2579 = vadd.f32 0.0, %v2578
        %v2580 = vpop.f32.mrf.mxu0
        %2581 = vmatprep.mubr.f32.mxu0 0.0
        %2582 = vmatmul.mubr.f32.gmra.mxu0 %v2444
        %v2583 = vpop.f32.mrf.mxu0
        %v2584 = vadd.f32 0.0, %v2583
        %v2585 = vpop.f32.mrf.mxu0
        %2586 = vmatprep.mubr.f32.mxu0 0.0
        %2587 = vmatmul.mubr.f32.gmra.mxu0 %v2447
        %v2588 = vpop.f32.mrf.mxu0
        %v2589 = vadd.f32 0.0, %v2588
        %v2590 = vpop.f32.mrf.mxu0
        %2591 = vmatprep.mubr.f32.mxu0 0.0
        %2592 = vmatmul.mubr.f32.gmra.mxu0 %v2450
        %v2593 = vpop.f32.mrf.mxu0
        %v2594 = vadd.f32 0.0, %v2593
        %v2595 = vpop.f32.mrf.mxu0
        %2596 = vdwg.mxu0
        %v2598 = vsel %vm1190, %v1659, 0
        %v2601 = vsel %vm1190, %v1664, 0
        %v2604 = vsel %vm1190, %v1669, 0
        %v2607 = vsel %vm1190, %v1674, 0
        %v2610 = vsel %vm1190, %v1679, 0
        %v2613 = vsel %vm1190, %v1684, 0
        %v2616 = vsel %vm1190, %v1689, 0
        %v2619 = vsel %vm1190, %v1694, 0
        %v2622 = vsel %vm1190, %v1699, 0
        %v2625 = vsel %vm1190, %v1704, 0
        %v2628 = vsel %vm1190, %v1709, 0
        %v2631 = vsel %vm1190, %v1714, 0
        %v2634 = vsel %vm1190, %v1719, 0
        %v2637 = vsel %vm1190, %v1724, 0
        %v2640 = vsel %vm1190, %v1729, 0
        %v2643 = vsel %vm1190, %v1734, 0
        %2645 = vmatprep.subr.mxu0 0.0
        %2646 = vmatpush1.msra.mxu0 0.0
        %2647 = vmatprep.subr.mxu0 0.0
        %2648 = vmatpush1.msra.mxu0 0.0
        %2649 = vmatprep.subr.mxu0 0.0
        %2650 = vmatpush1.msra.mxu0 0.0
        %2651 = vmatprep.subr.mxu0 0.0
        %2652 = vmatpush1.msra.mxu0 0.0
        %2653 = vmatprep.subr.mxu0 0.0
        %2654 = vmatpush1.msra.mxu0 0.0
        %2655 = vmatprep.subr.mxu0 0.0
        %2656 = vmatpush1.msra.mxu0 0.0
        %2657 = vmatprep.subr.mxu0 0.0
        %2658 = vmatpush1.msra.mxu0 0.0
        %2659 = vmatprep.subr.mxu0 0.0
        %2660 = vmatpush1.msra.mxu0 0.0
        %2661 = vmatprep.subr.mxu0 0.0
        %2662 = vmatpush1.msra.mxu0 0.0
        %2663 = vmatprep.subr.mxu0 0.0
        %2664 = vmatpush1.msra.mxu0 0.0
        %2665 = vmatprep.subr.mxu0 0.0
        %2666 = vmatpush1.msra.mxu0 0.0
        %2667 = vmatprep.subr.mxu0 0.0
        %2668 = vmatpush1.msra.mxu0 0.0
        %2669 = vmatprep.subr.mxu0 0.0
        %2670 = vmatpush1.msra.mxu0 %v1740
        %2671 = vmatprep.subr.mxu0 0.0
        %2672 = vmatpush1.msra.mxu0 %v1739
        %2673 = vmatprep.subr.mxu0 0.0
        %2674 = vmatpush1.msra.mxu0 %v1738
        %2675 = vmatprep.subr.mxu0 0.0
        %2676 = vmatpush1.msra.mxu0 %v1737
        %2677 = vmatprep.subr.mxu0 0.0
        %2678 = vmatpush2.msra.mxu0 0.0
        %2679 = vmatprep.subr.mxu0 0.0
        %2680 = vmatpush2.msra.mxu0 0.0
        %2681 = vmatprep.subr.mxu0 0.0
        %2682 = vmatpush2.msra.mxu0 0.0
        %2683 = vmatprep.subr.mxu0 0.0
        %2684 = vmatpush2.msra.mxu0 0.0
        %2685 = vmatprep.subr.mxu0 0.0
        %2686 = vmatpush2.msra.mxu0 0.0
        %2687 = vmatprep.subr.mxu0 0.0
        %2688 = vmatpush2.msra.mxu0 0.0
        %2689 = vmatprep.subr.mxu0 0.0
        %2690 = vmatpush2.msra.mxu0 0.0
        %2691 = vmatprep.subr.mxu0 0.0
        %2692 = vmatpush2.msra.mxu0 0.0
        %2693 = vmatprep.subr.mxu0 0.0
        %2694 = vmatpush2.msra.mxu0 0.0
        %2695 = vmatprep.subr.mxu0 0.0
        %2696 = vmatpush2.msra.mxu0 0.0
        %2697 = vmatprep.subr.mxu0 0.0
        %2698 = vmatpush2.msra.mxu0 0.0
        %2699 = vmatprep.subr.mxu0 0.0
        %2700 = vmatpush2.msra.mxu0 0.0
        %2701 = vmatprep.subr.mxu0 0.0
        %2702 = vmatpush2.msra.mxu0 0.0
        %2703 = vmatprep.subr.mxu0 0.0
        %2704 = vmatpush2.msra.mxu0 0.0
        %2705 = vmatprep.subr.mxu0 0.0
        %2706 = vmatpush2.msra.mxu0 0.0
        %2707 = vmatprep.subr.mxu0 0.0
        %2708 = vmatpush2.msra.mxu0 0.0
        %2709 = vmatprep.mubr.f32.mxu0 0.0
        %2710 = vmatmul.mubr.f32.gmra.mxu0 %v2598
        %v2711 = vpop.f32.mrf.mxu0
        %v2712 = vadd.f32 %v2519, %v2711
        %v2713 = vpop.f32.mrf.mxu0
        %2714 = vmatprep.mubr.f32.mxu0 0.0
        %2715 = vmatmul.mubr.f32.gmra.mxu0 %v2601
        %v2716 = vpop.f32.mrf.mxu0
        %v2717 = vadd.f32 %v2524, %v2716
        %v2718 = vpop.f32.mrf.mxu0
        %2719 = vmatprep.mubr.f32.mxu0 0.0
        %2720 = vmatmul.mubr.f32.gmra.mxu0 %v2604
        %v2721 = vpop.f32.mrf.mxu0
        %v2722 = vadd.f32 %v2529, %v2721
        %v2723 = vpop.f32.mrf.mxu0
        %2724 = vmatprep.mubr.f32.mxu0 0.0
        %2725 = vmatmul.mubr.f32.gmra.mxu0 %v2607
        %v2726 = vpop.f32.mrf.mxu0
        %v2727 = vadd.f32 %v2534, %v2726
        %v2728 = vpop.f32.mrf.mxu0
        %2729 = vmatprep.mubr.f32.mxu0 0.0
        %2730 = vmatmul.mubr.f32.gmra.mxu0 %v2610
        %v2731 = vpop.f32.mrf.mxu0
        %v2732 = vadd.f32 %v2539, %v2731
        %v2733 = vpop.f32.mrf.mxu0
        %2734 = vmatprep.mubr.f32.mxu0 0.0
        %2735 = vmatmul.mubr.f32.gmra.mxu0 %v2613
        %v2736 = vpop.f32.mrf.mxu0
        %v2737 = vadd.f32 %v2544, %v2736
        %v2738 = vpop.f32.mrf.mxu0
        %2739 = vmatprep.mubr.f32.mxu0 0.0
        %2740 = vmatmul.mubr.f32.gmra.mxu0 %v2616
        %v2741 = vpop.f32.mrf.mxu0
        %v2742 = vadd.f32 %v2549, %v2741
        %v2743 = vpop.f32.mrf.mxu0
        %2744 = vmatprep.mubr.f32.mxu0 0.0
        %2745 = vmatmul.mubr.f32.gmra.mxu0 %v2619
        %v2746 = vpop.f32.mrf.mxu0
        %v2747 = vadd.f32 %v2554, %v2746
        %v2748 = vpop.f32.mrf.mxu0
        %2749 = vmatprep.mubr.f32.mxu0 0.0
        %2750 = vmatmul.mubr.f32.gmra.mxu0 %v2622
        %v2751 = vpop.f32.mrf.mxu0
        %v2752 = vadd.f32 %v2559, %v2751
        %v2753 = vpop.f32.mrf.mxu0
        %2754 = vmatprep.mubr.f32.mxu0 0.0
        %2755 = vmatmul.mubr.f32.gmra.mxu0 %v2625
        %v2756 = vpop.f32.mrf.mxu0
        %v2757 = vadd.f32 %v2564, %v2756
        %v2758 = vpop.f32.mrf.mxu0
        %2759 = vmatprep.mubr.f32.mxu0 0.0
        %2760 = vmatmul.mubr.f32.gmra.mxu0 %v2628
        %v2761 = vpop.f32.mrf.mxu0
        %v2762 = vadd.f32 %v2569, %v2761
        %v2763 = vpop.f32.mrf.mxu0
        %2764 = vmatprep.mubr.f32.mxu0 0.0
        %2765 = vmatmul.mubr.f32.gmra.mxu0 %v2631
        %v2766 = vpop.f32.mrf.mxu0
        %v2767 = vadd.f32 %v2574, %v2766
        %v2768 = vpop.f32.mrf.mxu0
        %2769 = vmatprep.mubr.f32.mxu0 0.0
        %2770 = vmatmul.mubr.f32.gmra.mxu0 %v2634
        %v2771 = vpop.f32.mrf.mxu0
        %v2772 = vadd.f32 %v2579, %v2771
        %v2773 = vpop.f32.mrf.mxu0
        %2774 = vmatprep.mubr.f32.mxu0 0.0
        %2775 = vmatmul.mubr.f32.gmra.mxu0 %v2637
        %v2776 = vpop.f32.mrf.mxu0
        %v2777 = vadd.f32 %v2584, %v2776
        %v2778 = vpop.f32.mrf.mxu0
        %2779 = vmatprep.mubr.f32.mxu0 0.0
        %2780 = vmatmul.mubr.f32.gmra.mxu0 %v2640
        %v2781 = vpop.f32.mrf.mxu0
        %v2782 = vadd.f32 %v2589, %v2781
        %v2783 = vpop.f32.mrf.mxu0
        %2784 = vmatprep.mubr.f32.mxu0 0.0
        %2785 = vmatmul.mubr.f32.gmra.mxu0 %v2643
        %v2786 = vpop.f32.mrf.mxu0
        %v2787 = vadd.f32 %v2594, %v2786
        %v2788 = vpop.f32.mrf.mxu0
        %2789 = vdwg.mxu0
        %s2790 = scalar_lea.vmem [#allocation7], 256
        %v2791 = vld [vmem:[%s2790] sm:$0xff]
        %v2792 = vld [vmem:[%s2790 + $0x8] sm:$0xff]
        %v2793 = vld [vmem:[%s2790 + $0x10] sm:$0xff]
        %v2794 = vld [vmem:[%s2790 + $0x18] sm:$0xff]
        %v2795 = vld [vmem:[%s2790 + $0x20] sm:$0xff]
        %v2796 = vld [vmem:[%s2790 + $0x28] sm:$0xff]
        %v2797 = vld [vmem:[%s2790 + $0x30] sm:$0xff]
        %v2798 = vld [vmem:[%s2790 + $0x38] sm:$0xff]
        %v2799 = vld [vmem:[%s2790 + $0x40] sm:$0xff]
        %v2800 = vld [vmem:[%s2790 + $0x48] sm:$0xff]
        %v2801 = vld [vmem:[%s2790 + $0x50] sm:$0xff]
        %v2802 = vld [vmem:[%s2790 + $0x58] sm:$0xff]
        %v2803 = vld [vmem:[%s2790 + $0x60] sm:$0xff]
        %v2804 = vld [vmem:[%s2790 + $0x68] sm:$0xff]
        %v2805 = vld [vmem:[%s2790 + $0x70] sm:$0xff]
        %v2806 = vld [vmem:[%s2790 + $0x78] sm:$0xff]
        %2807 = vrot.lane.b32.xlu0 %v834, 64
        %v2808 = vpop.permute.xlu0 %2807
        %2809 = vrot.lane.b32.xlu0 %v840, 64
        %v2810 = vpop.permute.xlu0 %2809
        %2811 = vrot.lane.b32.xlu0 %v846, 64
        %v2812 = vpop.permute.xlu0 %2811
        %2813 = vrot.lane.b32.xlu0 %v852, 64
        %v2814 = vpop.permute.xlu0 %2813
        %2815 = vrot.lane.b32.xlu0 %v858, 64
        %v2816 = vpop.permute.xlu0 %2815
        %2817 = vrot.lane.b32.xlu0 %v864, 64
        %v2818 = vpop.permute.xlu0 %2817
        %2819 = vrot.lane.b32.xlu0 %v870, 64
        %v2820 = vpop.permute.xlu0 %2819
        %2821 = vrot.lane.b32.xlu0 %v876, 64
        %v2822 = vpop.permute.xlu0 %2821
        %2823 = vrot.lane.b32.xlu0 %v882, 64
        %v2824 = vpop.permute.xlu0 %2823
        %2825 = vrot.lane.b32.xlu0 %v888, 64
        %v2826 = vpop.permute.xlu0 %2825
        %2827 = vrot.lane.b32.xlu0 %v894, 64
        %v2828 = vpop.permute.xlu0 %2827
        %2829 = vrot.lane.b32.xlu0 %v900, 64
        %v2830 = vpop.permute.xlu0 %2829
        %2831 = vrot.lane.b32.xlu0 %v906, 64
        %v2832 = vpop.permute.xlu0 %2831
        %2833 = vrot.lane.b32.xlu0 %v912, 64
        %v2834 = vpop.permute.xlu0 %2833
        %2835 = vrot.lane.b32.xlu0 %v918, 64
        %v2836 = vpop.permute.xlu0 %2835
        %2837 = vrot.lane.b32.xlu0 %v924, 64
        %v2838 = vpop.permute.xlu0 %2837
        %2839 = vrot.lane.b32.xlu0 %v836, 64
        %v2840 = vpop.permute.xlu0 %2839
        %2841 = vrot.lane.b32.xlu0 %v842, 64
        %v2842 = vpop.permute.xlu0 %2841
        %2843 = vrot.lane.b32.xlu0 %v848, 64
        %v2844 = vpop.permute.xlu0 %2843
        %2845 = vrot.lane.b32.xlu0 %v854, 64
        %v2846 = vpop.permute.xlu0 %2845
        %2847 = vrot.lane.b32.xlu0 %v860, 64
        %v2848 = vpop.permute.xlu0 %2847
        %2849 = vrot.lane.b32.xlu0 %v866, 64
        %v2850 = vpop.permute.xlu0 %2849
        %2851 = vrot.lane.b32.xlu0 %v872, 64
        %v2852 = vpop.permute.xlu0 %2851
        %2853 = vrot.lane.b32.xlu0 %v878, 64
        %v2854 = vpop.permute.xlu0 %2853
        %2855 = vrot.lane.b32.xlu0 %v884, 64
        %v2856 = vpop.permute.xlu0 %2855
        %2857 = vrot.lane.b32.xlu0 %v890, 64
        %v2858 = vpop.permute.xlu0 %2857
        %2859 = vrot.lane.b32.xlu0 %v896, 64
        %v2860 = vpop.permute.xlu0 %2859
        %2861 = vrot.lane.b32.xlu0 %v902, 64
        %v2862 = vpop.permute.xlu0 %2861
        %2863 = vrot.lane.b32.xlu0 %v908, 64
        %v2864 = vpop.permute.xlu0 %2863
        %2865 = vrot.lane.b32.xlu0 %v914, 64
        %v2866 = vpop.permute.xlu0 %2865
        %2867 = vrot.lane.b32.xlu0 %v920, 64
        %v2868 = vpop.permute.xlu0 %2867
        %2869 = vrot.lane.b32.xlu0 %v926, 64
        %v2870 = vpop.permute.xlu0 %2869
        %v2871 = vsel %vm1190, %v2808, 0
        %v2873 = vsel %vm1190, %v2810, 0
        %v2875 = vsel %vm1190, %v2812, 0
        %v2877 = vsel %vm1190, %v2814, 0
        %v2879 = vsel %vm1190, %v2816, 0
        %v2881 = vsel %vm1190, %v2818, 0
        %v2883 = vsel %vm1190, %v2820, 0
        %v2885 = vsel %vm1190, %v2822, 0
        %v2887 = vsel %vm1190, %v2824, 0
        %v2889 = vsel %vm1190, %v2826, 0
        %v2891 = vsel %vm1190, %v2828, 0
        %v2893 = vsel %vm1190, %v2830, 0
        %v2895 = vsel %vm1190, %v2832, 0
        %v2897 = vsel %vm1190, %v2834, 0
        %v2899 = vsel %vm1190, %v2836, 0
        %v2901 = vsel %vm1190, %v2838, 0
        %v2903 = vsel %vm1190, %v2840, 0
        %v2905 = vsel %vm1190, %v2842, 0
        %v2907 = vsel %vm1190, %v2844, 0
        %v2909 = vsel %vm1190, %v2846, 0
        %v2911 = vsel %vm1190, %v2848, 0
        %v2913 = vsel %vm1190, %v2850, 0
        %v2915 = vsel %vm1190, %v2852, 0
        %v2917 = vsel %vm1190, %v2854, 0
        %v2919 = vsel %vm1190, %v2856, 0
        %v2921 = vsel %vm1190, %v2858, 0
        %v2923 = vsel %vm1190, %v2860, 0
        %v2925 = vsel %vm1190, %v2862, 0
        %v2927 = vsel %vm1190, %v2864, 0
        %v2929 = vsel %vm1190, %v2866, 0
        %v2931 = vsel %vm1190, %v2868, 0
        %v2933 = vsel %vm1190, %v2870, 0
        %2935 = vmatprep.subr.mxu0 0.0
        %2936 = vmatpush1.xpose.msra.mxu0 %v2933
        %2937 = vmatprep.subr.mxu0 0.0
        %2938 = vmatpush1.xpose.msra.mxu0 %v2931
        %2939 = vmatprep.subr.mxu0 0.0
        %2940 = vmatpush1.xpose.msra.mxu0 %v2929
        %2941 = vmatprep.subr.mxu0 0.0
        %2942 = vmatpush1.xpose.msra.mxu0 %v2927
        %2943 = vmatprep.subr.mxu0 0.0
        %2944 = vmatpush1.xpose.msra.mxu0 %v2925
        %2945 = vmatprep.subr.mxu0 0.0
        %2946 = vmatpush1.xpose.msra.mxu0 %v2923
        %2947 = vmatprep.subr.mxu0 0.0
        %2948 = vmatpush1.xpose.msra.mxu0 %v2921
        %2949 = vmatprep.subr.mxu0 0.0
        %2950 = vmatpush1.xpose.msra.mxu0 %v2919
        %2951 = vmatprep.subr.mxu0 0.0
        %2952 = vmatpush1.xpose.msra.mxu0 %v2917
        %2953 = vmatprep.subr.mxu0 0.0
        %2954 = vmatpush1.xpose.msra.mxu0 %v2915
        %2955 = vmatprep.subr.mxu0 0.0
        %2956 = vmatpush1.xpose.msra.mxu0 %v2913
        %2957 = vmatprep.subr.mxu0 0.0
        %2958 = vmatpush1.xpose.msra.mxu0 %v2911
        %2959 = vmatprep.subr.mxu0 0.0
        %2960 = vmatpush1.xpose.msra.mxu0 %v2909
        %2961 = vmatprep.subr.mxu0 0.0
        %2962 = vmatpush1.xpose.msra.mxu0 %v2907
        %2963 = vmatprep.subr.mxu0 0.0
        %2964 = vmatpush1.xpose.msra.mxu0 %v2905
        %2965 = vmatprep.subr.mxu0 0.0
        %2966 = vmatpush1.xpose.msra.mxu0 %v2903
        %2967 = vmatprep.subr.mxu0 0.0
        %2968 = vmatpush2.xpose.msra.mxu0 0.0
        %2969 = vmatprep.subr.mxu0 0.0
        %2970 = vmatpush2.xpose.msra.mxu0 0.0
        %2971 = vmatprep.subr.mxu0 0.0
        %2972 = vmatpush2.xpose.msra.mxu0 0.0
        %2973 = vmatprep.subr.mxu0 0.0
        %2974 = vmatpush2.xpose.msra.mxu0 0.0
        %2975 = vmatprep.subr.mxu0 0.0
        %2976 = vmatpush2.xpose.msra.mxu0 0.0
        %2977 = vmatprep.subr.mxu0 0.0
        %2978 = vmatpush2.xpose.msra.mxu0 0.0
        %2979 = vmatprep.subr.mxu0 0.0
        %2980 = vmatpush2.xpose.msra.mxu0 0.0
        %2981 = vmatprep.subr.mxu0 0.0
        %2982 = vmatpush2.xpose.msra.mxu0 0.0
        %2983 = vmatprep.subr.mxu0 0.0
        %2984 = vmatpush2.xpose.msra.mxu0 0.0
        %2985 = vmatprep.subr.mxu0 0.0
        %2986 = vmatpush2.xpose.msra.mxu0 0.0
        %2987 = vmatprep.subr.mxu0 0.0
        %2988 = vmatpush2.xpose.msra.mxu0 0.0
        %2989 = vmatprep.subr.mxu0 0.0
        %2990 = vmatpush2.xpose.msra.mxu0 0.0
        %2991 = vmatprep.subr.mxu0 0.0
        %2992 = vmatpush2.xpose.msra.mxu0 0.0
        %2993 = vmatprep.subr.mxu0 0.0
        %2994 = vmatpush2.xpose.msra.mxu0 0.0
        %2995 = vmatprep.subr.mxu0 0.0
        %2996 = vmatpush2.xpose.msra.mxu0 0.0
        %2997 = vmatprep.subr.mxu0 0.0
        %2998 = vmatpush2.xpose.msra.mxu0 0.0
        %2999 = vmatprep.mubr.f32.mxu0 0.0
        %3000 = vmatmul.mubr.f32.gmra.mxu0 %v2871
        %v3001 = vpop.f32.mrf.mxu0
        %v3002 = vadd.f32 %v2791, %v3001
        %v3003 = vpop.f32.mrf.mxu0
        %3004 = vmatprep.mubr.f32.mxu0 0.0
        %3005 = vmatmul.mubr.f32.gmra.mxu0 %v2873
        %v3006 = vpop.f32.mrf.mxu0
        %v3007 = vadd.f32 %v2792, %v3006
        %v3008 = vpop.f32.mrf.mxu0
        %3009 = vmatprep.mubr.f32.mxu0 0.0
        %3010 = vmatmul.mubr.f32.gmra.mxu0 %v2875
        %v3011 = vpop.f32.mrf.mxu0
        %v3012 = vadd.f32 %v2793, %v3011
        %v3013 = vpop.f32.mrf.mxu0
        %3014 = vmatprep.mubr.f32.mxu0 0.0
        %3015 = vmatmul.mubr.f32.gmra.mxu0 %v2877
        %v3016 = vpop.f32.mrf.mxu0
        %v3017 = vadd.f32 %v2794, %v3016
        %v3018 = vpop.f32.mrf.mxu0
        %3019 = vmatprep.mubr.f32.mxu0 0.0
        %3020 = vmatmul.mubr.f32.gmra.mxu0 %v2879
        %v3021 = vpop.f32.mrf.mxu0
        %v3022 = vadd.f32 %v2795, %v3021
        %v3023 = vpop.f32.mrf.mxu0
        %3024 = vmatprep.mubr.f32.mxu0 0.0
        %3025 = vmatmul.mubr.f32.gmra.mxu0 %v2881
        %v3026 = vpop.f32.mrf.mxu0
        %v3027 = vadd.f32 %v2796, %v3026
        %v3028 = vpop.f32.mrf.mxu0
        %3029 = vmatprep.mubr.f32.mxu0 0.0
        %3030 = vmatmul.mubr.f32.gmra.mxu0 %v2883
        %v3031 = vpop.f32.mrf.mxu0
        %v3032 = vadd.f32 %v2797, %v3031
        %v3033 = vpop.f32.mrf.mxu0
        %3034 = vmatprep.mubr.f32.mxu0 0.0
        %3035 = vmatmul.mubr.f32.gmra.mxu0 %v2885
        %v3036 = vpop.f32.mrf.mxu0
        %v3037 = vadd.f32 %v2798, %v3036
        %v3038 = vpop.f32.mrf.mxu0
        %3039 = vmatprep.mubr.f32.mxu0 0.0
        %3040 = vmatmul.mubr.f32.gmra.mxu0 %v2887
        %v3041 = vpop.f32.mrf.mxu0
        %v3042 = vadd.f32 %v2799, %v3041
        %v3043 = vpop.f32.mrf.mxu0
        %3044 = vmatprep.mubr.f32.mxu0 0.0
        %3045 = vmatmul.mubr.f32.gmra.mxu0 %v2889
        %v3046 = vpop.f32.mrf.mxu0
        %v3047 = vadd.f32 %v2800, %v3046
        %v3048 = vpop.f32.mrf.mxu0
        %3049 = vmatprep.mubr.f32.mxu0 0.0
        %3050 = vmatmul.mubr.f32.gmra.mxu0 %v2891
        %v3051 = vpop.f32.mrf.mxu0
        %v3052 = vadd.f32 %v2801, %v3051
        %v3053 = vpop.f32.mrf.mxu0
        %3054 = vmatprep.mubr.f32.mxu0 0.0
        %3055 = vmatmul.mubr.f32.gmra.mxu0 %v2893
        %v3056 = vpop.f32.mrf.mxu0
        %v3057 = vadd.f32 %v2802, %v3056
        %v3058 = vpop.f32.mrf.mxu0
        %3059 = vmatprep.mubr.f32.mxu0 0.0
        %3060 = vmatmul.mubr.f32.gmra.mxu0 %v2895
        %v3061 = vpop.f32.mrf.mxu0
        %v3062 = vadd.f32 %v2803, %v3061
        %v3063 = vpop.f32.mrf.mxu0
        %3064 = vmatprep.mubr.f32.mxu0 0.0
        %3065 = vmatmul.mubr.f32.gmra.mxu0 %v2897
        %v3066 = vpop.f32.mrf.mxu0
        %v3067 = vadd.f32 %v2804, %v3066
        %v3068 = vpop.f32.mrf.mxu0
        %3069 = vmatprep.mubr.f32.mxu0 0.0
        %3070 = vmatmul.mubr.f32.gmra.mxu0 %v2899
        %v3071 = vpop.f32.mrf.mxu0
        %v3072 = vadd.f32 %v2805, %v3071
        %v3073 = vpop.f32.mrf.mxu0
        %3074 = vmatprep.mubr.f32.mxu0 0.0
        %3075 = vmatmul.mubr.f32.gmra.mxu0 %v2901
        %v3076 = vpop.f32.mrf.mxu0
        %v3077 = vadd.f32 %v2806, %v3076
        %v3078 = vpop.f32.mrf.mxu0
        %3079 = vdwg.mxu0
        %v3080 = vadd.f32 %v3002, %v1158
        %v3081 = vadd.f32 %v3007, %v1159
        %v3082 = vadd.f32 %v3012, %v1160
        %v3083 = vadd.f32 %v3017, %v1161
        %v3084 = vadd.f32 %v3022, %v1162
        %v3085 = vadd.f32 %v3027, %v1163
        %v3086 = vadd.f32 %v3032, %v1164
        %v3087 = vadd.f32 %v3037, %v1165
        %v3088 = vadd.f32 %v3042, %v1166
        %v3089 = vadd.f32 %v3047, %v1167
        %v3090 = vadd.f32 %v3052, %v1168
        %v3091 = vadd.f32 %v3057, %v1169
        %v3092 = vadd.f32 %v3062, %v1170
        %v3093 = vadd.f32 %v3067, %v1171
        %v3094 = vadd.f32 %v3072, %v1172
        %v3095 = vadd.f32 %v3077, %v1173
        %3096 = vmax.xlane.f32.xlu0 %v3080
        %v3097 = vpop.xlane.xlu0 %3096
        %3098 = vmax.xlane.f32.xlu0 %v3081
        %v3099 = vpop.xlane.xlu0 %3098
        %3100 = vmax.xlane.f32.xlu0 %v3082
        %v3101 = vpop.xlane.xlu0 %3100
        %3102 = vmax.xlane.f32.xlu0 %v3083
        %v3103 = vpop.xlane.xlu0 %3102
        %3104 = vmax.xlane.f32.xlu0 %v3084
        %v3105 = vpop.xlane.xlu0 %3104
        %3106 = vmax.xlane.f32.xlu0 %v3085
        %v3107 = vpop.xlane.xlu0 %3106
        %3108 = vmax.xlane.f32.xlu0 %v3086
        %v3109 = vpop.xlane.xlu0 %3108
        %3110 = vmax.xlane.f32.xlu0 %v3087
        %v3111 = vpop.xlane.xlu0 %3110
        %3112 = vmax.xlane.f32.xlu0 %v3088
        %v3113 = vpop.xlane.xlu0 %3112
        %3114 = vmax.xlane.f32.xlu0 %v3089
        %v3115 = vpop.xlane.xlu0 %3114
        %3116 = vmax.xlane.f32.xlu0 %v3090
        %v3117 = vpop.xlane.xlu0 %3116
        %3118 = vmax.xlane.f32.xlu0 %v3091
        %v3119 = vpop.xlane.xlu0 %3118
        %3120 = vmax.xlane.f32.xlu0 %v3092
        %v3121 = vpop.xlane.xlu0 %3120
        %3122 = vmax.xlane.f32.xlu0 %v3093
        %v3123 = vpop.xlane.xlu0 %3122
        %3124 = vmax.xlane.f32.xlu0 %v3094
        %v3125 = vpop.xlane.xlu0 %3124
        %3126 = vmax.xlane.f32.xlu0 %v3095
        %v3127 = vpop.xlane.xlu0 %3126
        %v3128 = vsub.f32 %v3080, %v3097
        %v3129 = vsub.f32 %v3081, %v3099
        %v3130 = vsub.f32 %v3082, %v3101
        %v3131 = vsub.f32 %v3083, %v3103
        %v3132 = vsub.f32 %v3084, %v3105
        %v3133 = vsub.f32 %v3085, %v3107
        %v3134 = vsub.f32 %v3086, %v3109
        %v3135 = vsub.f32 %v3087, %v3111
        %v3136 = vsub.f32 %v3088, %v3113
        %v3137 = vsub.f32 %v3089, %v3115
        %v3138 = vsub.f32 %v3090, %v3117
        %v3139 = vsub.f32 %v3091, %v3119
        %v3140 = vsub.f32 %v3092, %v3121
        %v3141 = vsub.f32 %v3093, %v3123
        %v3142 = vsub.f32 %v3094, %v3125
        %v3143 = vsub.f32 %v3095, %v3127
        %v3144 = vmul.f32 %v3128, 1.442695
        %v3145 = vpow.pop %v3144
        %v3146 = vmul.f32 %v3129, 1.442695
        %v3147 = vpow.pop %v3146
        %v3148 = vmul.f32 %v3130, 1.442695
        %v3149 = vpow.pop %v3148
        %v3150 = vmul.f32 %v3131, 1.442695
        %v3151 = vpow.pop %v3150
        %v3152 = vmul.f32 %v3132, 1.442695
        %v3153 = vpow.pop %v3152
        %v3154 = vmul.f32 %v3133, 1.442695
        %v3155 = vpow.pop %v3154
        %v3156 = vmul.f32 %v3134, 1.442695
        %v3157 = vpow.pop %v3156
        %v3158 = vmul.f32 %v3135, 1.442695
        %v3159 = vpow.pop %v3158
        %v3160 = vmul.f32 %v3136, 1.442695
        %v3161 = vpow.pop %v3160
        %v3162 = vmul.f32 %v3137, 1.442695
        %v3163 = vpow.pop %v3162
        %v3164 = vmul.f32 %v3138, 1.442695
        %v3165 = vpow.pop %v3164
        %v3166 = vmul.f32 %v3139, 1.442695
        %v3167 = vpow.pop %v3166
        %v3168 = vmul.f32 %v3140, 1.442695
        %v3169 = vpow.pop %v3168
        %v3170 = vmul.f32 %v3141, 1.442695
        %v3171 = vpow.pop %v3170
        %v3172 = vmul.f32 %v3142, 1.442695
        %v3173 = vpow.pop %v3172
        %v3174 = vmul.f32 %v3143, 1.442695
        %v3175 = vpow.pop %v3174
        %3176 = vadd.xlane.f32.xlu0 %v3145
        %v3177 = vpop.xlane.xlu0 %3176
        %3178 = vadd.xlane.f32.xlu0 %v3147
        %v3179 = vpop.xlane.xlu0 %3178
        %3180 = vadd.xlane.f32.xlu0 %v3149
        %v3181 = vpop.xlane.xlu0 %3180
        %3182 = vadd.xlane.f32.xlu0 %v3151
        %v3183 = vpop.xlane.xlu0 %3182
        %3184 = vadd.xlane.f32.xlu0 %v3153
        %v3185 = vpop.xlane.xlu0 %3184
        %3186 = vadd.xlane.f32.xlu0 %v3155
        %v3187 = vpop.xlane.xlu0 %3186
        %3188 = vadd.xlane.f32.xlu0 %v3157
        %v3189 = vpop.xlane.xlu0 %3188
        %3190 = vadd.xlane.f32.xlu0 %v3159
        %v3191 = vpop.xlane.xlu0 %3190
        %3192 = vadd.xlane.f32.xlu0 %v3161
        %v3193 = vpop.xlane.xlu0 %3192
        %3194 = vadd.xlane.f32.xlu0 %v3163
        %v3195 = vpop.xlane.xlu0 %3194
        %3196 = vadd.xlane.f32.xlu0 %v3165
        %v3197 = vpop.xlane.xlu0 %3196
        %3198 = vadd.xlane.f32.xlu0 %v3167
        %v3199 = vpop.xlane.xlu0 %3198
        %3200 = vadd.xlane.f32.xlu0 %v3169
        %v3201 = vpop.xlane.xlu0 %3200
        %3202 = vadd.xlane.f32.xlu0 %v3171
        %v3203 = vpop.xlane.xlu0 %3202
        %3204 = vadd.xlane.f32.xlu0 %v3173
        %v3205 = vpop.xlane.xlu0 %3204
        %3206 = vadd.xlane.f32.xlu0 %v3175
        %v3207 = vpop.xlane.xlu0 %3206
        %v3208 = vrcp.pop %v3177
        %v3209 = vrcp.pop %v3179
        %v3210 = vrcp.pop %v3181
        %v3211 = vrcp.pop %v3183
        %v3212 = vrcp.pop %v3185
        %v3213 = vrcp.pop %v3187
        %v3214 = vrcp.pop %v3189
        %v3215 = vrcp.pop %v3191
        %v3216 = vrcp.pop %v3193
        %v3217 = vrcp.pop %v3195
        %v3218 = vrcp.pop %v3197
        %v3219 = vrcp.pop %v3199
        %v3220 = vrcp.pop %v3201
        %v3221 = vrcp.pop %v3203
        %v3222 = vrcp.pop %v3205
        %v3223 = vrcp.pop %v3207
        %v3224 = vmul.f32 %v3145, %v3208
        %v3225 = vmul.f32 %v3147, %v3209
        %v3226 = vmul.f32 %v3149, %v3210
        %v3227 = vmul.f32 %v3151, %v3211
        %v3228 = vmul.f32 %v3153, %v3212
        %v3229 = vmul.f32 %v3155, %v3213
        %v3230 = vmul.f32 %v3157, %v3214
        %v3231 = vmul.f32 %v3159, %v3215
        %v3232 = vmul.f32 %v3161, %v3216
        %v3233 = vmul.f32 %v3163, %v3217
        %v3234 = vmul.f32 %v3165, %v3218
        %v3235 = vmul.f32 %v3167, %v3219
        %v3236 = vmul.f32 %v3169, %v3220
        %v3237 = vmul.f32 %v3171, %v3221
        %v3238 = vmul.f32 %v3173, %v3222
        %v3239 = vmul.f32 %v3175, %v3223
        %3240 = vrot.lane.b32.xlu0 %v995, 64
        %v3241 = vpop.permute.xlu0 %3240
        %3242 = vrot.lane.b32.xlu0 %v1000, 64
        %v3243 = vpop.permute.xlu0 %3242
        %3244 = vrot.lane.b32.xlu0 %v1005, 64
        %v3245 = vpop.permute.xlu0 %3244
        %3246 = vrot.lane.b32.xlu0 %v1010, 64
        %v3247 = vpop.permute.xlu0 %3246
        %3248 = vrot.lane.b32.xlu0 %v1015, 64
        %v3249 = vpop.permute.xlu0 %3248
        %3250 = vrot.lane.b32.xlu0 %v1020, 64
        %v3251 = vpop.permute.xlu0 %3250
        %3252 = vrot.lane.b32.xlu0 %v1025, 64
        %v3253 = vpop.permute.xlu0 %3252
        %3254 = vrot.lane.b32.xlu0 %v1030, 64
        %v3255 = vpop.permute.xlu0 %3254
        %3256 = vrot.lane.b32.xlu0 %v1035, 64
        %v3257 = vpop.permute.xlu0 %3256
        %3258 = vrot.lane.b32.xlu0 %v1040, 64
        %v3259 = vpop.permute.xlu0 %3258
        %3260 = vrot.lane.b32.xlu0 %v1045, 64
        %v3261 = vpop.permute.xlu0 %3260
        %3262 = vrot.lane.b32.xlu0 %v1050, 64
        %v3263 = vpop.permute.xlu0 %3262
        %3264 = vrot.lane.b32.xlu0 %v1055, 64
        %v3265 = vpop.permute.xlu0 %3264
        %3266 = vrot.lane.b32.xlu0 %v1060, 64
        %v3267 = vpop.permute.xlu0 %3266
        %3268 = vrot.lane.b32.xlu0 %v1065, 64
        %v3269 = vpop.permute.xlu0 %3268
        %3270 = vrot.lane.b32.xlu0 %v1070, 64
        %v3271 = vpop.permute.xlu0 %3270
        %3288 = vmatprep.subr.mxu0 0.0
        %3289 = vmatpush1.msra.mxu0 %v3271
        %3290 = vmatprep.subr.mxu0 0.0
        %3291 = vmatpush1.msra.mxu0 %v3269
        %3292 = vmatprep.subr.mxu0 0.0
        %3293 = vmatpush1.msra.mxu0 %v3267
        %3294 = vmatprep.subr.mxu0 0.0
        %3295 = vmatpush1.msra.mxu0 %v3265
        %3296 = vmatprep.subr.mxu0 0.0
        %3297 = vmatpush1.msra.mxu0 %v3263
        %3298 = vmatprep.subr.mxu0 0.0
        %3299 = vmatpush1.msra.mxu0 %v3261
        %3300 = vmatprep.subr.mxu0 0.0
        %3301 = vmatpush1.msra.mxu0 %v3259
        %3302 = vmatprep.subr.mxu0 0.0
        %3303 = vmatpush1.msra.mxu0 %v3257
        %3304 = vmatprep.subr.mxu0 0.0
        %3305 = vmatpush1.msra.mxu0 %v3255
        %3306 = vmatprep.subr.mxu0 0.0
        %3307 = vmatpush1.msra.mxu0 %v3253
        %3308 = vmatprep.subr.mxu0 0.0
        %3309 = vmatpush1.msra.mxu0 %v3251
        %3310 = vmatprep.subr.mxu0 0.0
        %3311 = vmatpush1.msra.mxu0 %v3249
        %3312 = vmatprep.subr.mxu0 0.0
        %3313 = vmatpush1.msra.mxu0 %v3247
        %3314 = vmatprep.subr.mxu0 0.0
        %3315 = vmatpush1.msra.mxu0 %v3245
        %3316 = vmatprep.subr.mxu0 0.0
        %3317 = vmatpush1.msra.mxu0 %v3243
        %3318 = vmatprep.subr.mxu0 0.0
        %3319 = vmatpush1.msra.mxu0 %v3241
        %3320 = vmatprep.subr.mxu0 0.0
        %3321 = vmatpush2.msra.mxu0 0.0
        %3322 = vmatprep.subr.mxu0 0.0
        %3323 = vmatpush2.msra.mxu0 0.0
        %3324 = vmatprep.subr.mxu0 0.0
        %3325 = vmatpush2.msra.mxu0 0.0
        %3326 = vmatprep.subr.mxu0 0.0
        %3327 = vmatpush2.msra.mxu0 0.0
        %3328 = vmatprep.subr.mxu0 0.0
        %3329 = vmatpush2.msra.mxu0 0.0
        %3330 = vmatprep.subr.mxu0 0.0
        %3331 = vmatpush2.msra.mxu0 0.0
        %3332 = vmatprep.subr.mxu0 0.0
        %3333 = vmatpush2.msra.mxu0 0.0
        %3334 = vmatprep.subr.mxu0 0.0
        %3335 = vmatpush2.msra.mxu0 0.0
        %3336 = vmatprep.subr.mxu0 0.0
        %3337 = vmatpush2.msra.mxu0 0.0
        %3338 = vmatprep.subr.mxu0 0.0
        %3339 = vmatpush2.msra.mxu0 0.0
        %3340 = vmatprep.subr.mxu0 0.0
        %3341 = vmatpush2.msra.mxu0 0.0
        %3342 = vmatprep.subr.mxu0 0.0
        %3343 = vmatpush2.msra.mxu0 0.0
        %3344 = vmatprep.subr.mxu0 0.0
        %3345 = vmatpush2.msra.mxu0 0.0
        %3346 = vmatprep.subr.mxu0 0.0
        %3347 = vmatpush2.msra.mxu0 0.0
        %3348 = vmatprep.subr.mxu0 0.0
        %3349 = vmatpush2.msra.mxu0 0.0
        %3350 = vmatprep.subr.mxu0 0.0
        %3351 = vmatpush2.msra.mxu0 0.0
        %3352 = vmatprep.mubr.f32.mxu0 0.0
        %3353 = vmatmul.mubr.f32.gmra.mxu0 %v3224
        %v3354 = vpop.f32.mrf.mxu0
        %v3355 = vadd.f32 0.0, %v3354
        %v3356 = vpop.f32.mrf.mxu0
        %3357 = vmatprep.mubr.f32.mxu0 0.0
        %3358 = vmatmul.mubr.f32.gmra.mxu0 %v3225
        %v3359 = vpop.f32.mrf.mxu0
        %v3360 = vadd.f32 0.0, %v3359
        %v3361 = vpop.f32.mrf.mxu0
        %3362 = vmatprep.mubr.f32.mxu0 0.0
        %3363 = vmatmul.mubr.f32.gmra.mxu0 %v3226
        %v3364 = vpop.f32.mrf.mxu0
        %v3365 = vadd.f32 0.0, %v3364
        %v3366 = vpop.f32.mrf.mxu0
        %3367 = vmatprep.mubr.f32.mxu0 0.0
        %3368 = vmatmul.mubr.f32.gmra.mxu0 %v3227
        %v3369 = vpop.f32.mrf.mxu0
        %v3370 = vadd.f32 0.0, %v3369
        %v3371 = vpop.f32.mrf.mxu0
        %3372 = vmatprep.mubr.f32.mxu0 0.0
        %3373 = vmatmul.mubr.f32.gmra.mxu0 %v3228
        %v3374 = vpop.f32.mrf.mxu0
        %v3375 = vadd.f32 0.0, %v3374
        %v3376 = vpop.f32.mrf.mxu0
        %3377 = vmatprep.mubr.f32.mxu0 0.0
        %3378 = vmatmul.mubr.f32.gmra.mxu0 %v3229
        %v3379 = vpop.f32.mrf.mxu0
        %v3380 = vadd.f32 0.0, %v3379
        %v3381 = vpop.f32.mrf.mxu0
        %3382 = vmatprep.mubr.f32.mxu0 0.0
        %3383 = vmatmul.mubr.f32.gmra.mxu0 %v3230
        %v3384 = vpop.f32.mrf.mxu0
        %v3385 = vadd.f32 0.0, %v3384
        %v3386 = vpop.f32.mrf.mxu0
        %3387 = vmatprep.mubr.f32.mxu0 0.0
        %3388 = vmatmul.mubr.f32.gmra.mxu0 %v3231
        %v3389 = vpop.f32.mrf.mxu0
        %v3390 = vadd.f32 0.0, %v3389
        %v3391 = vpop.f32.mrf.mxu0
        %3392 = vmatprep.mubr.f32.mxu0 0.0
        %3393 = vmatmul.mubr.f32.gmra.mxu0 %v3232
        %v3394 = vpop.f32.mrf.mxu0
        %v3395 = vadd.f32 0.0, %v3394
        %v3396 = vpop.f32.mrf.mxu0
        %3397 = vmatprep.mubr.f32.mxu0 0.0
        %3398 = vmatmul.mubr.f32.gmra.mxu0 %v3233
        %v3399 = vpop.f32.mrf.mxu0
        %v3400 = vadd.f32 0.0, %v3399
        %v3401 = vpop.f32.mrf.mxu0
        %3402 = vmatprep.mubr.f32.mxu0 0.0
        %3403 = vmatmul.mubr.f32.gmra.mxu0 %v3234
        %v3404 = vpop.f32.mrf.mxu0
        %v3405 = vadd.f32 0.0, %v3404
        %v3406 = vpop.f32.mrf.mxu0
        %3407 = vmatprep.mubr.f32.mxu0 0.0
        %3408 = vmatmul.mubr.f32.gmra.mxu0 %v3235
        %v3409 = vpop.f32.mrf.mxu0
        %v3410 = vadd.f32 0.0, %v3409
        %v3411 = vpop.f32.mrf.mxu0
        %3412 = vmatprep.mubr.f32.mxu0 0.0
        %3413 = vmatmul.mubr.f32.gmra.mxu0 %v3236
        %v3414 = vpop.f32.mrf.mxu0
        %v3415 = vadd.f32 0.0, %v3414
        %v3416 = vpop.f32.mrf.mxu0
        %3417 = vmatprep.mubr.f32.mxu0 0.0
        %3418 = vmatmul.mubr.f32.gmra.mxu0 %v3237
        %v3419 = vpop.f32.mrf.mxu0
        %v3420 = vadd.f32 0.0, %v3419
        %v3421 = vpop.f32.mrf.mxu0
        %3422 = vmatprep.mubr.f32.mxu0 0.0
        %3423 = vmatmul.mubr.f32.gmra.mxu0 %v3238
        %v3424 = vpop.f32.mrf.mxu0
        %v3425 = vadd.f32 0.0, %v3424
        %v3426 = vpop.f32.mrf.mxu0
        %3427 = vmatprep.mubr.f32.mxu0 0.0
        %3428 = vmatmul.mubr.f32.gmra.mxu0 %v3239
        %v3429 = vpop.f32.mrf.mxu0
        %v3430 = vadd.f32 0.0, %v3429
        %v3431 = vpop.f32.mrf.mxu0
        %3432 = vdwg.mxu0
        %v3433 = vld [vmem:[%s8 + $0x40] sm:$0xff]
        %v3434 = vld [vmem:[%s8 + $0x48] sm:$0xff]
        %v3435 = vld [vmem:[%s8 + $0x50] sm:$0xff]
        %v3436 = vld [vmem:[%s8 + $0x58] sm:$0xff]
        %v3438 = vsel %vm1190, %v3355, 0
        %v3441 = vsel %vm1190, %v3360, 0
        %v3444 = vsel %vm1190, %v3365, 0
        %v3447 = vsel %vm1190, %v3370, 0
        %v3450 = vsel %vm1190, %v3375, 0
        %v3453 = vsel %vm1190, %v3380, 0
        %v3456 = vsel %vm1190, %v3385, 0
        %v3459 = vsel %vm1190, %v3390, 0
        %v3462 = vsel %vm1190, %v3395, 0
        %v3465 = vsel %vm1190, %v3400, 0
        %v3468 = vsel %vm1190, %v3405, 0
        %v3471 = vsel %vm1190, %v3410, 0
        %v3474 = vsel %vm1190, %v3415, 0
        %v3477 = vsel %vm1190, %v3420, 0
        %v3480 = vsel %vm1190, %v3425, 0
        %v3483 = vsel %vm1190, %v3430, 0
        %3485 = vmatprep.subr.mxu0 0.0
        %3486 = vmatpush1.msra.mxu0 0.0
        %3487 = vmatprep.subr.mxu0 0.0
        %3488 = vmatpush1.msra.mxu0 0.0
        %3489 = vmatprep.subr.mxu0 0.0
        %3490 = vmatpush1.msra.mxu0 0.0
        %3491 = vmatprep.subr.mxu0 0.0
        %3492 = vmatpush1.msra.mxu0 0.0
        %3493 = vmatprep.subr.mxu0 0.0
        %3494 = vmatpush1.msra.mxu0 0.0
        %3495 = vmatprep.subr.mxu0 0.0
        %3496 = vmatpush1.msra.mxu0 0.0
        %3497 = vmatprep.subr.mxu0 0.0
        %3498 = vmatpush1.msra.mxu0 0.0
        %3499 = vmatprep.subr.mxu0 0.0
        %3500 = vmatpush1.msra.mxu0 0.0
        %3501 = vmatprep.subr.mxu0 0.0
        %3502 = vmatpush1.msra.mxu0 0.0
        %3503 = vmatprep.subr.mxu0 0.0
        %3504 = vmatpush1.msra.mxu0 0.0
        %3505 = vmatprep.subr.mxu0 0.0
        %3506 = vmatpush1.msra.mxu0 0.0
        %3507 = vmatprep.subr.mxu0 0.0
        %3508 = vmatpush1.msra.mxu0 0.0
        %3509 = vmatprep.subr.mxu0 0.0
        %3510 = vmatpush1.msra.mxu0 %v3436
        %3511 = vmatprep.subr.mxu0 0.0
        %3512 = vmatpush1.msra.mxu0 %v3435
        %3513 = vmatprep.subr.mxu0 0.0
        %3514 = vmatpush1.msra.mxu0 %v3434
        %3515 = vmatprep.subr.mxu0 0.0
        %3516 = vmatpush1.msra.mxu0 %v3433
        %3517 = vmatprep.subr.mxu0 0.0
        %3518 = vmatpush2.msra.mxu0 0.0
        %3519 = vmatprep.subr.mxu0 0.0
        %3520 = vmatpush2.msra.mxu0 0.0
        %3521 = vmatprep.subr.mxu0 0.0
        %3522 = vmatpush2.msra.mxu0 0.0
        %3523 = vmatprep.subr.mxu0 0.0
        %3524 = vmatpush2.msra.mxu0 0.0
        %3525 = vmatprep.subr.mxu0 0.0
        %3526 = vmatpush2.msra.mxu0 0.0
        %3527 = vmatprep.subr.mxu0 0.0
        %3528 = vmatpush2.msra.mxu0 0.0
        %3529 = vmatprep.subr.mxu0 0.0
        %3530 = vmatpush2.msra.mxu0 0.0
        %3531 = vmatprep.subr.mxu0 0.0
        %3532 = vmatpush2.msra.mxu0 0.0
        %3533 = vmatprep.subr.mxu0 0.0
        %3534 = vmatpush2.msra.mxu0 0.0
        %3535 = vmatprep.subr.mxu0 0.0
        %3536 = vmatpush2.msra.mxu0 0.0
        %3537 = vmatprep.subr.mxu0 0.0
        %3538 = vmatpush2.msra.mxu0 0.0
        %3539 = vmatprep.subr.mxu0 0.0
        %3540 = vmatpush2.msra.mxu0 0.0
        %3541 = vmatprep.subr.mxu0 0.0
        %3542 = vmatpush2.msra.mxu0 0.0
        %3543 = vmatprep.subr.mxu0 0.0
        %3544 = vmatpush2.msra.mxu0 0.0
        %3545 = vmatprep.subr.mxu0 0.0
        %3546 = vmatpush2.msra.mxu0 0.0
        %3547 = vmatprep.subr.mxu0 0.0
        %3548 = vmatpush2.msra.mxu0 0.0
        %3549 = vmatprep.mubr.f32.mxu0 0.0
        %3550 = vmatmul.mubr.f32.gmra.mxu0 %v3438
        %v3551 = vpop.f32.mrf.mxu0
        %v3552 = vadd.f32 0.0, %v3551
        %v3553 = vpop.f32.mrf.mxu0
        %3554 = vmatprep.mubr.f32.mxu0 0.0
        %3555 = vmatmul.mubr.f32.gmra.mxu0 %v3441
        %v3556 = vpop.f32.mrf.mxu0
        %v3557 = vadd.f32 0.0, %v3556
        %v3558 = vpop.f32.mrf.mxu0
        %3559 = vmatprep.mubr.f32.mxu0 0.0
        %3560 = vmatmul.mubr.f32.gmra.mxu0 %v3444
        %v3561 = vpop.f32.mrf.mxu0
        %v3562 = vadd.f32 0.0, %v3561
        %v3563 = vpop.f32.mrf.mxu0
        %3564 = vmatprep.mubr.f32.mxu0 0.0
        %3565 = vmatmul.mubr.f32.gmra.mxu0 %v3447
        %v3566 = vpop.f32.mrf.mxu0
        %v3567 = vadd.f32 0.0, %v3566
        %v3568 = vpop.f32.mrf.mxu0
        %3569 = vmatprep.mubr.f32.mxu0 0.0
        %3570 = vmatmul.mubr.f32.gmra.mxu0 %v3450
        %v3571 = vpop.f32.mrf.mxu0
        %v3572 = vadd.f32 0.0, %v3571
        %v3573 = vpop.f32.mrf.mxu0
        %3574 = vmatprep.mubr.f32.mxu0 0.0
        %3575 = vmatmul.mubr.f32.gmra.mxu0 %v3453
        %v3576 = vpop.f32.mrf.mxu0
        %v3577 = vadd.f32 0.0, %v3576
        %v3578 = vpop.f32.mrf.mxu0
        %3579 = vmatprep.mubr.f32.mxu0 0.0
        %3580 = vmatmul.mubr.f32.gmra.mxu0 %v3456
        %v3581 = vpop.f32.mrf.mxu0
        %v3582 = vadd.f32 0.0, %v3581
        %v3583 = vpop.f32.mrf.mxu0
        %3584 = vmatprep.mubr.f32.mxu0 0.0
        %3585 = vmatmul.mubr.f32.gmra.mxu0 %v3459
        %v3586 = vpop.f32.mrf.mxu0
        %v3587 = vadd.f32 0.0, %v3586
        %v3588 = vpop.f32.mrf.mxu0
        %3589 = vmatprep.mubr.f32.mxu0 0.0
        %3590 = vmatmul.mubr.f32.gmra.mxu0 %v3462
        %v3591 = vpop.f32.mrf.mxu0
        %v3592 = vadd.f32 0.0, %v3591
        %v3593 = vpop.f32.mrf.mxu0
        %3594 = vmatprep.mubr.f32.mxu0 0.0
        %3595 = vmatmul.mubr.f32.gmra.mxu0 %v3465
        %v3596 = vpop.f32.mrf.mxu0
        %v3597 = vadd.f32 0.0, %v3596
        %v3598 = vpop.f32.mrf.mxu0
        %3599 = vmatprep.mubr.f32.mxu0 0.0
        %3600 = vmatmul.mubr.f32.gmra.mxu0 %v3468
        %v3601 = vpop.f32.mrf.mxu0
        %v3602 = vadd.f32 0.0, %v3601
        %v3603 = vpop.f32.mrf.mxu0
        %3604 = vmatprep.mubr.f32.mxu0 0.0
        %3605 = vmatmul.mubr.f32.gmra.mxu0 %v3471
        %v3606 = vpop.f32.mrf.mxu0
        %v3607 = vadd.f32 0.0, %v3606
        %v3608 = vpop.f32.mrf.mxu0
        %3609 = vmatprep.mubr.f32.mxu0 0.0
        %3610 = vmatmul.mubr.f32.gmra.mxu0 %v3474
        %v3611 = vpop.f32.mrf.mxu0
        %v3612 = vadd.f32 0.0, %v3611
        %v3613 = vpop.f32.mrf.mxu0
        %3614 = vmatprep.mubr.f32.mxu0 0.0
        %3615 = vmatmul.mubr.f32.gmra.mxu0 %v3477
        %v3616 = vpop.f32.mrf.mxu0
        %v3617 = vadd.f32 0.0, %v3616
        %v3618 = vpop.f32.mrf.mxu0
        %3619 = vmatprep.mubr.f32.mxu0 0.0
        %3620 = vmatmul.mubr.f32.gmra.mxu0 %v3480
        %v3621 = vpop.f32.mrf.mxu0
        %v3622 = vadd.f32 0.0, %v3621
        %v3623 = vpop.f32.mrf.mxu0
        %3624 = vmatprep.mubr.f32.mxu0 0.0
        %3625 = vmatmul.mubr.f32.gmra.mxu0 %v3483
        %v3626 = vpop.f32.mrf.mxu0
        %v3627 = vadd.f32 0.0, %v3626
        %v3628 = vpop.f32.mrf.mxu0
        %3629 = vdwg.mxu0
        %v3630 = vadd.f32 %v2712, %v3552
        %v3631 = vadd.f32 %v2717, %v3557
        %v3632 = vadd.f32 %v2722, %v3562
        %v3633 = vadd.f32 %v2727, %v3567
        %v3634 = vadd.f32 %v2732, %v3572
        %v3635 = vadd.f32 %v2737, %v3577
        %v3636 = vadd.f32 %v2742, %v3582
        %v3637 = vadd.f32 %v2747, %v3587
        %v3638 = vadd.f32 %v2752, %v3592
        %v3639 = vadd.f32 %v2757, %v3597
        %v3640 = vadd.f32 %v2762, %v3602
        %v3641 = vadd.f32 %v2767, %v3607
        %v3642 = vadd.f32 %v2772, %v3612
        %v3643 = vadd.f32 %v2777, %v3617
        %v3644 = vadd.f32 %v2782, %v3622
        %v3645 = vadd.f32 %v2787, %v3627
        %s3646 = scalar_lea.vmem [#allocation7], 384
        %v3647 = vld [vmem:[%s3646] sm:$0xff]
        %v3648 = vld [vmem:[%s3646 + $0x8] sm:$0xff]
        %v3649 = vld [vmem:[%s3646 + $0x10] sm:$0xff]
        %v3650 = vld [vmem:[%s3646 + $0x18] sm:$0xff]
        %v3651 = vld [vmem:[%s3646 + $0x20] sm:$0xff]
        %v3652 = vld [vmem:[%s3646 + $0x28] sm:$0xff]
        %v3653 = vld [vmem:[%s3646 + $0x30] sm:$0xff]
        %v3654 = vld [vmem:[%s3646 + $0x38] sm:$0xff]
        %v3655 = vld [vmem:[%s3646 + $0x40] sm:$0xff]
        %v3656 = vld [vmem:[%s3646 + $0x48] sm:$0xff]
        %v3657 = vld [vmem:[%s3646 + $0x50] sm:$0xff]
        %v3658 = vld [vmem:[%s3646 + $0x58] sm:$0xff]
        %v3659 = vld [vmem:[%s3646 + $0x60] sm:$0xff]
        %v3660 = vld [vmem:[%s3646 + $0x68] sm:$0xff]
        %v3661 = vld [vmem:[%s3646 + $0x70] sm:$0xff]
        %v3662 = vld [vmem:[%s3646 + $0x78] sm:$0xff]
        %3663 = vrot.lane.b32.xlu0 %v834, 32
        %v3664 = vpop.permute.xlu0 %3663
        %3665 = vrot.lane.b32.xlu0 %v840, 32
        %v3666 = vpop.permute.xlu0 %3665
        %3667 = vrot.lane.b32.xlu0 %v846, 32
        %v3668 = vpop.permute.xlu0 %3667
        %3669 = vrot.lane.b32.xlu0 %v852, 32
        %v3670 = vpop.permute.xlu0 %3669
        %3671 = vrot.lane.b32.xlu0 %v858, 32
        %v3672 = vpop.permute.xlu0 %3671
        %3673 = vrot.lane.b32.xlu0 %v864, 32
        %v3674 = vpop.permute.xlu0 %3673
        %3675 = vrot.lane.b32.xlu0 %v870, 32
        %v3676 = vpop.permute.xlu0 %3675
        %3677 = vrot.lane.b32.xlu0 %v876, 32
        %v3678 = vpop.permute.xlu0 %3677
        %3679 = vrot.lane.b32.xlu0 %v882, 32
        %v3680 = vpop.permute.xlu0 %3679
        %3681 = vrot.lane.b32.xlu0 %v888, 32
        %v3682 = vpop.permute.xlu0 %3681
        %3683 = vrot.lane.b32.xlu0 %v894, 32
        %v3684 = vpop.permute.xlu0 %3683
        %3685 = vrot.lane.b32.xlu0 %v900, 32
        %v3686 = vpop.permute.xlu0 %3685
        %3687 = vrot.lane.b32.xlu0 %v906, 32
        %v3688 = vpop.permute.xlu0 %3687
        %3689 = vrot.lane.b32.xlu0 %v912, 32
        %v3690 = vpop.permute.xlu0 %3689
        %3691 = vrot.lane.b32.xlu0 %v918, 32
        %v3692 = vpop.permute.xlu0 %3691
        %3693 = vrot.lane.b32.xlu0 %v924, 32
        %v3694 = vpop.permute.xlu0 %3693
        %3695 = vrot.lane.b32.xlu0 %v836, 32
        %v3696 = vpop.permute.xlu0 %3695
        %3697 = vrot.lane.b32.xlu0 %v842, 32
        %v3698 = vpop.permute.xlu0 %3697
        %3699 = vrot.lane.b32.xlu0 %v848, 32
        %v3700 = vpop.permute.xlu0 %3699
        %3701 = vrot.lane.b32.xlu0 %v854, 32
        %v3702 = vpop.permute.xlu0 %3701
        %3703 = vrot.lane.b32.xlu0 %v860, 32
        %v3704 = vpop.permute.xlu0 %3703
        %3705 = vrot.lane.b32.xlu0 %v866, 32
        %v3706 = vpop.permute.xlu0 %3705
        %3707 = vrot.lane.b32.xlu0 %v872, 32
        %v3708 = vpop.permute.xlu0 %3707
        %3709 = vrot.lane.b32.xlu0 %v878, 32
        %v3710 = vpop.permute.xlu0 %3709
        %3711 = vrot.lane.b32.xlu0 %v884, 32
        %v3712 = vpop.permute.xlu0 %3711
        %3713 = vrot.lane.b32.xlu0 %v890, 32
        %v3714 = vpop.permute.xlu0 %3713
        %3715 = vrot.lane.b32.xlu0 %v896, 32
        %v3716 = vpop.permute.xlu0 %3715
        %3717 = vrot.lane.b32.xlu0 %v902, 32
        %v3718 = vpop.permute.xlu0 %3717
        %3719 = vrot.lane.b32.xlu0 %v908, 32
        %v3720 = vpop.permute.xlu0 %3719
        %3721 = vrot.lane.b32.xlu0 %v914, 32
        %v3722 = vpop.permute.xlu0 %3721
        %3723 = vrot.lane.b32.xlu0 %v920, 32
        %v3724 = vpop.permute.xlu0 %3723
        %3725 = vrot.lane.b32.xlu0 %v926, 32
        %v3726 = vpop.permute.xlu0 %3725
        %v3727 = vsel %vm1190, %v3664, 0
        %v3729 = vsel %vm1190, %v3666, 0
        %v3731 = vsel %vm1190, %v3668, 0
        %v3733 = vsel %vm1190, %v3670, 0
        %v3735 = vsel %vm1190, %v3672, 0
        %v3737 = vsel %vm1190, %v3674, 0
        %v3739 = vsel %vm1190, %v3676, 0
        %v3741 = vsel %vm1190, %v3678, 0
        %v3743 = vsel %vm1190, %v3680, 0
        %v3745 = vsel %vm1190, %v3682, 0
        %v3747 = vsel %vm1190, %v3684, 0
        %v3749 = vsel %vm1190, %v3686, 0
        %v3751 = vsel %vm1190, %v3688, 0
        %v3753 = vsel %vm1190, %v3690, 0
        %v3755 = vsel %vm1190, %v3692, 0
        %v3757 = vsel %vm1190, %v3694, 0
        %v3759 = vsel %vm1190, %v3696, 0
        %v3761 = vsel %vm1190, %v3698, 0
        %v3763 = vsel %vm1190, %v3700, 0
        %v3765 = vsel %vm1190, %v3702, 0
        %v3767 = vsel %vm1190, %v3704, 0
        %v3769 = vsel %vm1190, %v3706, 0
        %v3771 = vsel %vm1190, %v3708, 0
        %v3773 = vsel %vm1190, %v3710, 0
        %v3775 = vsel %vm1190, %v3712, 0
        %v3777 = vsel %vm1190, %v3714, 0
        %v3779 = vsel %vm1190, %v3716, 0
        %v3781 = vsel %vm1190, %v3718, 0
        %v3783 = vsel %vm1190, %v3720, 0
        %v3785 = vsel %vm1190, %v3722, 0
        %v3787 = vsel %vm1190, %v3724, 0
        %v3789 = vsel %vm1190, %v3726, 0
        %3791 = vmatprep.subr.mxu0 0.0
        %3792 = vmatpush1.xpose.msra.mxu0 %v3789
        %3793 = vmatprep.subr.mxu0 0.0
        %3794 = vmatpush1.xpose.msra.mxu0 %v3787
        %3795 = vmatprep.subr.mxu0 0.0
        %3796 = vmatpush1.xpose.msra.mxu0 %v3785
        %3797 = vmatprep.subr.mxu0 0.0
        %3798 = vmatpush1.xpose.msra.mxu0 %v3783
        %3799 = vmatprep.subr.mxu0 0.0
        %3800 = vmatpush1.xpose.msra.mxu0 %v3781
        %3801 = vmatprep.subr.mxu0 0.0
        %3802 = vmatpush1.xpose.msra.mxu0 %v3779
        %3803 = vmatprep.subr.mxu0 0.0
        %3804 = vmatpush1.xpose.msra.mxu0 %v3777
        %3805 = vmatprep.subr.mxu0 0.0
        %3806 = vmatpush1.xpose.msra.mxu0 %v3775
        %3807 = vmatprep.subr.mxu0 0.0
        %3808 = vmatpush1.xpose.msra.mxu0 %v3773
        %3809 = vmatprep.subr.mxu0 0.0
        %3810 = vmatpush1.xpose.msra.mxu0 %v3771
        %3811 = vmatprep.subr.mxu0 0.0
        %3812 = vmatpush1.xpose.msra.mxu0 %v3769
        %3813 = vmatprep.subr.mxu0 0.0
        %3814 = vmatpush1.xpose.msra.mxu0 %v3767
        %3815 = vmatprep.subr.mxu0 0.0
        %3816 = vmatpush1.xpose.msra.mxu0 %v3765
        %3817 = vmatprep.subr.mxu0 0.0
        %3818 = vmatpush1.xpose.msra.mxu0 %v3763
        %3819 = vmatprep.subr.mxu0 0.0
        %3820 = vmatpush1.xpose.msra.mxu0 %v3761
        %3821 = vmatprep.subr.mxu0 0.0
        %3822 = vmatpush1.xpose.msra.mxu0 %v3759
        %3823 = vmatprep.subr.mxu0 0.0
        %3824 = vmatpush2.xpose.msra.mxu0 0.0
        %3825 = vmatprep.subr.mxu0 0.0
        %3826 = vmatpush2.xpose.msra.mxu0 0.0
        %3827 = vmatprep.subr.mxu0 0.0
        %3828 = vmatpush2.xpose.msra.mxu0 0.0
        %3829 = vmatprep.subr.mxu0 0.0
        %3830 = vmatpush2.xpose.msra.mxu0 0.0
        %3831 = vmatprep.subr.mxu0 0.0
        %3832 = vmatpush2.xpose.msra.mxu0 0.0
        %3833 = vmatprep.subr.mxu0 0.0
        %3834 = vmatpush2.xpose.msra.mxu0 0.0
        %3835 = vmatprep.subr.mxu0 0.0
        %3836 = vmatpush2.xpose.msra.mxu0 0.0
        %3837 = vmatprep.subr.mxu0 0.0
        %3838 = vmatpush2.xpose.msra.mxu0 0.0
        %3839 = vmatprep.subr.mxu0 0.0
        %3840 = vmatpush2.xpose.msra.mxu0 0.0
        %3841 = vmatprep.subr.mxu0 0.0
        %3842 = vmatpush2.xpose.msra.mxu0 0.0
        %3843 = vmatprep.subr.mxu0 0.0
        %3844 = vmatpush2.xpose.msra.mxu0 0.0
        %3845 = vmatprep.subr.mxu0 0.0
        %3846 = vmatpush2.xpose.msra.mxu0 0.0
        %3847 = vmatprep.subr.mxu0 0.0
        %3848 = vmatpush2.xpose.msra.mxu0 0.0
        %3849 = vmatprep.subr.mxu0 0.0
        %3850 = vmatpush2.xpose.msra.mxu0 0.0
        %3851 = vmatprep.subr.mxu0 0.0
        %3852 = vmatpush2.xpose.msra.mxu0 0.0
        %3853 = vmatprep.subr.mxu0 0.0
        %3854 = vmatpush2.xpose.msra.mxu0 0.0
        %3855 = vmatprep.mubr.f32.mxu0 0.0
        %3856 = vmatmul.mubr.f32.gmra.mxu0 %v3727
        %v3857 = vpop.f32.mrf.mxu0
        %v3858 = vadd.f32 %v3647, %v3857
        %v3859 = vpop.f32.mrf.mxu0
        %3860 = vmatprep.mubr.f32.mxu0 0.0
        %3861 = vmatmul.mubr.f32.gmra.mxu0 %v3729
        %v3862 = vpop.f32.mrf.mxu0
        %v3863 = vadd.f32 %v3648, %v3862
        %v3864 = vpop.f32.mrf.mxu0
        %3865 = vmatprep.mubr.f32.mxu0 0.0
        %3866 = vmatmul.mubr.f32.gmra.mxu0 %v3731
        %v3867 = vpop.f32.mrf.mxu0
        %v3868 = vadd.f32 %v3649, %v3867
        %v3869 = vpop.f32.mrf.mxu0
        %3870 = vmatprep.mubr.f32.mxu0 0.0
        %3871 = vmatmul.mubr.f32.gmra.mxu0 %v3733
        %v3872 = vpop.f32.mrf.mxu0
        %v3873 = vadd.f32 %v3650, %v3872
        %v3874 = vpop.f32.mrf.mxu0
        %3875 = vmatprep.mubr.f32.mxu0 0.0
        %3876 = vmatmul.mubr.f32.gmra.mxu0 %v3735
        %v3877 = vpop.f32.mrf.mxu0
        %v3878 = vadd.f32 %v3651, %v3877
        %v3879 = vpop.f32.mrf.mxu0
        %3880 = vmatprep.mubr.f32.mxu0 0.0
        %3881 = vmatmul.mubr.f32.gmra.mxu0 %v3737
        %v3882 = vpop.f32.mrf.mxu0
        %v3883 = vadd.f32 %v3652, %v3882
        %v3884 = vpop.f32.mrf.mxu0
        %3885 = vmatprep.mubr.f32.mxu0 0.0
        %3886 = vmatmul.mubr.f32.gmra.mxu0 %v3739
        %v3887 = vpop.f32.mrf.mxu0
        %v3888 = vadd.f32 %v3653, %v3887
        %v3889 = vpop.f32.mrf.mxu0
        %3890 = vmatprep.mubr.f32.mxu0 0.0
        %3891 = vmatmul.mubr.f32.gmra.mxu0 %v3741
        %v3892 = vpop.f32.mrf.mxu0
        %v3893 = vadd.f32 %v3654, %v3892
        %v3894 = vpop.f32.mrf.mxu0
        %3895 = vmatprep.mubr.f32.mxu0 0.0
        %3896 = vmatmul.mubr.f32.gmra.mxu0 %v3743
        %v3897 = vpop.f32.mrf.mxu0
        %v3898 = vadd.f32 %v3655, %v3897
        %v3899 = vpop.f32.mrf.mxu0
        %3900 = vmatprep.mubr.f32.mxu0 0.0
        %3901 = vmatmul.mubr.f32.gmra.mxu0 %v3745
        %v3902 = vpop.f32.mrf.mxu0
        %v3903 = vadd.f32 %v3656, %v3902
        %v3904 = vpop.f32.mrf.mxu0
        %3905 = vmatprep.mubr.f32.mxu0 0.0
        %3906 = vmatmul.mubr.f32.gmra.mxu0 %v3747
        %v3907 = vpop.f32.mrf.mxu0
        %v3908 = vadd.f32 %v3657, %v3907
        %v3909 = vpop.f32.mrf.mxu0
        %3910 = vmatprep.mubr.f32.mxu0 0.0
        %3911 = vmatmul.mubr.f32.gmra.mxu0 %v3749
        %v3912 = vpop.f32.mrf.mxu0
        %v3913 = vadd.f32 %v3658, %v3912
        %v3914 = vpop.f32.mrf.mxu0
        %3915 = vmatprep.mubr.f32.mxu0 0.0
        %3916 = vmatmul.mubr.f32.gmra.mxu0 %v3751
        %v3917 = vpop.f32.mrf.mxu0
        %v3918 = vadd.f32 %v3659, %v3917
        %v3919 = vpop.f32.mrf.mxu0
        %3920 = vmatprep.mubr.f32.mxu0 0.0
        %3921 = vmatmul.mubr.f32.gmra.mxu0 %v3753
        %v3922 = vpop.f32.mrf.mxu0
        %v3923 = vadd.f32 %v3660, %v3922
        %v3924 = vpop.f32.mrf.mxu0
        %3925 = vmatprep.mubr.f32.mxu0 0.0
        %3926 = vmatmul.mubr.f32.gmra.mxu0 %v3755
        %v3927 = vpop.f32.mrf.mxu0
        %v3928 = vadd.f32 %v3661, %v3927
        %v3929 = vpop.f32.mrf.mxu0
        %3930 = vmatprep.mubr.f32.mxu0 0.0
        %3931 = vmatmul.mubr.f32.gmra.mxu0 %v3757
        %v3932 = vpop.f32.mrf.mxu0
        %v3933 = vadd.f32 %v3662, %v3932
        %v3934 = vpop.f32.mrf.mxu0
        %3935 = vdwg.mxu0
        %v3936 = vadd.f32 %v3858, %v1158
        %v3937 = vadd.f32 %v3863, %v1159
        %v3938 = vadd.f32 %v3868, %v1160
        %v3939 = vadd.f32 %v3873, %v1161
        %v3940 = vadd.f32 %v3878, %v1162
        %v3941 = vadd.f32 %v3883, %v1163
        %v3942 = vadd.f32 %v3888, %v1164
        %v3943 = vadd.f32 %v3893, %v1165
        %v3944 = vadd.f32 %v3898, %v1166
        %v3945 = vadd.f32 %v3903, %v1167
        %v3946 = vadd.f32 %v3908, %v1168
        %v3947 = vadd.f32 %v3913, %v1169
        %v3948 = vadd.f32 %v3918, %v1170
        %v3949 = vadd.f32 %v3923, %v1171
        %v3950 = vadd.f32 %v3928, %v1172
        %v3951 = vadd.f32 %v3933, %v1173
        %3952 = vmax.xlane.f32.xlu0 %v3936
        %v3953 = vpop.xlane.xlu0 %3952
        %3954 = vmax.xlane.f32.xlu0 %v3937
        %v3955 = vpop.xlane.xlu0 %3954
        %3956 = vmax.xlane.f32.xlu0 %v3938
        %v3957 = vpop.xlane.xlu0 %3956
        %3958 = vmax.xlane.f32.xlu0 %v3939
        %v3959 = vpop.xlane.xlu0 %3958
        %3960 = vmax.xlane.f32.xlu0 %v3940
        %v3961 = vpop.xlane.xlu0 %3960
        %3962 = vmax.xlane.f32.xlu0 %v3941
        %v3963 = vpop.xlane.xlu0 %3962
        %3964 = vmax.xlane.f32.xlu0 %v3942
        %v3965 = vpop.xlane.xlu0 %3964
        %3966 = vmax.xlane.f32.xlu0 %v3943
        %v3967 = vpop.xlane.xlu0 %3966
        %3968 = vmax.xlane.f32.xlu0 %v3944
        %v3969 = vpop.xlane.xlu0 %3968
        %3970 = vmax.xlane.f32.xlu0 %v3945
        %v3971 = vpop.xlane.xlu0 %3970
        %3972 = vmax.xlane.f32.xlu0 %v3946
        %v3973 = vpop.xlane.xlu0 %3972
        %3974 = vmax.xlane.f32.xlu0 %v3947
        %v3975 = vpop.xlane.xlu0 %3974
        %3976 = vmax.xlane.f32.xlu0 %v3948
        %v3977 = vpop.xlane.xlu0 %3976
        %3978 = vmax.xlane.f32.xlu0 %v3949
        %v3979 = vpop.xlane.xlu0 %3978
        %3980 = vmax.xlane.f32.xlu0 %v3950
        %v3981 = vpop.xlane.xlu0 %3980
        %3982 = vmax.xlane.f32.xlu0 %v3951
        %v3983 = vpop.xlane.xlu0 %3982
        %v3984 = vsub.f32 %v3936, %v3953
        %v3985 = vsub.f32 %v3937, %v3955
        %v3986 = vsub.f32 %v3938, %v3957
        %v3987 = vsub.f32 %v3939, %v3959
        %v3988 = vsub.f32 %v3940, %v3961
        %v3989 = vsub.f32 %v3941, %v3963
        %v3990 = vsub.f32 %v3942, %v3965
        %v3991 = vsub.f32 %v3943, %v3967
        %v3992 = vsub.f32 %v3944, %v3969
        %v3993 = vsub.f32 %v3945, %v3971
        %v3994 = vsub.f32 %v3946, %v3973
        %v3995 = vsub.f32 %v3947, %v3975
        %v3996 = vsub.f32 %v3948, %v3977
        %v3997 = vsub.f32 %v3949, %v3979
        %v3998 = vsub.f32 %v3950, %v3981
        %v3999 = vsub.f32 %v3951, %v3983
        %v4000 = vmul.f32 %v3984, 1.442695
        %v4001 = vpow.pop %v4000
        %v4002 = vmul.f32 %v3985, 1.442695
        %v4003 = vpow.pop %v4002
        %v4004 = vmul.f32 %v3986, 1.442695
        %v4005 = vpow.pop %v4004
        %v4006 = vmul.f32 %v3987, 1.442695
        %v4007 = vpow.pop %v4006
        %v4008 = vmul.f32 %v3988, 1.442695
        %v4009 = vpow.pop %v4008
        %v4010 = vmul.f32 %v3989, 1.442695
        %v4011 = vpow.pop %v4010
        %v4012 = vmul.f32 %v3990, 1.442695
        %v4013 = vpow.pop %v4012
        %v4014 = vmul.f32 %v3991, 1.442695
        %v4015 = vpow.pop %v4014
        %v4016 = vmul.f32 %v3992, 1.442695
        %v4017 = vpow.pop %v4016
        %v4018 = vmul.f32 %v3993, 1.442695
        %v4019 = vpow.pop %v4018
        %v4020 = vmul.f32 %v3994, 1.442695
        %v4021 = vpow.pop %v4020
        %v4022 = vmul.f32 %v3995, 1.442695
        %v4023 = vpow.pop %v4022
        %v4024 = vmul.f32 %v3996, 1.442695
        %v4025 = vpow.pop %v4024
        %v4026 = vmul.f32 %v3997, 1.442695
        %v4027 = vpow.pop %v4026
        %v4028 = vmul.f32 %v3998, 1.442695
        %v4029 = vpow.pop %v4028
        %v4030 = vmul.f32 %v3999, 1.442695
        %v4031 = vpow.pop %v4030
        %4032 = vadd.xlane.f32.xlu0 %v4001
        %v4033 = vpop.xlane.xlu0 %4032
        %4034 = vadd.xlane.f32.xlu0 %v4003
        %v4035 = vpop.xlane.xlu0 %4034
        %4036 = vadd.xlane.f32.xlu0 %v4005
        %v4037 = vpop.xlane.xlu0 %4036
        %4038 = vadd.xlane.f32.xlu0 %v4007
        %v4039 = vpop.xlane.xlu0 %4038
        %4040 = vadd.xlane.f32.xlu0 %v4009
        %v4041 = vpop.xlane.xlu0 %4040
        %4042 = vadd.xlane.f32.xlu0 %v4011
        %v4043 = vpop.xlane.xlu0 %4042
        %4044 = vadd.xlane.f32.xlu0 %v4013
        %v4045 = vpop.xlane.xlu0 %4044
        %4046 = vadd.xlane.f32.xlu0 %v4015
        %v4047 = vpop.xlane.xlu0 %4046
        %4048 = vadd.xlane.f32.xlu0 %v4017
        %v4049 = vpop.xlane.xlu0 %4048
        %4050 = vadd.xlane.f32.xlu0 %v4019
        %v4051 = vpop.xlane.xlu0 %4050
        %4052 = vadd.xlane.f32.xlu0 %v4021
        %v4053 = vpop.xlane.xlu0 %4052
        %4054 = vadd.xlane.f32.xlu0 %v4023
        %v4055 = vpop.xlane.xlu0 %4054
        %4056 = vadd.xlane.f32.xlu0 %v4025
        %v4057 = vpop.xlane.xlu0 %4056
        %4058 = vadd.xlane.f32.xlu0 %v4027
        %v4059 = vpop.xlane.xlu0 %4058
        %4060 = vadd.xlane.f32.xlu0 %v4029
        %v4061 = vpop.xlane.xlu0 %4060
        %4062 = vadd.xlane.f32.xlu0 %v4031
        %v4063 = vpop.xlane.xlu0 %4062
        %v4064 = vrcp.pop %v4033
        %v4065 = vrcp.pop %v4035
        %v4066 = vrcp.pop %v4037
        %v4067 = vrcp.pop %v4039
        %v4068 = vrcp.pop %v4041
        %v4069 = vrcp.pop %v4043
        %v4070 = vrcp.pop %v4045
        %v4071 = vrcp.pop %v4047
        %v4072 = vrcp.pop %v4049
        %v4073 = vrcp.pop %v4051
        %v4074 = vrcp.pop %v4053
        %v4075 = vrcp.pop %v4055
        %v4076 = vrcp.pop %v4057
        %v4077 = vrcp.pop %v4059
        %v4078 = vrcp.pop %v4061
        %v4079 = vrcp.pop %v4063
        %v4080 = vmul.f32 %v4001, %v4064
        %v4081 = vmul.f32 %v4003, %v4065
        %v4082 = vmul.f32 %v4005, %v4066
        %v4083 = vmul.f32 %v4007, %v4067
        %v4084 = vmul.f32 %v4009, %v4068
        %v4085 = vmul.f32 %v4011, %v4069
        %v4086 = vmul.f32 %v4013, %v4070
        %v4087 = vmul.f32 %v4015, %v4071
        %v4088 = vmul.f32 %v4017, %v4072
        %v4089 = vmul.f32 %v4019, %v4073
        %v4090 = vmul.f32 %v4021, %v4074
        %v4091 = vmul.f32 %v4023, %v4075
        %v4092 = vmul.f32 %v4025, %v4076
        %v4093 = vmul.f32 %v4027, %v4077
        %v4094 = vmul.f32 %v4029, %v4078
        %v4095 = vmul.f32 %v4031, %v4079
        %4096 = vrot.lane.b32.xlu0 %v995, 32
        %v4097 = vpop.permute.xlu0 %4096
        %4098 = vrot.lane.b32.xlu0 %v1000, 32
        %v4099 = vpop.permute.xlu0 %4098
        %4100 = vrot.lane.b32.xlu0 %v1005, 32
        %v4101 = vpop.permute.xlu0 %4100
        %4102 = vrot.lane.b32.xlu0 %v1010, 32
        %v4103 = vpop.permute.xlu0 %4102
        %4104 = vrot.lane.b32.xlu0 %v1015, 32
        %v4105 = vpop.permute.xlu0 %4104
        %4106 = vrot.lane.b32.xlu0 %v1020, 32
        %v4107 = vpop.permute.xlu0 %4106
        %4108 = vrot.lane.b32.xlu0 %v1025, 32
        %v4109 = vpop.permute.xlu0 %4108
        %4110 = vrot.lane.b32.xlu0 %v1030, 32
        %v4111 = vpop.permute.xlu0 %4110
        %4112 = vrot.lane.b32.xlu0 %v1035, 32
        %v4113 = vpop.permute.xlu0 %4112
        %4114 = vrot.lane.b32.xlu0 %v1040, 32
        %v4115 = vpop.permute.xlu0 %4114
        %4116 = vrot.lane.b32.xlu0 %v1045, 32
        %v4117 = vpop.permute.xlu0 %4116
        %4118 = vrot.lane.b32.xlu0 %v1050, 32
        %v4119 = vpop.permute.xlu0 %4118
        %4120 = vrot.lane.b32.xlu0 %v1055, 32
        %v4121 = vpop.permute.xlu0 %4120
        %4122 = vrot.lane.b32.xlu0 %v1060, 32
        %v4123 = vpop.permute.xlu0 %4122
        %4124 = vrot.lane.b32.xlu0 %v1065, 32
        %v4125 = vpop.permute.xlu0 %4124
        %4126 = vrot.lane.b32.xlu0 %v1070, 32
        %v4127 = vpop.permute.xlu0 %4126
        %4144 = vmatprep.subr.mxu0 0.0
        %4145 = vmatpush1.msra.mxu0 %v4127
        %4146 = vmatprep.subr.mxu0 0.0
        %4147 = vmatpush1.msra.mxu0 %v4125
        %4148 = vmatprep.subr.mxu0 0.0
        %4149 = vmatpush1.msra.mxu0 %v4123
        %4150 = vmatprep.subr.mxu0 0.0
        %4151 = vmatpush1.msra.mxu0 %v4121
        %4152 = vmatprep.subr.mxu0 0.0
        %4153 = vmatpush1.msra.mxu0 %v4119
        %4154 = vmatprep.subr.mxu0 0.0
        %4155 = vmatpush1.msra.mxu0 %v4117
        %4156 = vmatprep.subr.mxu0 0.0
        %4157 = vmatpush1.msra.mxu0 %v4115
        %4158 = vmatprep.subr.mxu0 0.0
        %4159 = vmatpush1.msra.mxu0 %v4113
        %4160 = vmatprep.subr.mxu0 0.0
        %4161 = vmatpush1.msra.mxu0 %v4111
        %4162 = vmatprep.subr.mxu0 0.0
        %4163 = vmatpush1.msra.mxu0 %v4109
        %4164 = vmatprep.subr.mxu0 0.0
        %4165 = vmatpush1.msra.mxu0 %v4107
        %4166 = vmatprep.subr.mxu0 0.0
        %4167 = vmatpush1.msra.mxu0 %v4105
        %4168 = vmatprep.subr.mxu0 0.0
        %4169 = vmatpush1.msra.mxu0 %v4103
        %4170 = vmatprep.subr.mxu0 0.0
        %4171 = vmatpush1.msra.mxu0 %v4101
        %4172 = vmatprep.subr.mxu0 0.0
        %4173 = vmatpush1.msra.mxu0 %v4099
        %4174 = vmatprep.subr.mxu0 0.0
        %4175 = vmatpush1.msra.mxu0 %v4097
        %4176 = vmatprep.subr.mxu0 0.0
        %4177 = vmatpush2.msra.mxu0 0.0
        %4178 = vmatprep.subr.mxu0 0.0
        %4179 = vmatpush2.msra.mxu0 0.0
        %4180 = vmatprep.subr.mxu0 0.0
        %4181 = vmatpush2.msra.mxu0 0.0
        %4182 = vmatprep.subr.mxu0 0.0
        %4183 = vmatpush2.msra.mxu0 0.0
        %4184 = vmatprep.subr.mxu0 0.0
        %4185 = vmatpush2.msra.mxu0 0.0
        %4186 = vmatprep.subr.mxu0 0.0
        %4187 = vmatpush2.msra.mxu0 0.0
        %4188 = vmatprep.subr.mxu0 0.0
        %4189 = vmatpush2.msra.mxu0 0.0
        %4190 = vmatprep.subr.mxu0 0.0
        %4191 = vmatpush2.msra.mxu0 0.0
        %4192 = vmatprep.subr.mxu0 0.0
        %4193 = vmatpush2.msra.mxu0 0.0
        %4194 = vmatprep.subr.mxu0 0.0
        %4195 = vmatpush2.msra.mxu0 0.0
        %4196 = vmatprep.subr.mxu0 0.0
        %4197 = vmatpush2.msra.mxu0 0.0
        %4198 = vmatprep.subr.mxu0 0.0
        %4199 = vmatpush2.msra.mxu0 0.0
        %4200 = vmatprep.subr.mxu0 0.0
        %4201 = vmatpush2.msra.mxu0 0.0
        %4202 = vmatprep.subr.mxu0 0.0
        %4203 = vmatpush2.msra.mxu0 0.0
        %4204 = vmatprep.subr.mxu0 0.0
        %4205 = vmatpush2.msra.mxu0 0.0
        %4206 = vmatprep.subr.mxu0 0.0
        %4207 = vmatpush2.msra.mxu0 0.0
        %4208 = vmatprep.mubr.f32.mxu0 0.0
        %4209 = vmatmul.mubr.f32.gmra.mxu0 %v4080
        %v4210 = vpop.f32.mrf.mxu0
        %v4211 = vadd.f32 0.0, %v4210
        %v4212 = vpop.f32.mrf.mxu0
        %4213 = vmatprep.mubr.f32.mxu0 0.0
        %4214 = vmatmul.mubr.f32.gmra.mxu0 %v4081
        %v4215 = vpop.f32.mrf.mxu0
        %v4216 = vadd.f32 0.0, %v4215
        %v4217 = vpop.f32.mrf.mxu0
        %4218 = vmatprep.mubr.f32.mxu0 0.0
        %4219 = vmatmul.mubr.f32.gmra.mxu0 %v4082
        %v4220 = vpop.f32.mrf.mxu0
        %v4221 = vadd.f32 0.0, %v4220
        %v4222 = vpop.f32.mrf.mxu0
        %4223 = vmatprep.mubr.f32.mxu0 0.0
        %4224 = vmatmul.mubr.f32.gmra.mxu0 %v4083
        %v4225 = vpop.f32.mrf.mxu0
        %v4226 = vadd.f32 0.0, %v4225
        %v4227 = vpop.f32.mrf.mxu0
        %4228 = vmatprep.mubr.f32.mxu0 0.0
        %4229 = vmatmul.mubr.f32.gmra.mxu0 %v4084
        %v4230 = vpop.f32.mrf.mxu0
        %v4231 = vadd.f32 0.0, %v4230
        %v4232 = vpop.f32.mrf.mxu0
        %4233 = vmatprep.mubr.f32.mxu0 0.0
        %4234 = vmatmul.mubr.f32.gmra.mxu0 %v4085
        %v4235 = vpop.f32.mrf.mxu0
        %v4236 = vadd.f32 0.0, %v4235
        %v4237 = vpop.f32.mrf.mxu0
        %4238 = vmatprep.mubr.f32.mxu0 0.0
        %4239 = vmatmul.mubr.f32.gmra.mxu0 %v4086
        %v4240 = vpop.f32.mrf.mxu0
        %v4241 = vadd.f32 0.0, %v4240
        %v4242 = vpop.f32.mrf.mxu0
        %4243 = vmatprep.mubr.f32.mxu0 0.0
        %4244 = vmatmul.mubr.f32.gmra.mxu0 %v4087
        %v4245 = vpop.f32.mrf.mxu0
        %v4246 = vadd.f32 0.0, %v4245
        %v4247 = vpop.f32.mrf.mxu0
        %4248 = vmatprep.mubr.f32.mxu0 0.0
        %4249 = vmatmul.mubr.f32.gmra.mxu0 %v4088
        %v4250 = vpop.f32.mrf.mxu0
        %v4251 = vadd.f32 0.0, %v4250
        %v4252 = vpop.f32.mrf.mxu0
        %4253 = vmatprep.mubr.f32.mxu0 0.0
        %4254 = vmatmul.mubr.f32.gmra.mxu0 %v4089
        %v4255 = vpop.f32.mrf.mxu0
        %v4256 = vadd.f32 0.0, %v4255
        %v4257 = vpop.f32.mrf.mxu0
        %4258 = vmatprep.mubr.f32.mxu0 0.0
        %4259 = vmatmul.mubr.f32.gmra.mxu0 %v4090
        %v4260 = vpop.f32.mrf.mxu0
        %v4261 = vadd.f32 0.0, %v4260
        %v4262 = vpop.f32.mrf.mxu0
        %4263 = vmatprep.mubr.f32.mxu0 0.0
        %4264 = vmatmul.mubr.f32.gmra.mxu0 %v4091
        %v4265 = vpop.f32.mrf.mxu0
        %v4266 = vadd.f32 0.0, %v4265
        %v4267 = vpop.f32.mrf.mxu0
        %4268 = vmatprep.mubr.f32.mxu0 0.0
        %4269 = vmatmul.mubr.f32.gmra.mxu0 %v4092
        %v4270 = vpop.f32.mrf.mxu0
        %v4271 = vadd.f32 0.0, %v4270
        %v4272 = vpop.f32.mrf.mxu0
        %4273 = vmatprep.mubr.f32.mxu0 0.0
        %4274 = vmatmul.mubr.f32.gmra.mxu0 %v4093
        %v4275 = vpop.f32.mrf.mxu0
        %v4276 = vadd.f32 0.0, %v4275
        %v4277 = vpop.f32.mrf.mxu0
        %4278 = vmatprep.mubr.f32.mxu0 0.0
        %4279 = vmatmul.mubr.f32.gmra.mxu0 %v4094
        %v4280 = vpop.f32.mrf.mxu0
        %v4281 = vadd.f32 0.0, %v4280
        %v4282 = vpop.f32.mrf.mxu0
        %4283 = vmatprep.mubr.f32.mxu0 0.0
        %4284 = vmatmul.mubr.f32.gmra.mxu0 %v4095
        %v4285 = vpop.f32.mrf.mxu0
        %v4286 = vadd.f32 0.0, %v4285
        %v4287 = vpop.f32.mrf.mxu0
        %4288 = vdwg.mxu0
        %v4289 = vld [vmem:[%s8 + $0x60] sm:$0xff]
        %v4290 = vld [vmem:[%s8 + $0x68] sm:$0xff]
        %v4291 = vld [vmem:[%s8 + $0x70] sm:$0xff]
        %v4292 = vld [vmem:[%s8 + $0x78] sm:$0xff]
        %v4294 = vsel %vm1190, %v4211, 0
        %v4297 = vsel %vm1190, %v4216, 0
        %v4300 = vsel %vm1190, %v4221, 0
        %v4303 = vsel %vm1190, %v4226, 0
        %v4306 = vsel %vm1190, %v4231, 0
        %v4309 = vsel %vm1190, %v4236, 0
        %v4312 = vsel %vm1190, %v4241, 0
        %v4315 = vsel %vm1190, %v4246, 0
        %v4318 = vsel %vm1190, %v4251, 0
        %v4321 = vsel %vm1190, %v4256, 0
        %v4324 = vsel %vm1190, %v4261, 0
        %v4327 = vsel %vm1190, %v4266, 0
        %v4330 = vsel %vm1190, %v4271, 0
        %v4333 = vsel %vm1190, %v4276, 0
        %v4336 = vsel %vm1190, %v4281, 0
        %v4339 = vsel %vm1190, %v4286, 0
        %4341 = vmatprep.subr.mxu0 0.0
        %4342 = vmatpush1.msra.mxu0 0.0
        %4343 = vmatprep.subr.mxu0 0.0
        %4344 = vmatpush1.msra.mxu0 0.0
        %4345 = vmatprep.subr.mxu0 0.0
        %4346 = vmatpush1.msra.mxu0 0.0
        %4347 = vmatprep.subr.mxu0 0.0
        %4348 = vmatpush1.msra.mxu0 0.0
        %4349 = vmatprep.subr.mxu0 0.0
        %4350 = vmatpush1.msra.mxu0 0.0
        %4351 = vmatprep.subr.mxu0 0.0
        %4352 = vmatpush1.msra.mxu0 0.0
        %4353 = vmatprep.subr.mxu0 0.0
        %4354 = vmatpush1.msra.mxu0 0.0
        %4355 = vmatprep.subr.mxu0 0.0
        %4356 = vmatpush1.msra.mxu0 0.0
        %4357 = vmatprep.subr.mxu0 0.0
        %4358 = vmatpush1.msra.mxu0 0.0
        %4359 = vmatprep.subr.mxu0 0.0
        %4360 = vmatpush1.msra.mxu0 0.0
        %4361 = vmatprep.subr.mxu0 0.0
        %4362 = vmatpush1.msra.mxu0 0.0
        %4363 = vmatprep.subr.mxu0 0.0
        %4364 = vmatpush1.msra.mxu0 0.0
        %4365 = vmatprep.subr.mxu0 0.0
        %4366 = vmatpush1.msra.mxu0 %v4292
        %4367 = vmatprep.subr.mxu0 0.0
        %4368 = vmatpush1.msra.mxu0 %v4291
        %4369 = vmatprep.subr.mxu0 0.0
        %4370 = vmatpush1.msra.mxu0 %v4290
        %4371 = vmatprep.subr.mxu0 0.0
        %4372 = vmatpush1.msra.mxu0 %v4289
        %4373 = vmatprep.subr.mxu0 0.0
        %4374 = vmatpush2.msra.mxu0 0.0
        %4375 = vmatprep.subr.mxu0 0.0
        %4376 = vmatpush2.msra.mxu0 0.0
        %4377 = vmatprep.subr.mxu0 0.0
        %4378 = vmatpush2.msra.mxu0 0.0
        %4379 = vmatprep.subr.mxu0 0.0
        %4380 = vmatpush2.msra.mxu0 0.0
        %4381 = vmatprep.subr.mxu0 0.0
        %4382 = vmatpush2.msra.mxu0 0.0
        %4383 = vmatprep.subr.mxu0 0.0
        %4384 = vmatpush2.msra.mxu0 0.0
        %4385 = vmatprep.subr.mxu0 0.0
        %4386 = vmatpush2.msra.mxu0 0.0
        %4387 = vmatprep.subr.mxu0 0.0
        %4388 = vmatpush2.msra.mxu0 0.0
        %4389 = vmatprep.subr.mxu0 0.0
        %4390 = vmatpush2.msra.mxu0 0.0
        %4391 = vmatprep.subr.mxu0 0.0
        %4392 = vmatpush2.msra.mxu0 0.0
        %4393 = vmatprep.subr.mxu0 0.0
        %4394 = vmatpush2.msra.mxu0 0.0
        %4395 = vmatprep.subr.mxu0 0.0
        %4396 = vmatpush2.msra.mxu0 0.0
        %4397 = vmatprep.subr.mxu0 0.0
        %4398 = vmatpush2.msra.mxu0 0.0
        %4399 = vmatprep.subr.mxu0 0.0
        %4400 = vmatpush2.msra.mxu0 0.0
        %4401 = vmatprep.subr.mxu0 0.0
        %4402 = vmatpush2.msra.mxu0 0.0
        %4403 = vmatprep.subr.mxu0 0.0
        %4404 = vmatpush2.msra.mxu0 0.0
        %4405 = vmatprep.mubr.f32.mxu0 0.0
        %4406 = vmatmul.mubr.f32.gmra.mxu0 %v4294
        %v4407 = vpop.f32.mrf.mxu0
        %v4408 = vadd.f32 0.0, %v4407
        %v4409 = vpop.f32.mrf.mxu0
        %4410 = vmatprep.mubr.f32.mxu0 0.0
        %4411 = vmatmul.mubr.f32.gmra.mxu0 %v4297
        %v4412 = vpop.f32.mrf.mxu0
        %v4413 = vadd.f32 0.0, %v4412
        %v4414 = vpop.f32.mrf.mxu0
        %4415 = vmatprep.mubr.f32.mxu0 0.0
        %4416 = vmatmul.mubr.f32.gmra.mxu0 %v4300
        %v4417 = vpop.f32.mrf.mxu0
        %v4418 = vadd.f32 0.0, %v4417
        %v4419 = vpop.f32.mrf.mxu0
        %4420 = vmatprep.mubr.f32.mxu0 0.0
        %4421 = vmatmul.mubr.f32.gmra.mxu0 %v4303
        %v4422 = vpop.f32.mrf.mxu0
        %v4423 = vadd.f32 0.0, %v4422
        %v4424 = vpop.f32.mrf.mxu0
        %4425 = vmatprep.mubr.f32.mxu0 0.0
        %4426 = vmatmul.mubr.f32.gmra.mxu0 %v4306
        %v4427 = vpop.f32.mrf.mxu0
        %v4428 = vadd.f32 0.0, %v4427
        %v4429 = vpop.f32.mrf.mxu0
        %4430 = vmatprep.mubr.f32.mxu0 0.0
        %4431 = vmatmul.mubr.f32.gmra.mxu0 %v4309
        %v4432 = vpop.f32.mrf.mxu0
        %v4433 = vadd.f32 0.0, %v4432
        %v4434 = vpop.f32.mrf.mxu0
        %4435 = vmatprep.mubr.f32.mxu0 0.0
        %4436 = vmatmul.mubr.f32.gmra.mxu0 %v4312
        %v4437 = vpop.f32.mrf.mxu0
        %v4438 = vadd.f32 0.0, %v4437
        %v4439 = vpop.f32.mrf.mxu0
        %4440 = vmatprep.mubr.f32.mxu0 0.0
        %4441 = vmatmul.mubr.f32.gmra.mxu0 %v4315
        %v4442 = vpop.f32.mrf.mxu0
        %v4443 = vadd.f32 0.0, %v4442
        %v4444 = vpop.f32.mrf.mxu0
        %4445 = vmatprep.mubr.f32.mxu0 0.0
        %4446 = vmatmul.mubr.f32.gmra.mxu0 %v4318
        %v4447 = vpop.f32.mrf.mxu0
        %v4448 = vadd.f32 0.0, %v4447
        %v4449 = vpop.f32.mrf.mxu0
        %4450 = vmatprep.mubr.f32.mxu0 0.0
        %4451 = vmatmul.mubr.f32.gmra.mxu0 %v4321
        %v4452 = vpop.f32.mrf.mxu0
        %v4453 = vadd.f32 0.0, %v4452
        %v4454 = vpop.f32.mrf.mxu0
        %4455 = vmatprep.mubr.f32.mxu0 0.0
        %4456 = vmatmul.mubr.f32.gmra.mxu0 %v4324
        %v4457 = vpop.f32.mrf.mxu0
        %v4458 = vadd.f32 0.0, %v4457
        %v4459 = vpop.f32.mrf.mxu0
        %4460 = vmatprep.mubr.f32.mxu0 0.0
        %4461 = vmatmul.mubr.f32.gmra.mxu0 %v4327
        %v4462 = vpop.f32.mrf.mxu0
        %v4463 = vadd.f32 0.0, %v4462
        %v4464 = vpop.f32.mrf.mxu0
        %4465 = vmatprep.mubr.f32.mxu0 0.0
        %4466 = vmatmul.mubr.f32.gmra.mxu0 %v4330
        %v4467 = vpop.f32.mrf.mxu0
        %v4468 = vadd.f32 0.0, %v4467
        %v4469 = vpop.f32.mrf.mxu0
        %4470 = vmatprep.mubr.f32.mxu0 0.0
        %4471 = vmatmul.mubr.f32.gmra.mxu0 %v4333
        %v4472 = vpop.f32.mrf.mxu0
        %v4473 = vadd.f32 0.0, %v4472
        %v4474 = vpop.f32.mrf.mxu0
        %4475 = vmatprep.mubr.f32.mxu0 0.0
        %4476 = vmatmul.mubr.f32.gmra.mxu0 %v4336
        %v4477 = vpop.f32.mrf.mxu0
        %v4478 = vadd.f32 0.0, %v4477
        %v4479 = vpop.f32.mrf.mxu0
        %4480 = vmatprep.mubr.f32.mxu0 0.0
        %4481 = vmatmul.mubr.f32.gmra.mxu0 %v4339
        %v4482 = vpop.f32.mrf.mxu0
        %v4483 = vadd.f32 0.0, %v4482
        %v4484 = vpop.f32.mrf.mxu0
        %4485 = vdwg.mxu0
        %v4486 = vadd.f32 %v3630, %v4408
        %v4487 = vadd.f32 %v3631, %v4413
        %v4488 = vadd.f32 %v3632, %v4418
        %v4489 = vadd.f32 %v3633, %v4423
        %v4490 = vadd.f32 %v3634, %v4428
        %v4491 = vadd.f32 %v3635, %v4433
        %v4492 = vadd.f32 %v3636, %v4438
        %v4493 = vadd.f32 %v3637, %v4443
        %v4494 = vadd.f32 %v3638, %v4448
        %v4495 = vadd.f32 %v3639, %v4453
        %v4496 = vadd.f32 %v3640, %v4458
        %v4497 = vadd.f32 %v3641, %v4463
        %v4498 = vadd.f32 %v3642, %v4468
        %v4499 = vadd.f32 %v3643, %v4473
        %v4500 = vadd.f32 %v3644, %v4478
        %v4501 = vadd.f32 %v3645, %v4483
        %v4502 = vld [vmem:[%s9] sm:$0x1]
        %v4504 = vlaneseq
        %v4505 = vshrl.u32 %v4504, 7
        %v4506 = vsub.s32 0, %v4505
        %v4507 = vrot.slane %v4502, %v4506
        %v4509 = vadd.f32 %v4486, %v4507
        %v4510 = vadd.f32 %v4487, %v4507
        %v4511 = vadd.f32 %v4488, %v4507
        %v4512 = vadd.f32 %v4489, %v4507
        %v4513 = vadd.f32 %v4490, %v4507
        %v4514 = vadd.f32 %v4491, %v4507
        %v4515 = vadd.f32 %v4492, %v4507
        %v4516 = vadd.f32 %v4493, %v4507
        %v4517 = vadd.f32 %v4494, %v4507
        %v4518 = vadd.f32 %v4495, %v4507
        %v4519 = vadd.f32 %v4496, %v4507
        %v4520 = vadd.f32 %v4497, %v4507
        %v4521 = vadd.f32 %v4498, %v4507
        %v4522 = vadd.f32 %v4499, %v4507
        %v4523 = vadd.f32 %v4500, %v4507
        %v4524 = vadd.f32 %v4501, %v4507
        %4525 = vst [vmem:[%s451] sm:$0xff] %v4509
        %4526 = vst [vmem:[%s451 + $0x8] sm:$0xff] %v4510
        %4527 = vst [vmem:[%s451 + $0x10] sm:$0xff] %v4511
        %4528 = vst [vmem:[%s451 + $0x18] sm:$0xff] %v4512
        %4529 = vst [vmem:[%s451 + $0x20] sm:$0xff] %v4513
        %4530 = vst [vmem:[%s451 + $0x28] sm:$0xff] %v4514
        %4531 = vst [vmem:[%s451 + $0x30] sm:$0xff] %v4515
        %4532 = vst [vmem:[%s451 + $0x38] sm:$0xff] %v4516
        %4533 = vst [vmem:[%s451 + $0x40] sm:$0xff] %v4517
        %4534 = vst [vmem:[%s451 + $0x48] sm:$0xff] %v4518
        %4535 = vst [vmem:[%s451 + $0x50] sm:$0xff] %v4519
        %4536 = vst [vmem:[%s451 + $0x58] sm:$0xff] %v4520
        %4537 = vst [vmem:[%s451 + $0x60] sm:$0xff] %v4521
        %4538 = vst [vmem:[%s451 + $0x68] sm:$0xff] %v4522
        %4539 = vst [vmem:[%s451 + $0x70] sm:$0xff] %v4523
        %4540 = vst [vmem:[%s451 + $0x78] sm:$0xff] %v4524
        %s4541 = sand.u32 %s277, 1
        %s4542 = scalar_lea.sflag [#allocation4], %s4541
        %s4543 = sand.u32 %s277, 1
        %s4544 = smul.addr %s4543, 128
        %s4545 = scalar_lea.vmem [#allocation8], %s4544
        // Predicated region
        $region73: #{tpu_custom_call.1} parent=59 // pred_check
          %p4546 = pneg %p287
        $region74: #{tpu_custom_call.1} parent=59 // pred_check_branch
          %4548 = sbr.rel (%p4546) target = $region76
        $region75: #{tpu_custom_call.1} parent=59 // pred_region
          %s4549 = smul.u32 16, %s33
          %s4551 = ssub.s32 2048, 2048
          %4552 = vsyncadd %s4542, %s4551
          %s4553 = smul.addr %s32, 32
          %s4554 = sadd.s32 %s4549, %s4553
          %s4555 = smul.addr %s4554, 128
          %s4556 = scalar_lea.hbm %s10, %s4555
          %s4557 = sshll.u32 %s4545, 4
          %s4558 = int_to_ptr.vmem [resolvable:$true] %s4557
          %4563 = dma.vmem_to_hbm [thread:$0]  %s4558, 2048, %s4556, %s4542, 128, 128, 8
        $region76: #{tpu_custom_call.1} parent=59 // pred_fallthru
          _
      $region60: #{tpu_custom_call.1} parent=5 // pred_fallthru
        _
      %p4564 = scmp.le.s32.totalorder 2, %s23
      // Predicated region
      $region77: #{tpu_custom_call.1} parent=5 // pred_check
        %p4565 = pneg %p4564
      $region78: #{tpu_custom_call.1} parent=5 // pred_check_branch
        %4567 = sbr.rel (%p4565) target = $region80
      $region79: #{tpu_custom_call.1} parent=5 // pred_region
        %s4568 = ssub.s32 %s23, 2
        // Predicated region
        $region81: #{tpu_custom_call.1} parent=79 // pred_check
          %p4569 = pneg %p293
        $region82: #{tpu_custom_call.1} parent=79 // pred_check_branch
          %4571 = sbr.rel (%p4569) target = $region84
        $region83: #{tpu_custom_call.1} parent=79 // pred_region
          %s4572 = sand.u32 %s278, 1
          %s4573 = scalar_lea.sflag [#allocation4], %s4572
          %s4574 = sand.u32 %s278, 1
          %s4575 = smul.addr %s4574, 128
          %s4576 = scalar_lea.vmem [#allocation8], %s4575
          %4577 = dma.done %s4573, 2048
        $region84: #{tpu_custom_call.1} parent=79 // pred_fallthru
          _
      $region80: #{tpu_custom_call.1} parent=5 // pred_fallthru
        _
    $region6: #{tpu_custom_call.1} parent=1 // loop_footer
      %s27 = sadd.s32 1, %s23
    $region7: #{tpu_custom_call.1} parent=1 // loop_footer_branch
      %22 = sbr.rel target = $region3
    $region8: #{tpu_custom_call.1} parent=1 // loop_exit
      _
    %4578 = vsyncpa [#allocation3], 1
    %s4579 = scalar_lea.sflag [#allocation3], 1
    %4580 = vsyncpa %s4579, 1
    %4581 = vsyncpa [#allocation6], 1
    %4582 = vsyncpa [#allocation4], 1
    %s4583 = scalar_lea.sflag [#allocation4], 1
    %4584 = vsyncpa %s4583, 1

</llo_original>
